<compile_context>
chip_gen: v6e
topology: v6e:2x2x1
jax: 0.10.0
libtpu: 0.0.40
codegen_flags: <defaults>
</compile_context>

<pallas_src>
import jax
import jax.numpy as jnp
from jax import lax
from jax.experimental import pallas as pl
from jax.experimental.pallas import tpu as pltpu


# ----------------------------------------------------------------------------
# Kernel
# ----------------------------------------------------------------------------
def _soft_q_kernel(state_ref, action_ref,            # [B,S] f32, [B,A] f32
                   g0s_ref, be0s_ref,                # bn0 gamma/beta (state)  [1,S]
                   g0a_ref, be0a_ref,                # bn0 gamma/beta (action) [1,A]
                   w1s_ref, w1a_ref, b1_ref,         # fc1 split: [S,F1]/[A,F1] bf16, [1,F1] f32
                   g1_ref, be1_ref,                  # bn1 gamma/beta [1,F1]
                   w2_hbm, b2_ref,                   # fc2: [F1,F2] bf16 in HBM, [1,F2] f32
                   w3_hbm, b3_ref,                   # fc3: [F2,Ap] bf16 in HBM, [1,Ap] f32
                   out_ref,                          # [B,Ap] f32 (lane-dense)
                   w2_buf, w3_buf, sem):             # VMEM scratch + DMA sems
    eps = 1e-5

    # Kick off the fc2/fc3 weight DMAs immediately so they overlap the
    # bn0 / fc1 / bn1 compute below.
    cp_w2 = pltpu.make_async_copy(w2_hbm, w2_buf, sem.at[0])
    cp_w3 = pltpu.make_async_copy(w3_hbm, w3_buf, sem.at[1])
    cp_w2.start()
    cp_w3.start()

    s = state_ref[...]
    a = action_ref[...]
    inv_b = 1.0 / s.shape[0]                         # static batch size

    def bn_scale_shift(x, g, be):
        # Fused single-pass batch statistics folded to per-feature scale/shift.
        sm = jnp.sum(x, axis=0, keepdims=True)
        sq = jnp.sum(x * x, axis=0, keepdims=True)
        mu = sm * inv_b
        var = jnp.maximum(sq * inv_b - mu * mu, 0.0)
        scale = g * lax.rsqrt(var + eps)             # [1, F] — tiny
        shift = be - mu * scale                      # [1, F] — tiny
        return scale, shift

    # --- bn0: per-channel BN, state / action channels are independent -------
    sc_s, sh_s = bn_scale_shift(s, g0s_ref[...], be0s_ref[...])
    sc_a, sh_a = bn_scale_shift(a, g0a_ref[...], be0a_ref[...])
    sn = (s * sc_s + sh_s).astype(jnp.bfloat16)
    an = (a * sc_a + sh_a).astype(jnp.bfloat16)

    # --- fc1 (split along the concat axis, bf16 operands, f32 acc) + ReLU ---
    h1 = (jnp.dot(sn, w1s_ref[...], preferred_element_type=jnp.float32)
          + jnp.dot(an, w1a_ref[...], preferred_element_type=jnp.float32)
          + b1_ref[...])
    h1 = jnp.maximum(h1, 0.0)

    # --- bn1 (fused scale/shift) --------------------------------------------
    sc1, sh1 = bn_scale_shift(h1, g1_ref[...], be1_ref[...])
    h1n = (h1 * sc1 + sh1).astype(jnp.bfloat16)

    # --- fc2 (bf16) + ReLU ----------------------------------------------------
    cp_w2.wait()
    h2 = jnp.dot(h1n, w2_buf[...], preferred_element_type=jnp.float32) + b2_ref[...]
    h2 = jnp.maximum(h2, 0.0).astype(jnp.bfloat16)

    # --- fc3 (bf16) + tanh ----------------------------------------------------
    cp_w3.wait()
    q = jnp.dot(h2, w3_buf[...], preferred_element_type=jnp.float32) + b3_ref[...]
    out_ref[...] = jnp.tanh(q).astype(out_ref.dtype)


# ----------------------------------------------------------------------------
# Wrapper
# ----------------------------------------------------------------------------
def soft_q_forward(state, action, kparams):
    """state: [B, S] f32, action: [B, A] f32, kparams: prepare_params(...)."""
    B, S = state.shape
    A = action.shape[1]
    F1 = kparams["w1_s"].shape[1]
    F2 = kparams["w2"].shape[1]
    a_pad = kparams["w3"].shape[1]                   # lane-padded output dim

    vmem = pl.BlockSpec(memory_space=pltpu.MemorySpace.VMEM)
    hbm = pl.BlockSpec(memory_space=pl.ANY)          # manual DMA inside kernel

    args = (state.astype(jnp.float32), action.astype(jnp.float32),
            kparams["g0_s"], kparams["be0_s"],
            kparams["g0_a"], kparams["be0_a"],
            kparams["w1_s"], kparams["w1_a"], kparams["b1"],
            kparams["g1"], kparams["be1"],
            kparams["w2"], kparams["b2"],
            kparams["w3"], kparams["b3"])
    in_specs = [vmem] * len(args)
    in_specs[11] = hbm                               # w2
    in_specs[13] = hbm                               # w3

    # Advisory cost so XLA schedules neighbouring HLOs around this tiny call.
    flops = 2 * B * (S * F1 + A * F1 + F1 * F2 + F2 * a_pad)
    bytes_acc = (state.size + action.size + B * a_pad) * 4 + sum(
        int(v.size) * v.dtype.itemsize for v in kparams.values())
    cost = pl.CostEstimate(flops=int(flops),
                           transcendentals=int(B * a_pad),
                           bytes_accessed=int(bytes_acc))

    out = pl.pallas_call(
        _soft_q_kernel,
        out_shape=jax.ShapeDtypeStruct((B, a_pad), jnp.float32),
        in_specs=in_specs,
        out_specs=vmem,
        scratch_shapes=[
            pltpu.VMEM((F1, F2), jnp.bfloat16),      # w2 double of HBM copy
            pltpu.VMEM((F2, a_pad), jnp.bfloat16),   # w3
            pltpu.SemaphoreType.DMA((2,)),
        ],
        cost_estimate=cost,
    )(*args)
    return out[:, :A]


# ----------------------------------------------------------------------------
# Parameter construction (mirrors the PyTorch module's __init__)
# ----------------------------------------------------------------------------
def init_params(key, state_size, action_size, fc1_units=512, fc2_units=128,
                init_w=0.003):
    """Logical (unpadded) parameters. Linear weights stored as [in, out]."""
    d_in = state_size + action_size
    k1, k2, k3, k4, k5, k6 = jax.random.split(key, 6)

    def lin(kw, kb, fan_in, fan_out, bound=None):
        b = bound if bound is not None else 1.0 / float(jnp.sqrt(fan_in))
        w = jax.random.uniform(kw, (fan_in, fan_out), jnp.float32, -b, b)
        bias = jax.random.uniform(kb, (1, fan_out), jnp.float32, -b, b)
        return w, bias

    w1, b1 = lin(k1, k2, d_in, fc1_units)
    w2, b2 = lin(k3, k4, fc1_units, fc2_units)
    w3, b3 = lin(k5, k6, fc2_units, action_size, bound=init_w)

    return dict(
        # BatchNorm1d default affine init: gamma=1, beta=0
        g0=jnp.ones((1, d_in), jnp.float32),
        be0=jnp.zeros((1, d_in), jnp.float32),
        g1=jnp.ones((1, fc1_units), jnp.float32),
        be1=jnp.zeros((1, fc1_units), jnp.float32),
        w1=w1, b1=b1, w2=w2, b2=b2, w3=w3, b3=b3,
    )


def _round_up(n, m):
    return ((n + m - 1) // m) * m


def prepare_params(params, state_size):
    """One-time packing for the kernel:
       * split bn0/gamma/beta and w1 along the state/action concat axis
         (no runtime concatenation or padding needed),
       * cast fc1/fc2/fc3 weights to bf16 (f32 MXU accumulation in-kernel),
       * lane-pad the fc3 output dim to a multiple of 128 (padded columns are
         zero; padded outputs are tanh(0)=0 and sliced off in the wrapper)."""
    d_in, f1 = params["w1"].shape
    f2, a = params["w3"].shape
    a_pad = _round_up(a, 128)

    w3 = jnp.zeros((f2, a_pad), jnp.bfloat16).at[:, :a].set(
        params["w3"].astype(jnp.bfloat16))
    b3 = jnp.zeros((1, a_pad), jnp.float32).at[:, :a].set(params["b3"])

    return dict(
        g0_s=params["g0"][:, :state_size], be0_s=params["be0"][:, :state_size],
        g0_a=params["g0"][:, state_size:], be0_a=params["be0"][:, state_size:],
        w1_s=params["w1"][:state_size].astype(jnp.bfloat16),
        w1_a=params["w1"][state_size:].astype(jnp.bfloat16),
        b1=params["b1"],
        g1=params["g1"], be1=params["be1"],
        w2=params["w2"].astype(jnp.bfloat16), b2=params["b2"],
        w3=w3, b3=b3,
    )


# ----------------------------------------------------------------------------
# Pure-JAX references
# ----------------------------------------------------------------------------
def _reference_kernel_math(state, action, p, state_size):
    """Exact mirror of the kernel math (split BN / split fc1, bf16 matmul
    operands with f32 accumulation, scale/shift BN form)."""
    eps = 1e-5

    def bn(x, g, b):
        mu = jnp.mean(x, axis=0, keepdims=True)
        var = jnp.maximum(jnp.mean(x * x, axis=0, keepdims=True) - mu * mu, 0.0)
        scale = g * lax.rsqrt(var + eps)
        shift = b - mu * scale
        return x * scale + shift

    def mm(x, w):
        return jnp.dot(x.astype(jnp.bfloat16), w.astype(jnp.bfloat16),
                       preferred_element_type=jnp.float32)

    S = state_size
    xs = bn(state, p["g0"][:, :S], p["be0"][:, :S])
    xa = bn(action, p["g0"][:, S:], p["be0"][:, S:])
    h1 = jnp.maximum(mm(xs, p["w1"][:S]) + mm(xa, p["w1"][S:]) + p["b1"], 0.0)
    h1n = bn(h1, p["g1"], p["be1"])
    h2 = jnp.maximum(mm(h1n, p["w2"]) + p["b2"], 0.0)
    return jnp.tanh(mm(h2, p["w3"]) + p["b3"])


def _reference_f32(state, action, p):
    """Full-precision PyTorch-faithful reference (train-mode BatchNorm)."""
    eps = 1e-5
    x = jnp.concatenate([state, action], axis=1)

    def bn(a, g, b):
        mu = jnp.mean(a, axis=0, keepdims=True)
        var = jnp.mean((a - mu) ** 2, axis=0, keepdims=True)
        return (a - mu) / jnp.sqrt(var + eps) * g + b

    h = bn(x, p["g0"], p["be0"])
    h = jnp.maximum(h @ p["w1"] + p["b1"], 0.0)
    h = bn(h, p["g1"], p["be1"])
    h = jnp.maximum(h @ p["w2"] + p["b2"], 0.0)
    return jnp.tanh(h @ p["w3"] + p["b3"])


# ----------------------------------------------------------------------------
if __name__ == "__main__":
    key = jax.random.PRNGKey(0)
    k_param, k_state, k_action = jax.random.split(key, 3)

    # Batch 256 fills the MXU M-dim on v6e/v7x (256x256) as well as v5e
    # (128x128).  The whole problem is still tiny (<1 MiB resident), so the
    # entire batch stays in one VMEM block and BN batch statistics are exact.
    batch = 256
    state_size = 32
    action_size = 4

    params = init_params(k_param, state_size, action_size)
    kparams = prepare_params(params, state_size)

    state = jax.random.normal(k_state, (batch, state_size), jnp.float32)
    action = jax.random.normal(k_action, (batch, action_size), jnp.float32)

    out = soft_q_forward(state, action, kparams)
    out = jax.block_until_ready(out)
    assert out.shape == (batch, action_size)

    # Tight check against a reference that mirrors the kernel's bf16 math.
    ref_bf16 = _reference_kernel_math(state, action, params, state_size)
    assert jnp.allclose(out, ref_bf16, atol=3e-4, rtol=3e-4), \
        "mismatch vs bf16-matmul reference"

    # Loose sanity check against the full-f32 PyTorch-faithful math
    # (documents the deliberate bf16-weight approximation on fc1/fc2/fc3).
    ref_f32 = _reference_f32(state, action, params)
    assert jnp.allclose(out, ref_f32, atol=2e-2, rtol=0.0), \
        "bf16 deviation from f32 reference larger than expected"

    print("KERNEL_OK")
</pallas_src>

<mosaic_0001>
module attributes {stable_mosaic.version = 11 : i64} {
  func.func @_soft_q_kernel(%arg0: memref<256x32xf32, #tpu.memory_space<vmem>>, %arg1: memref<256x4xf32, #tpu.memory_space<vmem>>, %arg2: memref<1x32xf32, #tpu.memory_space<vmem>>, %arg3: memref<1x32xf32, #tpu.memory_space<vmem>>, %arg4: memref<1x4xf32, #tpu.memory_space<vmem>>, %arg5: memref<1x4xf32, #tpu.memory_space<vmem>>, %arg6: memref<32x512xbf16, #tpu.memory_space<vmem>>, %arg7: memref<4x512xbf16, #tpu.memory_space<vmem>>, %arg8: memref<1x512xf32, #tpu.memory_space<vmem>>, %arg9: memref<1x512xf32, #tpu.memory_space<vmem>>, %arg10: memref<1x512xf32, #tpu.memory_space<vmem>>, %arg11: memref<512x128xbf16, #tpu.memory_space<any>>, %arg12: memref<1x128xf32, #tpu.memory_space<vmem>>, %arg13: memref<128x128xbf16, #tpu.memory_space<any>>, %arg14: memref<1x128xf32, #tpu.memory_space<vmem>>, %arg15: memref<256x128xf32, #tpu.memory_space<vmem>>, %arg16: memref<512x128xbf16, #tpu.memory_space<vmem>>, %arg17: memref<128x128xbf16, #tpu.memory_space<vmem>>, %arg18: memref<2x!tpu.dma_semaphore, #tpu.memory_space<semaphore_mem>>) attributes {dimension_semantics = [], scalar_prefetch = 0 : i64, scratch_operands = 3 : i64, tpu.core_type = #tpu.core_type<tc>} {
    %c0_i32 = arith.constant 0 : i32
    %0 = tpu.memref_slice %arg18[%c0_i32] : memref<2x!tpu.dma_semaphore, #tpu.memory_space<semaphore_mem>> -> memref<1x!tpu.dma_semaphore, #tpu.memory_space<semaphore_mem>>
    %1 = tpu.memref_squeeze %0 : memref<1x!tpu.dma_semaphore, #tpu.memory_space<semaphore_mem>> -> memref<!tpu.dma_semaphore, #tpu.memory_space<semaphore_mem>>
    tpu.enqueue_dma source(%arg11 : memref<512x128xbf16, #tpu.memory_space<any>>) target(%arg16 : memref<512x128xbf16, #tpu.memory_space<vmem>>) target_semaphore(%1 : memref<!tpu.dma_semaphore, #tpu.memory_space<semaphore_mem>>)
    %c1_i32 = arith.constant 1 : i32
    %2 = tpu.memref_slice %arg18[%c1_i32] : memref<2x!tpu.dma_semaphore, #tpu.memory_space<semaphore_mem>> -> memref<1x!tpu.dma_semaphore, #tpu.memory_space<semaphore_mem>>
    %3 = tpu.memref_squeeze %2 : memref<1x!tpu.dma_semaphore, #tpu.memory_space<semaphore_mem>> -> memref<!tpu.dma_semaphore, #tpu.memory_space<semaphore_mem>>
    tpu.enqueue_dma source(%arg13 : memref<128x128xbf16, #tpu.memory_space<any>>) target(%arg17 : memref<128x128xbf16, #tpu.memory_space<vmem>>) target_semaphore(%3 : memref<!tpu.dma_semaphore, #tpu.memory_space<semaphore_mem>>)
    %c0 = arith.constant 0 : index
    %c0_0 = arith.constant 0 : index
    %4 = vector.load %arg0[%c0, %c0_0] : memref<256x32xf32, #tpu.memory_space<vmem>>, vector<256x32xf32>
    %c0_1 = arith.constant 0 : index
    %c0_2 = arith.constant 0 : index
    %5 = vector.load %arg1[%c0_1, %c0_2] : memref<256x4xf32, #tpu.memory_space<vmem>>, vector<256x4xf32>
    %c0_3 = arith.constant 0 : index
    %c0_4 = arith.constant 0 : index
    %6 = vector.load %arg2[%c0_3, %c0_4] : memref<1x32xf32, #tpu.memory_space<vmem>>, vector<1x32xf32>
    %c0_5 = arith.constant 0 : index
    %c0_6 = arith.constant 0 : index
    %7 = vector.load %arg3[%c0_5, %c0_6] : memref<1x32xf32, #tpu.memory_space<vmem>>, vector<1x32xf32>
    %cst = arith.constant dense<0.000000e+00> : vector<32xf32>
    %8 = vector.multi_reduction <add>, %4, %cst [0] : vector<256x32xf32> to vector<32xf32>
    %9 = vector.shape_cast %8 : vector<32xf32> to vector<1x32xf32>
    %10 = arith.mulf %4, %4 : vector<256x32xf32>
    %cst_7 = arith.constant dense<0.000000e+00> : vector<32xf32>
    %11 = vector.multi_reduction <add>, %10, %cst_7 [0] : vector<256x32xf32> to vector<32xf32>
    %12 = vector.shape_cast %11 : vector<32xf32> to vector<1x32xf32>
    %cst_8 = arith.constant 3.906250e-03 : f32
    %13 = vector.broadcast %cst_8 : f32 to vector<1x32xf32>
    %14 = arith.mulf %9, %13 : vector<1x32xf32>
    %cst_9 = arith.constant 3.906250e-03 : f32
    %15 = vector.broadcast %cst_9 : f32 to vector<1x32xf32>
    %16 = arith.mulf %12, %15 : vector<1x32xf32>
    %17 = arith.mulf %14, %14 : vector<1x32xf32>
    %18 = arith.subf %16, %17 : vector<1x32xf32>
    %cst_10 = arith.constant 0.000000e+00 : f32
    %19 = vector.broadcast %cst_10 : f32 to vector<1x32xf32>
    %20 = arith.maximumf %18, %19 : vector<1x32xf32>
    %cst_11 = arith.constant 9.99999974E-6 : f32
    %21 = vector.broadcast %cst_11 : f32 to vector<1x32xf32>
    %22 = arith.addf %20, %21 : vector<1x32xf32>
    %23 = math.rsqrt %22 : vector<1x32xf32>
    %24 = arith.mulf %6, %23 : vector<1x32xf32>
    %25 = arith.mulf %14, %24 : vector<1x32xf32>
    %26 = arith.subf %7, %25 : vector<1x32xf32>
    %c0_12 = arith.constant 0 : index
    %c0_13 = arith.constant 0 : index
    %27 = vector.load %arg4[%c0_12, %c0_13] : memref<1x4xf32, #tpu.memory_space<vmem>>, vector<1x4xf32>
    %c0_14 = arith.constant 0 : index
    %c0_15 = arith.constant 0 : index
    %28 = vector.load %arg5[%c0_14, %c0_15] : memref<1x4xf32, #tpu.memory_space<vmem>>, vector<1x4xf32>
    %cst_16 = arith.constant dense<0.000000e+00> : vector<4xf32>
    %29 = vector.multi_reduction <add>, %5, %cst_16 [0] : vector<256x4xf32> to vector<4xf32>
    %30 = vector.shape_cast %29 : vector<4xf32> to vector<1x4xf32>
    %31 = arith.mulf %5, %5 : vector<256x4xf32>
    %cst_17 = arith.constant dense<0.000000e+00> : vector<4xf32>
    %32 = vector.multi_reduction <add>, %31, %cst_17 [0] : vector<256x4xf32> to vector<4xf32>
    %33 = vector.shape_cast %32 : vector<4xf32> to vector<1x4xf32>
    %cst_18 = arith.constant 3.906250e-03 : f32
    %34 = vector.broadcast %cst_18 : f32 to vector<1x4xf32>
    %35 = arith.mulf %30, %34 : vector<1x4xf32>
    %cst_19 = arith.constant 3.906250e-03 : f32
    %36 = vector.broadcast %cst_19 : f32 to vector<1x4xf32>
    %37 = arith.mulf %33, %36 : vector<1x4xf32>
    %38 = arith.mulf %35, %35 : vector<1x4xf32>
    %39 = arith.subf %37, %38 : vector<1x4xf32>
    %cst_20 = arith.constant 0.000000e+00 : f32
    %40 = vector.broadcast %cst_20 : f32 to vector<1x4xf32>
    %41 = arith.maximumf %39, %40 : vector<1x4xf32>
    %cst_21 = arith.constant 9.99999974E-6 : f32
    %42 = vector.broadcast %cst_21 : f32 to vector<1x4xf32>
    %43 = arith.addf %41, %42 : vector<1x4xf32>
    %44 = math.rsqrt %43 : vector<1x4xf32>
    %45 = arith.mulf %27, %44 : vector<1x4xf32>
    %46 = arith.mulf %35, %45 : vector<1x4xf32>
    %47 = arith.subf %28, %46 : vector<1x4xf32>
    %48 = vector.broadcast %24 : vector<1x32xf32> to vector<256x32xf32>
    %49 = arith.mulf %4, %48 : vector<256x32xf32>
    %50 = vector.broadcast %26 : vector<1x32xf32> to vector<256x32xf32>
    %51 = arith.addf %49, %50 : vector<256x32xf32>
    %52 = arith.truncf %51 : vector<256x32xf32> to vector<256x32xbf16>
    %53 = vector.broadcast %45 : vector<1x4xf32> to vector<256x4xf32>
    %54 = arith.mulf %5, %53 : vector<256x4xf32>
    %55 = vector.broadcast %47 : vector<1x4xf32> to vector<256x4xf32>
    %56 = arith.addf %54, %55 : vector<256x4xf32>
    %57 = arith.truncf %56 : vector<256x4xf32> to vector<256x4xbf16>
    %c0_22 = arith.constant 0 : index
    %c0_23 = arith.constant 0 : index
    %58 = vector.load %arg6[%c0_22, %c0_23] : memref<32x512xbf16, #tpu.memory_space<vmem>>, vector<32x512xbf16>
    %cst_24 = arith.constant dense<0.000000e+00> : vector<256x512xf32>
    %59 = tpu.matmul %52, %58, %cst_24 {dimension_numbers = #tpu.dot_dimension_numbers<[1], [0], [0], [1], [0, 0, 1, 1], [], []>} : vector<256x32xbf16>, vector<32x512xbf16>, vector<256x512xf32> -> vector<256x512xf32>
    %c0_25 = arith.constant 0 : index
    %c0_26 = arith.constant 0 : index
    %60 = vector.load %arg7[%c0_25, %c0_26] : memref<4x512xbf16, #tpu.memory_space<vmem>>, vector<4x512xbf16>
    %cst_27 = arith.constant dense<0.000000e+00> : vector<256x512xf32>
    %61 = tpu.matmul %57, %60, %cst_27 {dimension_numbers = #tpu.dot_dimension_numbers<[1], [0], [0], [1], [0, 0, 1, 1], [], []>} : vector<256x4xbf16>, vector<4x512xbf16>, vector<256x512xf32> -> vector<256x512xf32>
    %62 = arith.addf %59, %61 : vector<256x512xf32>
    %c0_28 = arith.constant 0 : index
    %c0_29 = arith.constant 0 : index
    %63 = vector.load %arg8[%c0_28, %c0_29] : memref<1x512xf32, #tpu.memory_space<vmem>>, vector<1x512xf32>
    %64 = vector.broadcast %63 : vector<1x512xf32> to vector<256x512xf32>
    %65 = arith.addf %62, %64 : vector<256x512xf32>
    %cst_30 = arith.constant 0.000000e+00 : f32
    %66 = vector.broadcast %cst_30 : f32 to vector<256x512xf32>
    %67 = arith.maximumf %65, %66 : vector<256x512xf32>
    %c0_31 = arith.constant 0 : index
    %c0_32 = arith.constant 0 : index
    %68 = vector.load %arg9[%c0_31, %c0_32] : memref<1x512xf32, #tpu.memory_space<vmem>>, vector<1x512xf32>
    %c0_33 = arith.constant 0 : index
    %c0_34 = arith.constant 0 : index
    %69 = vector.load %arg10[%c0_33, %c0_34] : memref<1x512xf32, #tpu.memory_space<vmem>>, vector<1x512xf32>
    %cst_35 = arith.constant dense<0.000000e+00> : vector<512xf32>
    %70 = vector.multi_reduction <add>, %67, %cst_35 [0] : vector<256x512xf32> to vector<512xf32>
    %71 = vector.shape_cast %70 : vector<512xf32> to vector<1x512xf32>
    %72 = arith.mulf %67, %67 : vector<256x512xf32>
    %cst_36 = arith.constant dense<0.000000e+00> : vector<512xf32>
    %73 = vector.multi_reduction <add>, %72, %cst_36 [0] : vector<256x512xf32> to vector<512xf32>
    %74 = vector.shape_cast %73 : vector<512xf32> to vector<1x512xf32>
    %cst_37 = arith.constant 3.906250e-03 : f32
    %75 = vector.broadcast %cst_37 : f32 to vector<1x512xf32>
    %76 = arith.mulf %71, %75 : vector<1x512xf32>
    %cst_38 = arith.constant 3.906250e-03 : f32
    %77 = vector.broadcast %cst_38 : f32 to vector<1x512xf32>
    %78 = arith.mulf %74, %77 : vector<1x512xf32>
    %79 = arith.mulf %76, %76 : vector<1x512xf32>
    %80 = arith.subf %78, %79 : vector<1x512xf32>
    %cst_39 = arith.constant 0.000000e+00 : f32
    %81 = vector.broadcast %cst_39 : f32 to vector<1x512xf32>
    %82 = arith.maximumf %80, %81 : vector<1x512xf32>
    %cst_40 = arith.constant 9.99999974E-6 : f32
    %83 = vector.broadcast %cst_40 : f32 to vector<1x512xf32>
    %84 = arith.addf %82, %83 : vector<1x512xf32>
    %85 = math.rsqrt %84 : vector<1x512xf32>
    %86 = arith.mulf %68, %85 : vector<1x512xf32>
    %87 = arith.mulf %76, %86 : vector<1x512xf32>
    %88 = arith.subf %69, %87 : vector<1x512xf32>
    %89 = vector.broadcast %86 : vector<1x512xf32> to vector<256x512xf32>
    %90 = arith.mulf %67, %89 : vector<256x512xf32>
    %91 = vector.broadcast %88 : vector<1x512xf32> to vector<256x512xf32>
    %92 = arith.addf %90, %91 : vector<256x512xf32>
    %93 = arith.truncf %92 : vector<256x512xf32> to vector<256x512xbf16>
    %c0_i32_41 = arith.constant 0 : i32
    %94 = tpu.memref_slice %arg18[%c0_i32_41] : memref<2x!tpu.dma_semaphore, #tpu.memory_space<semaphore_mem>> -> memref<1x!tpu.dma_semaphore, #tpu.memory_space<semaphore_mem>>
    %95 = tpu.memref_squeeze %94 : memref<1x!tpu.dma_semaphore, #tpu.memory_space<semaphore_mem>> -> memref<!tpu.dma_semaphore, #tpu.memory_space<semaphore_mem>>
    tpu.wait_dma2 semaphore(%95 : memref<!tpu.dma_semaphore, #tpu.memory_space<semaphore_mem>>) src(%arg11 : memref<512x128xbf16, #tpu.memory_space<any>>) dst(%arg16 : memref<512x128xbf16, #tpu.memory_space<vmem>>)
    %c0_42 = arith.constant 0 : index
    %c0_43 = arith.constant 0 : index
    %96 = vector.load %arg16[%c0_42, %c0_43] : memref<512x128xbf16, #tpu.memory_space<vmem>>, vector<512x128xbf16>
    %cst_44 = arith.constant dense<0.000000e+00> : vector<256x128xf32>
    %97 = tpu.matmul %93, %96, %cst_44 {dimension_numbers = #tpu.dot_dimension_numbers<[1], [0], [0], [1], [0, 0, 1, 1], [], []>} : vector<256x512xbf16>, vector<512x128xbf16>, vector<256x128xf32> -> vector<256x128xf32>
    %c0_45 = arith.constant 0 : index
    %c0_46 = arith.constant 0 : index
    %98 = vector.load %arg12[%c0_45, %c0_46] : memref<1x128xf32, #tpu.memory_space<vmem>>, vector<1x128xf32>
    %99 = vector.broadcast %98 : vector<1x128xf32> to vector<256x128xf32>
    %100 = arith.addf %97, %99 : vector<256x128xf32>
    %cst_47 = arith.constant 0.000000e+00 : f32
    %101 = vector.broadcast %cst_47 : f32 to vector<256x128xf32>
    %102 = arith.maximumf %100, %101 : vector<256x128xf32>
    %103 = arith.truncf %102 : vector<256x128xf32> to vector<256x128xbf16>
    %c1_i32_48 = arith.constant 1 : i32
    %104 = tpu.memref_slice %arg18[%c1_i32_48] : memref<2x!tpu.dma_semaphore, #tpu.memory_space<semaphore_mem>> -> memref<1x!tpu.dma_semaphore, #tpu.memory_space<semaphore_mem>>
    %105 = tpu.memref_squeeze %104 : memref<1x!tpu.dma_semaphore, #tpu.memory_space<semaphore_mem>> -> memref<!tpu.dma_semaphore, #tpu.memory_space<semaphore_mem>>
    tpu.wait_dma2 semaphore(%105 : memref<!tpu.dma_semaphore, #tpu.memory_space<semaphore_mem>>) src(%arg13 : memref<128x128xbf16, #tpu.memory_space<any>>) dst(%arg17 : memref<128x128xbf16, #tpu.memory_space<vmem>>)
    %c0_49 = arith.constant 0 : index
    %c0_50 = arith.constant 0 : index
    %106 = vector.load %arg17[%c0_49, %c0_50] : memref<128x128xbf16, #tpu.memory_space<vmem>>, vector<128x128xbf16>
    %cst_51 = arith.constant dense<0.000000e+00> : vector<256x128xf32>
    %107 = tpu.matmul %103, %106, %cst_51 {dimension_numbers = #tpu.dot_dimension_numbers<[1], [0], [0], [1], [0, 0, 1, 1], [], []>} : vector<256x128xbf16>, vector<128x128xbf16>, vector<256x128xf32> -> vector<256x128xf32>
    %c0_52 = arith.constant 0 : index
    %c0_53 = arith.constant 0 : index
    %108 = vector.load %arg14[%c0_52, %c0_53] : memref<1x128xf32, #tpu.memory_space<vmem>>, vector<1x128xf32>
    %109 = vector.broadcast %108 : vector<1x128xf32> to vector<256x128xf32>
    %110 = arith.addf %107, %109 : vector<256x128xf32>
    %111 = math.tanh %110 : vector<256x128xf32>
    %c0_54 = arith.constant 0 : index
    %c0_55 = arith.constant 0 : index
    %112 = vector.load %arg15[%c0_54, %c0_55] : memref<256x128xf32, #tpu.memory_space<vmem>>, vector<256x128xf32>
    tpu.vector_store %arg15[%c0_54, %c0_55], %111 {strides = array<i32>} : memref<256x128xf32, #tpu.memory_space<vmem>>, vector<256x128xf32>,
    return
  }
}

</mosaic_0001>

<llo_original>
// kernel: tpu_custom_call.1
$region0: #{tpu_custom_call.1}
  #allocation0 [shape = 'u32[]', space=smem, size = 0x4, offset = 0x4, fixed_abs, tag = 'smem constant byte address 0x4 - core index']
  #allocation1 [shape = 'u32[144,128]{1,0:T(1,128)}', space=vmem, size = 0x12000, scoped, tag = 'internal scratch']
  #allocation2 [shape = 'bf16[512,128]{1,0:T(8,128)(2,1)}', space=vmem, size = 0x20000, scoped, tag = 'scratch operand']
  #allocation3 [shape = 'bf16[128,128]{1,0:T(8,128)(2,1)}', space=vmem, size = 0x8000, scoped, tag = 'scratch operand']
  #allocation4 [shape = 's32[2]{0}', space=sflag, size = 0x8, scoped, tag = 'scratch operand']
  #allocation7 [shape = 's32[]', space=sflag, size = 0x4, offset = 0, fixed_abs, tag = 'sflag constant byte address 0x0 - dummy sync flag']
  #allocation8 [shape = 's32[]', space=sflag, size = 0x4, offset = 0, fixed_abs, tag = 'sflag constant byte address 0x0 - dummy sync flag']
  %s0 = inlined_call_operand.vmem [shape: f32[256,32], index: 0, kind: input, shape index: {}]
  %s1 = inlined_call_operand.vmem [shape: f32[256,4], index: 1, kind: input, shape index: {}]
  %s2 = inlined_call_operand.vmem [shape: f32[1,32], index: 2, kind: input, shape index: {}]
  %s3 = inlined_call_operand.vmem [shape: f32[1,32], index: 3, kind: input, shape index: {}]
  %s4 = inlined_call_operand.vmem [shape: f32[1,4], index: 4, kind: input, shape index: {}]
  %s5 = inlined_call_operand.vmem [shape: f32[1,4], index: 5, kind: input, shape index: {}]
  %s6 = inlined_call_operand.vmem [shape: bf16[32,512], index: 6, kind: input, shape index: {}]
  %s7 = inlined_call_operand.vmem [shape: bf16[4,512], index: 7, kind: input, shape index: {}]
  %s8 = inlined_call_operand.vmem [shape: f32[1,512], index: 8, kind: input, shape index: {}]
  %s9 = inlined_call_operand.vmem [shape: f32[1,512], index: 9, kind: input, shape index: {}]
  %s10 = inlined_call_operand.vmem [shape: f32[1,512], index: 10, kind: input, shape index: {}]
  %s11 = inlined_call_operand.vmem [shape: bf16[512,128], index: 11, kind: input, shape index: {}]
  %s12 = inlined_call_operand.vmem [shape: f32[1,128], index: 12, kind: input, shape index: {}]
  %s13 = inlined_call_operand.vmem [shape: bf16[128,128], index: 13, kind: input, shape index: {}]
  %s14 = inlined_call_operand.vmem [shape: f32[1,128], index: 14, kind: input, shape index: {}]
  %s15 = inlined_call_operand.hbm [shape: f32[256,128], index: 15, kind: output, shape index: {}]
  %s16 = sld [smem:[#allocation0]]
  $region130: #{tpu_custom_call.1} parent=0
    _
  %s18 = ssub.s32 1, %s16
  %s19 = scalar_select 0, %s18, %s16
  $region1: #{tpu_custom_call.1} parent=0
    #allocation5 [shape = 'u8[131072]{0}', space=vmem, size = 0x20000, scoped, tag = 'output window, operand 0, single buffered']
    #allocation6 [shape = 's32[1]{0}', space=sflag, size = 0x4, scoped, tag = 'scoped memory for tpu_custom_call.1']
    %20 = vsyncpa [#allocation6], 0
    // Predicated region
    $region2: #{tpu_custom_call.1} parent=1 // pred_check
      _
    $region3: #{tpu_custom_call.1} parent=1 // pred_check_branch
      %22 = sbr.rel (0) target = $region5
    $region4: #{tpu_custom_call.1} parent=1 // pred_region
      _
    $region5: #{tpu_custom_call.1} parent=1 // pred_fallthru
      _
    // Predicated region
    $region6: #{tpu_custom_call.1} parent=1 // pred_check
      _
    $region7: #{tpu_custom_call.1} parent=1 // pred_check_branch
      %24 = sbr.rel (0) target = $region9
    $region8: #{tpu_custom_call.1} parent=1 // pred_region
      _
    $region9: #{tpu_custom_call.1} parent=1 // pred_fallthru
      _
    // Predicated region
    $region10: #{tpu_custom_call.1} parent=1 // pred_check
      _
    $region11: #{tpu_custom_call.1} parent=1 // pred_check_branch
      %26 = sbr.rel (0) target = $region13
    $region12: #{tpu_custom_call.1} parent=1 // pred_region
      _
    $region13: #{tpu_custom_call.1} parent=1 // pred_fallthru
      _
    // Predicated region
    $region14: #{tpu_custom_call.1} parent=1 // pred_check
      _
    $region15: #{tpu_custom_call.1} parent=1 // pred_check_branch
      %28 = sbr.rel (0) target = $region17
    $region16: #{tpu_custom_call.1} parent=1 // pred_region
      _
    $region17: #{tpu_custom_call.1} parent=1 // pred_fallthru
      _
    // Predicated region
    $region18: #{tpu_custom_call.1} parent=1 // pred_check
      _
    $region19: #{tpu_custom_call.1} parent=1 // pred_check_branch
      %30 = sbr.rel (0) target = $region21
    $region20: #{tpu_custom_call.1} parent=1 // pred_region
      _
    $region21: #{tpu_custom_call.1} parent=1 // pred_fallthru
      _
    // Predicated region
    $region22: #{tpu_custom_call.1} parent=1 // pred_check
      _
    $region23: #{tpu_custom_call.1} parent=1 // pred_check_branch
      %32 = sbr.rel (0) target = $region25
    $region24: #{tpu_custom_call.1} parent=1 // pred_region
      _
    $region25: #{tpu_custom_call.1} parent=1 // pred_fallthru
      _
    // Predicated region
    $region26: #{tpu_custom_call.1} parent=1 // pred_check
      _
    $region27: #{tpu_custom_call.1} parent=1 // pred_check_branch
      %34 = sbr.rel (0) target = $region29
    $region28: #{tpu_custom_call.1} parent=1 // pred_region
      _
    $region29: #{tpu_custom_call.1} parent=1 // pred_fallthru
      _
    // Predicated region
    $region30: #{tpu_custom_call.1} parent=1 // pred_check
      _
    $region31: #{tpu_custom_call.1} parent=1 // pred_check_branch
      %36 = sbr.rel (0) target = $region33
    $region32: #{tpu_custom_call.1} parent=1 // pred_region
      _
    $region33: #{tpu_custom_call.1} parent=1 // pred_fallthru
      _
    // Predicated region
    $region34: #{tpu_custom_call.1} parent=1 // pred_check
      _
    $region35: #{tpu_custom_call.1} parent=1 // pred_check_branch
      %38 = sbr.rel (0) target = $region37
    $region36: #{tpu_custom_call.1} parent=1 // pred_region
      _
    $region37: #{tpu_custom_call.1} parent=1 // pred_fallthru
      _
    // Predicated region
    $region38: #{tpu_custom_call.1} parent=1 // pred_check
      _
    $region39: #{tpu_custom_call.1} parent=1 // pred_check_branch
      %40 = sbr.rel (0) target = $region41
    $region40: #{tpu_custom_call.1} parent=1 // pred_region
      _
    $region41: #{tpu_custom_call.1} parent=1 // pred_fallthru
      _
    // Predicated region
    $region42: #{tpu_custom_call.1} parent=1 // pred_check
      _
    $region43: #{tpu_custom_call.1} parent=1 // pred_check_branch
      %42 = sbr.rel (0) target = $region45
    $region44: #{tpu_custom_call.1} parent=1 // pred_region
      _
    $region45: #{tpu_custom_call.1} parent=1 // pred_fallthru
      _
    // Predicated region
    $region46: #{tpu_custom_call.1} parent=1 // pred_check
      _
    $region47: #{tpu_custom_call.1} parent=1 // pred_check_branch
      %44 = sbr.rel (0) target = $region49
    $region48: #{tpu_custom_call.1} parent=1 // pred_region
      _
    $region49: #{tpu_custom_call.1} parent=1 // pred_fallthru
      _
    // Predicated region
    $region50: #{tpu_custom_call.1} parent=1 // pred_check
      _
    $region51: #{tpu_custom_call.1} parent=1 // pred_check_branch
      %46 = sbr.rel (0) target = $region53
    $region52: #{tpu_custom_call.1} parent=1 // pred_region
      _
    $region53: #{tpu_custom_call.1} parent=1 // pred_fallthru
      _
    %p49 = scmp.lt.u32.totalorder 256, 8
    %p50 = pneg %p49
    // Predicated region
    $region54: #{tpu_custom_call.1} parent=1 // pred_check
      _
    $region55: #{tpu_custom_call.1} parent=1 // pred_check_branch
      %52 = sbr.rel (%p49) target = $region57
    $region56: #{tpu_custom_call.1} parent=1 // pred_region
      %s68 = sand.u32 256, 7
      %p69 = scmp.eq.s32.totalorder %s68, 0
      // Predicated region
      $region69: #{tpu_custom_call.1} parent=56 // pred_check
        %p70 = pneg %p69
      $region70: #{tpu_custom_call.1} parent=56 // pred_check_branch
        %72 = sbr.rel (%p70) target = $region72
      $region71: #{tpu_custom_call.1} parent=56 // pred_region
        loop: start=0, step=1, limit=1
        $region73: #{tpu_custom_call.1} parent=71 // loop_pre_header
          _
        $region74: #{tpu_custom_call.1} parent=71 // loop_header
          %s74 = sphi 0, %s78
          %p75 = scmp.ge.s32.totalorder %s74, 1
          %s79 = sphi %s11, %s11
          %s80 = sphi [#allocation2], [#allocation2]
        $region75: #{tpu_custom_call.1} parent=71 // loop_header_branch
          %77 = sbr.rel (%p75) target = $region79
        $region76: #{tpu_custom_call.1} parent=71 // loop_body
          %v81 = vld [vmem:[%s79] sm:$0xff]
          %82 = vst [vmem:[%s80] sm:$0xff] %v81
          %v83 = vld [vmem:[%s79 + $0x8] sm:$0xff]
          %84 = vst [vmem:[%s80 + $0x8] sm:$0xff] %v83
          %v85 = vld [vmem:[%s79 + $0x10] sm:$0xff]
          %86 = vst [vmem:[%s80 + $0x10] sm:$0xff] %v85
          %v87 = vld [vmem:[%s79 + $0x18] sm:$0xff]
          %88 = vst [vmem:[%s80 + $0x18] sm:$0xff] %v87
          %v89 = vld [vmem:[%s79 + $0x20] sm:$0xff]
          %90 = vst [vmem:[%s80 + $0x20] sm:$0xff] %v89
          %v91 = vld [vmem:[%s79 + $0x28] sm:$0xff]
          %92 = vst [vmem:[%s80 + $0x28] sm:$0xff] %v91
          %v93 = vld [vmem:[%s79 + $0x30] sm:$0xff]
          %94 = vst [vmem:[%s80 + $0x30] sm:$0xff] %v93
          %v95 = vld [vmem:[%s79 + $0x38] sm:$0xff]
          %96 = vst [vmem:[%s80 + $0x38] sm:$0xff] %v95
          %v97 = vld [vmem:[%s79 + $0x40] sm:$0xff]
          %98 = vst [vmem:[%s80 + $0x40] sm:$0xff] %v97
          %v99 = vld [vmem:[%s79 + $0x48] sm:$0xff]
          %100 = vst [vmem:[%s80 + $0x48] sm:$0xff] %v99
          %v101 = vld [vmem:[%s79 + $0x50] sm:$0xff]
          %102 = vst [vmem:[%s80 + $0x50] sm:$0xff] %v101
          %v103 = vld [vmem:[%s79 + $0x58] sm:$0xff]
          %104 = vst [vmem:[%s80 + $0x58] sm:$0xff] %v103
          %v105 = vld [vmem:[%s79 + $0x60] sm:$0xff]
          %106 = vst [vmem:[%s80 + $0x60] sm:$0xff] %v105
          %v107 = vld [vmem:[%s79 + $0x68] sm:$0xff]
          %108 = vst [vmem:[%s80 + $0x68] sm:$0xff] %v107
          %v109 = vld [vmem:[%s79 + $0x70] sm:$0xff]
          %110 = vst [vmem:[%s80 + $0x70] sm:$0xff] %v109
          %v111 = vld [vmem:[%s79 + $0x78] sm:$0xff]
          %112 = vst [vmem:[%s80 + $0x78] sm:$0xff] %v111
          %v113 = vld [vmem:[%s79 + $0x80] sm:$0xff]
          %114 = vst [vmem:[%s80 + $0x80] sm:$0xff] %v113
          %v115 = vld [vmem:[%s79 + $0x88] sm:$0xff]
          %116 = vst [vmem:[%s80 + $0x88] sm:$0xff] %v115
          %v117 = vld [vmem:[%s79 + $0x90] sm:$0xff]
          %118 = vst [vmem:[%s80 + $0x90] sm:$0xff] %v117
          %v119 = vld [vmem:[%s79 + $0x98] sm:$0xff]
          %120 = vst [vmem:[%s80 + $0x98] sm:$0xff] %v119
          %v121 = vld [vmem:[%s79 + $0xa0] sm:$0xff]
          %122 = vst [vmem:[%s80 + $0xa0] sm:$0xff] %v121
          %v123 = vld [vmem:[%s79 + $0xa8] sm:$0xff]
          %124 = vst [vmem:[%s80 + $0xa8] sm:$0xff] %v123
          %v125 = vld [vmem:[%s79 + $0xb0] sm:$0xff]
          %126 = vst [vmem:[%s80 + $0xb0] sm:$0xff] %v125
          %v127 = vld [vmem:[%s79 + $0xb8] sm:$0xff]
          %128 = vst [vmem:[%s80 + $0xb8] sm:$0xff] %v127
          %v129 = vld [vmem:[%s79 + $0xc0] sm:$0xff]
          %130 = vst [vmem:[%s80 + $0xc0] sm:$0xff] %v129
          %v131 = vld [vmem:[%s79 + $0xc8] sm:$0xff]
          %132 = vst [vmem:[%s80 + $0xc8] sm:$0xff] %v131
          %v133 = vld [vmem:[%s79 + $0xd0] sm:$0xff]
          %134 = vst [vmem:[%s80 + $0xd0] sm:$0xff] %v133
          %v135 = vld [vmem:[%s79 + $0xd8] sm:$0xff]
          %136 = vst [vmem:[%s80 + $0xd8] sm:$0xff] %v135
          %v137 = vld [vmem:[%s79 + $0xe0] sm:$0xff]
          %138 = vst [vmem:[%s80 + $0xe0] sm:$0xff] %v137
          %v139 = vld [vmem:[%s79 + $0xe8] sm:$0xff]
          %140 = vst [vmem:[%s80 + $0xe8] sm:$0xff] %v139
          %v141 = vld [vmem:[%s79 + $0xf0] sm:$0xff]
          %142 = vst [vmem:[%s80 + $0xf0] sm:$0xff] %v141
          %v143 = vld [vmem:[%s79 + $0xf8] sm:$0xff]
          %144 = vst [vmem:[%s80 + $0xf8] sm:$0xff] %v143
        $region77: #{tpu_custom_call.1} parent=71 // loop_footer
          %s78 = sadd.s32 1, %s74
        $region78: #{tpu_custom_call.1} parent=71 // loop_footer_branch
          %73 = sbr.rel target = $region74
        $region79: #{tpu_custom_call.1} parent=71 // loop_exit
          _
      $region72: #{tpu_custom_call.1} parent=56 // pred_fallthru
        _
      %p145 = pneg %p69
      // Predicated region
      $region80: #{tpu_custom_call.1} parent=56 // pred_check
        _
      $region81: #{tpu_custom_call.1} parent=56 // pred_check_branch
        %147 = sbr.rel (%p69) target = $region83
      $region82: #{tpu_custom_call.1} parent=56 // pred_region
        %s148 = sand.u32 256, 7
      $region83: #{tpu_custom_call.1} parent=56 // pred_fallthru
        _
    $region57: #{tpu_custom_call.1} parent=1 // pred_fallthru
      _
    // Predicated region
    $region58: #{tpu_custom_call.1} parent=1 // pred_check
      %p53 = pneg %p49
    $region59: #{tpu_custom_call.1} parent=1 // pred_check_branch
      %55 = sbr.rel (%p53) target = $region61
    $region60: #{tpu_custom_call.1} parent=1 // pred_region
      %s56 = sshll.u32 1, 256
      %s57 = ssub.s32 %s56, 1
      loop: start=0, step=1, limit=1
      $region62: #{tpu_custom_call.1} parent=60 // loop_pre_header
        _
      $region63: #{tpu_custom_call.1} parent=60 // loop_header
        %s59 = sphi 0, %s63
        %p60 = scmp.ge.s32.totalorder %s59, 1
        %s64 = sphi %s11, %s11
        %s65 = sphi [#allocation2], [#allocation2]
      $region64: #{tpu_custom_call.1} parent=60 // loop_header_branch
        %62 = sbr.rel (%p60) target = $region68
      $region65: #{tpu_custom_call.1} parent=60 // loop_body
        %v66 = vld [vmem:[%s64] sm:%s57]
        %67 = vst [vmem:[%s65] sm:%s57] %v66
      $region66: #{tpu_custom_call.1} parent=60 // loop_footer
        %s63 = sadd.s32 1, %s59
      $region67: #{tpu_custom_call.1} parent=60 // loop_footer_branch
        %58 = sbr.rel target = $region63
      $region68: #{tpu_custom_call.1} parent=60 // loop_exit
        _
    $region61: #{tpu_custom_call.1} parent=1 // pred_fallthru
      _
    // Predicated region
    $region84: #{tpu_custom_call.1} parent=1 // pred_check
      _
    $region85: #{tpu_custom_call.1} parent=1 // pred_check_branch
      %151 = sbr.rel (0) target = $region87
    $region86: #{tpu_custom_call.1} parent=1 // pred_region
      %152 = vsyncadd [#allocation4], 4096
    $region87: #{tpu_custom_call.1} parent=1 // pred_fallthru
      _
    %s153 = scalar_lea.sflag [#allocation4], 1
    %p155 = scmp.lt.u32.totalorder 64, 8
    %p156 = pneg %p155
    // Predicated region
    $region88: #{tpu_custom_call.1} parent=1 // pred_check
      _
    $region89: #{tpu_custom_call.1} parent=1 // pred_check_branch
      %158 = sbr.rel (%p155) target = $region91
    $region90: #{tpu_custom_call.1} parent=1 // pred_region
      %s174 = sand.u32 64, 7
      %p175 = scmp.eq.s32.totalorder %s174, 0
      // Predicated region
      $region103: #{tpu_custom_call.1} parent=90 // pred_check
        %p176 = pneg %p175
      $region104: #{tpu_custom_call.1} parent=90 // pred_check_branch
        %178 = sbr.rel (%p176) target = $region106
      $region105: #{tpu_custom_call.1} parent=90 // pred_region
        loop: start=0, step=1, limit=1
        $region107: #{tpu_custom_call.1} parent=105 // loop_pre_header
          _
        $region108: #{tpu_custom_call.1} parent=105 // loop_header
          %s180 = sphi 0, %s184
          %p181 = scmp.ge.s32.totalorder %s180, 1
          %s185 = sphi %s13, %s13
          %s186 = sphi [#allocation3], [#allocation3]
        $region109: #{tpu_custom_call.1} parent=105 // loop_header_branch
          %183 = sbr.rel (%p181) target = $region113
        $region110: #{tpu_custom_call.1} parent=105 // loop_body
          %v187 = vld [vmem:[%s185] sm:$0xff]
          %188 = vst [vmem:[%s186] sm:$0xff] %v187
          %v189 = vld [vmem:[%s185 + $0x8] sm:$0xff]
          %190 = vst [vmem:[%s186 + $0x8] sm:$0xff] %v189
          %v191 = vld [vmem:[%s185 + $0x10] sm:$0xff]
          %192 = vst [vmem:[%s186 + $0x10] sm:$0xff] %v191
          %v193 = vld [vmem:[%s185 + $0x18] sm:$0xff]
          %194 = vst [vmem:[%s186 + $0x18] sm:$0xff] %v193
          %v195 = vld [vmem:[%s185 + $0x20] sm:$0xff]
          %196 = vst [vmem:[%s186 + $0x20] sm:$0xff] %v195
          %v197 = vld [vmem:[%s185 + $0x28] sm:$0xff]
          %198 = vst [vmem:[%s186 + $0x28] sm:$0xff] %v197
          %v199 = vld [vmem:[%s185 + $0x30] sm:$0xff]
          %200 = vst [vmem:[%s186 + $0x30] sm:$0xff] %v199
          %v201 = vld [vmem:[%s185 + $0x38] sm:$0xff]
          %202 = vst [vmem:[%s186 + $0x38] sm:$0xff] %v201
        $region111: #{tpu_custom_call.1} parent=105 // loop_footer
          %s184 = sadd.s32 1, %s180
        $region112: #{tpu_custom_call.1} parent=105 // loop_footer_branch
          %179 = sbr.rel target = $region108
        $region113: #{tpu_custom_call.1} parent=105 // loop_exit
          _
      $region106: #{tpu_custom_call.1} parent=90 // pred_fallthru
        _
      %p203 = pneg %p175
      // Predicated region
      $region114: #{tpu_custom_call.1} parent=90 // pred_check
        _
      $region115: #{tpu_custom_call.1} parent=90 // pred_check_branch
        %205 = sbr.rel (%p175) target = $region117
      $region116: #{tpu_custom_call.1} parent=90 // pred_region
        %s206 = sand.u32 64, 7
      $region117: #{tpu_custom_call.1} parent=90 // pred_fallthru
        _
    $region91: #{tpu_custom_call.1} parent=1 // pred_fallthru
      _
    // Predicated region
    $region92: #{tpu_custom_call.1} parent=1 // pred_check
      %p159 = pneg %p155
    $region93: #{tpu_custom_call.1} parent=1 // pred_check_branch
      %161 = sbr.rel (%p159) target = $region95
    $region94: #{tpu_custom_call.1} parent=1 // pred_region
      %s162 = sshll.u32 1, 64
      %s163 = ssub.s32 %s162, 1
      loop: start=0, step=1, limit=1
      $region96: #{tpu_custom_call.1} parent=94 // loop_pre_header
        _
      $region97: #{tpu_custom_call.1} parent=94 // loop_header
        %s165 = sphi 0, %s169
        %p166 = scmp.ge.s32.totalorder %s165, 1
        %s170 = sphi %s13, %s13
        %s171 = sphi [#allocation3], [#allocation3]
      $region98: #{tpu_custom_call.1} parent=94 // loop_header_branch
        %168 = sbr.rel (%p166) target = $region102
      $region99: #{tpu_custom_call.1} parent=94 // loop_body
        %v172 = vld [vmem:[%s170] sm:%s163]
        %173 = vst [vmem:[%s171] sm:%s163] %v172
      $region100: #{tpu_custom_call.1} parent=94 // loop_footer
        %s169 = sadd.s32 1, %s165
      $region101: #{tpu_custom_call.1} parent=94 // loop_footer_branch
        %164 = sbr.rel target = $region97
      $region102: #{tpu_custom_call.1} parent=94 // loop_exit
        _
    $region95: #{tpu_custom_call.1} parent=1 // pred_fallthru
      _
    // Predicated region
    $region118: #{tpu_custom_call.1} parent=1 // pred_check
      _
    $region119: #{tpu_custom_call.1} parent=1 // pred_check_branch
      %209 = sbr.rel (0) target = $region121
    $region120: #{tpu_custom_call.1} parent=1 // pred_region
      %210 = vsyncadd %s153, 1024
    $region121: #{tpu_custom_call.1} parent=1 // pred_fallthru
      _
    %v211 = vld [vmem:[%s0] sm:$0xff]
    %v212 = vld [vmem:[%s0 + $0x8] sm:$0xff]
    %v213 = vld [vmem:[%s0 + $0x10] sm:$0xff]
    %v214 = vld [vmem:[%s0 + $0x18] sm:$0xff]
    %v215 = vld [vmem:[%s0 + $0x20] sm:$0xff]
    %v216 = vld [vmem:[%s0 + $0x28] sm:$0xff]
    %v217 = vld [vmem:[%s0 + $0x30] sm:$0xff]
    %v218 = vld [vmem:[%s0 + $0x38] sm:$0xff]
    %v219 = vld [vmem:[%s0 + $0x40] sm:$0xff]
    %v220 = vld [vmem:[%s0 + $0x48] sm:$0xff]
    %v221 = vld [vmem:[%s0 + $0x50] sm:$0xff]
    %v222 = vld [vmem:[%s0 + $0x58] sm:$0xff]
    %v223 = vld [vmem:[%s0 + $0x60] sm:$0xff]
    %v224 = vld [vmem:[%s0 + $0x68] sm:$0xff]
    %v225 = vld [vmem:[%s0 + $0x70] sm:$0xff]
    %v226 = vld [vmem:[%s0 + $0x78] sm:$0xff]
    %v227 = vld [vmem:[%s0 + $0x80] sm:$0xff]
    %v228 = vld [vmem:[%s0 + $0x88] sm:$0xff]
    %v229 = vld [vmem:[%s0 + $0x90] sm:$0xff]
    %v230 = vld [vmem:[%s0 + $0x98] sm:$0xff]
    %v231 = vld [vmem:[%s0 + $0xa0] sm:$0xff]
    %v232 = vld [vmem:[%s0 + $0xa8] sm:$0xff]
    %v233 = vld [vmem:[%s0 + $0xb0] sm:$0xff]
    %v234 = vld [vmem:[%s0 + $0xb8] sm:$0xff]
    %v235 = vld [vmem:[%s0 + $0xc0] sm:$0xff]
    %v236 = vld [vmem:[%s0 + $0xc8] sm:$0xff]
    %v237 = vld [vmem:[%s0 + $0xd0] sm:$0xff]
    %v238 = vld [vmem:[%s0 + $0xd8] sm:$0xff]
    %v239 = vld [vmem:[%s0 + $0xe0] sm:$0xff]
    %v240 = vld [vmem:[%s0 + $0xe8] sm:$0xff]
    %v241 = vld [vmem:[%s0 + $0xf0] sm:$0xff]
    %v242 = vld [vmem:[%s0 + $0xf8] sm:$0xff]
    %v243 = vld [vmem:[%s1] sm:$0xff]
    %v244 = vld [vmem:[%s1 + $0x8] sm:$0xff]
    %v245 = vld [vmem:[%s1 + $0x10] sm:$0xff]
    %v246 = vld [vmem:[%s1 + $0x18] sm:$0xff]
    %v247 = vld [vmem:[%s1 + $0x20] sm:$0xff]
    %v248 = vld [vmem:[%s1 + $0x28] sm:$0xff]
    %v249 = vld [vmem:[%s1 + $0x30] sm:$0xff]
    %v250 = vld [vmem:[%s1 + $0x38] sm:$0xff]
    %v251 = vld [vmem:[%s1 + $0x40] sm:$0xff]
    %v252 = vld [vmem:[%s1 + $0x48] sm:$0xff]
    %v253 = vld [vmem:[%s1 + $0x50] sm:$0xff]
    %v254 = vld [vmem:[%s1 + $0x58] sm:$0xff]
    %v255 = vld [vmem:[%s1 + $0x60] sm:$0xff]
    %v256 = vld [vmem:[%s1 + $0x68] sm:$0xff]
    %v257 = vld [vmem:[%s1 + $0x70] sm:$0xff]
    %v258 = vld [vmem:[%s1 + $0x78] sm:$0xff]
    %v259 = vld [vmem:[%s1 + $0x80] sm:$0xff]
    %v260 = vld [vmem:[%s1 + $0x88] sm:$0xff]
    %v261 = vld [vmem:[%s1 + $0x90] sm:$0xff]
    %v262 = vld [vmem:[%s1 + $0x98] sm:$0xff]
    %v263 = vld [vmem:[%s1 + $0xa0] sm:$0xff]
    %v264 = vld [vmem:[%s1 + $0xa8] sm:$0xff]
    %v265 = vld [vmem:[%s1 + $0xb0] sm:$0xff]
    %v266 = vld [vmem:[%s1 + $0xb8] sm:$0xff]
    %v267 = vld [vmem:[%s1 + $0xc0] sm:$0xff]
    %v268 = vld [vmem:[%s1 + $0xc8] sm:$0xff]
    %v269 = vld [vmem:[%s1 + $0xd0] sm:$0xff]
    %v270 = vld [vmem:[%s1 + $0xd8] sm:$0xff]
    %v271 = vld [vmem:[%s1 + $0xe0] sm:$0xff]
    %v272 = vld [vmem:[%s1 + $0xe8] sm:$0xff]
    %v273 = vld [vmem:[%s1 + $0xf0] sm:$0xff]
    %v274 = vld [vmem:[%s1 + $0xf8] sm:$0xff]
    %v275 = vld [vmem:[%s2] sm:$0x1]
    %v276 = vld [vmem:[%s3] sm:$0x1]
    %vm277 = vcmask 261120
    %v278 = vsel %vm277, %v211, 0.0
    %v279 = vsel %vm277, %v212, 0.0
    %v280 = vadd.f32 %v278, %v279
    %v281 = vsel %vm277, %v213, 0.0
    %v282 = vadd.f32 %v280, %v281
    %v283 = vsel %vm277, %v214, 0.0
    %v284 = vadd.f32 %v282, %v283
    %v285 = vsel %vm277, %v215, 0.0
    %v286 = vadd.f32 %v284, %v285
    %v287 = vsel %vm277, %v216, 0.0
    %v288 = vadd.f32 %v286, %v287
    %v289 = vsel %vm277, %v217, 0.0
    %v290 = vadd.f32 %v288, %v289
    %v291 = vsel %vm277, %v218, 0.0
    %v292 = vadd.f32 %v290, %v291
    %v293 = vsel %vm277, %v219, 0.0
    %v294 = vadd.f32 %v292, %v293
    %v295 = vsel %vm277, %v220, 0.0
    %v296 = vadd.f32 %v294, %v295
    %v297 = vsel %vm277, %v221, 0.0
    %v298 = vadd.f32 %v296, %v297
    %v299 = vsel %vm277, %v222, 0.0
    %v300 = vadd.f32 %v298, %v299
    %v301 = vsel %vm277, %v223, 0.0
    %v302 = vadd.f32 %v300, %v301
    %v303 = vsel %vm277, %v224, 0.0
    %v304 = vadd.f32 %v302, %v303
    %v305 = vsel %vm277, %v225, 0.0
    %v306 = vadd.f32 %v304, %v305
    %v307 = vsel %vm277, %v226, 0.0
    %v308 = vadd.f32 %v306, %v307
    %v309 = vsel %vm277, %v227, 0.0
    %v310 = vadd.f32 %v308, %v309
    %v311 = vsel %vm277, %v228, 0.0
    %v312 = vadd.f32 %v310, %v311
    %v313 = vsel %vm277, %v229, 0.0
    %v314 = vadd.f32 %v312, %v313
    %v315 = vsel %vm277, %v230, 0.0
    %v316 = vadd.f32 %v314, %v315
    %v317 = vsel %vm277, %v231, 0.0
    %v318 = vadd.f32 %v316, %v317
    %v319 = vsel %vm277, %v232, 0.0
    %v320 = vadd.f32 %v318, %v319
    %v321 = vsel %vm277, %v233, 0.0
    %v322 = vadd.f32 %v320, %v321
    %v323 = vsel %vm277, %v234, 0.0
    %v324 = vadd.f32 %v322, %v323
    %v325 = vsel %vm277, %v235, 0.0
    %v326 = vadd.f32 %v324, %v325
    %v327 = vsel %vm277, %v236, 0.0
    %v328 = vadd.f32 %v326, %v327
    %v329 = vsel %vm277, %v237, 0.0
    %v330 = vadd.f32 %v328, %v329
    %v331 = vsel %vm277, %v238, 0.0
    %v332 = vadd.f32 %v330, %v331
    %v333 = vsel %vm277, %v239, 0.0
    %v334 = vadd.f32 %v332, %v333
    %v335 = vsel %vm277, %v240, 0.0
    %v336 = vadd.f32 %v334, %v335
    %v337 = vsel %vm277, %v241, 0.0
    %v338 = vadd.f32 %v336, %v337
    %v339 = vsel %vm277, %v242, 0.0
    %v340 = vadd.f32 %v338, %v339
    %v341 = vrot.slane %v340, 4
    %v342 = vadd.f32 %v340, %v341
    %v343 = vrot.slane %v342, 2
    %v344 = vadd.f32 %v342, %v343
    %v345 = vrot.slane %v344, 1
    %v346 = vadd.f32 %v344, %v345
    %v347 = vmul.f32 %v211, %v211
    %v348 = vmul.f32 %v212, %v212
    %v349 = vmul.f32 %v213, %v213
    %v350 = vmul.f32 %v214, %v214
    %v351 = vmul.f32 %v215, %v215
    %v352 = vmul.f32 %v216, %v216
    %v353 = vmul.f32 %v217, %v217
    %v354 = vmul.f32 %v218, %v218
    %v355 = vmul.f32 %v219, %v219
    %v356 = vmul.f32 %v220, %v220
    %v357 = vmul.f32 %v221, %v221
    %v358 = vmul.f32 %v222, %v222
    %v359 = vmul.f32 %v223, %v223
    %v360 = vmul.f32 %v224, %v224
    %v361 = vmul.f32 %v225, %v225
    %v362 = vmul.f32 %v226, %v226
    %v363 = vmul.f32 %v227, %v227
    %v364 = vmul.f32 %v228, %v228
    %v365 = vmul.f32 %v229, %v229
    %v366 = vmul.f32 %v230, %v230
    %v367 = vmul.f32 %v231, %v231
    %v368 = vmul.f32 %v232, %v232
    %v369 = vmul.f32 %v233, %v233
    %v370 = vmul.f32 %v234, %v234
    %v371 = vmul.f32 %v235, %v235
    %v372 = vmul.f32 %v236, %v236
    %v373 = vmul.f32 %v237, %v237
    %v374 = vmul.f32 %v238, %v238
    %v375 = vmul.f32 %v239, %v239
    %v376 = vmul.f32 %v240, %v240
    %v377 = vmul.f32 %v241, %v241
    %v378 = vmul.f32 %v242, %v242
    %v379 = vsel %vm277, %v347, 0.0
    %v380 = vsel %vm277, %v348, 0.0
    %v381 = vadd.f32 %v379, %v380
    %v382 = vsel %vm277, %v349, 0.0
    %v383 = vadd.f32 %v381, %v382
    %v384 = vsel %vm277, %v350, 0.0
    %v385 = vadd.f32 %v383, %v384
    %v386 = vsel %vm277, %v351, 0.0
    %v387 = vadd.f32 %v385, %v386
    %v388 = vsel %vm277, %v352, 0.0
    %v389 = vadd.f32 %v387, %v388
    %v390 = vsel %vm277, %v353, 0.0
    %v391 = vadd.f32 %v389, %v390
    %v392 = vsel %vm277, %v354, 0.0
    %v393 = vadd.f32 %v391, %v392
    %v394 = vsel %vm277, %v355, 0.0
    %v395 = vadd.f32 %v393, %v394
    %v396 = vsel %vm277, %v356, 0.0
    %v397 = vadd.f32 %v395, %v396
    %v398 = vsel %vm277, %v357, 0.0
    %v399 = vadd.f32 %v397, %v398
    %v400 = vsel %vm277, %v358, 0.0
    %v401 = vadd.f32 %v399, %v400
    %v402 = vsel %vm277, %v359, 0.0
    %v403 = vadd.f32 %v401, %v402
    %v404 = vsel %vm277, %v360, 0.0
    %v405 = vadd.f32 %v403, %v404
    %v406 = vsel %vm277, %v361, 0.0
    %v407 = vadd.f32 %v405, %v406
    %v408 = vsel %vm277, %v362, 0.0
    %v409 = vadd.f32 %v407, %v408
    %v410 = vsel %vm277, %v363, 0.0
    %v411 = vadd.f32 %v409, %v410
    %v412 = vsel %vm277, %v364, 0.0
    %v413 = vadd.f32 %v411, %v412
    %v414 = vsel %vm277, %v365, 0.0
    %v415 = vadd.f32 %v413, %v414
    %v416 = vsel %vm277, %v366, 0.0
    %v417 = vadd.f32 %v415, %v416
    %v418 = vsel %vm277, %v367, 0.0
    %v419 = vadd.f32 %v417, %v418
    %v420 = vsel %vm277, %v368, 0.0
    %v421 = vadd.f32 %v419, %v420
    %v422 = vsel %vm277, %v369, 0.0
    %v423 = vadd.f32 %v421, %v422
    %v424 = vsel %vm277, %v370, 0.0
    %v425 = vadd.f32 %v423, %v424
    %v426 = vsel %vm277, %v371, 0.0
    %v427 = vadd.f32 %v425, %v426
    %v428 = vsel %vm277, %v372, 0.0
    %v429 = vadd.f32 %v427, %v428
    %v430 = vsel %vm277, %v373, 0.0
    %v431 = vadd.f32 %v429, %v430
    %v432 = vsel %vm277, %v374, 0.0
    %v433 = vadd.f32 %v431, %v432
    %v434 = vsel %vm277, %v375, 0.0
    %v435 = vadd.f32 %v433, %v434
    %v436 = vsel %vm277, %v376, 0.0
    %v437 = vadd.f32 %v435, %v436
    %v438 = vsel %vm277, %v377, 0.0
    %v439 = vadd.f32 %v437, %v438
    %v440 = vsel %vm277, %v378, 0.0
    %v441 = vadd.f32 %v439, %v440
    %v442 = vrot.slane %v441, 4
    %v443 = vadd.f32 %v441, %v442
    %v444 = vrot.slane %v443, 2
    %v445 = vadd.f32 %v443, %v444
    %v446 = vrot.slane %v445, 1
    %v447 = vadd.f32 %v445, %v446
    %v448 = vmul.f32 %v346, 0.00390625
    %v449 = vmul.f32 %v447, 0.00390625
    %v450 = vmul.f32 %v448, %v448
    %v451 = vsub.f32 %v449, %v450
    %v452 = vmax.f32 %v451, 0.0
    %v453 = vadd.f32 %v452, 1e-05
    %v454 = vrsqrt.pop %v453
    %v455 = vmul.f32 %v275, %v454
    %v456 = vmul.f32 %v448, %v455
    %v457 = vsub.f32 %v276, %v456
    %v458 = vld [vmem:[%s4] sm:$0x1]
    %v459 = vld [vmem:[%s5] sm:$0x1]
    %vm460 = vcmask 31744
    %v461 = vsel %vm460, %v243, 0.0
    %v462 = vsel %vm460, %v244, 0.0
    %v463 = vadd.f32 %v461, %v462
    %v464 = vsel %vm460, %v245, 0.0
    %v465 = vadd.f32 %v463, %v464
    %v466 = vsel %vm460, %v246, 0.0
    %v467 = vadd.f32 %v465, %v466
    %v468 = vsel %vm460, %v247, 0.0
    %v469 = vadd.f32 %v467, %v468
    %v470 = vsel %vm460, %v248, 0.0
    %v471 = vadd.f32 %v469, %v470
    %v472 = vsel %vm460, %v249, 0.0
    %v473 = vadd.f32 %v471, %v472
    %v474 = vsel %vm460, %v250, 0.0
    %v475 = vadd.f32 %v473, %v474
    %v476 = vsel %vm460, %v251, 0.0
    %v477 = vadd.f32 %v475, %v476
    %v478 = vsel %vm460, %v252, 0.0
    %v479 = vadd.f32 %v477, %v478
    %v480 = vsel %vm460, %v253, 0.0
    %v481 = vadd.f32 %v479, %v480
    %v482 = vsel %vm460, %v254, 0.0
    %v483 = vadd.f32 %v481, %v482
    %v484 = vsel %vm460, %v255, 0.0
    %v485 = vadd.f32 %v483, %v484
    %v486 = vsel %vm460, %v256, 0.0
    %v487 = vadd.f32 %v485, %v486
    %v488 = vsel %vm460, %v257, 0.0
    %v489 = vadd.f32 %v487, %v488
    %v490 = vsel %vm460, %v258, 0.0
    %v491 = vadd.f32 %v489, %v490
    %v492 = vsel %vm460, %v259, 0.0
    %v493 = vadd.f32 %v491, %v492
    %v494 = vsel %vm460, %v260, 0.0
    %v495 = vadd.f32 %v493, %v494
    %v496 = vsel %vm460, %v261, 0.0
    %v497 = vadd.f32 %v495, %v496
    %v498 = vsel %vm460, %v262, 0.0
    %v499 = vadd.f32 %v497, %v498
    %v500 = vsel %vm460, %v263, 0.0
    %v501 = vadd.f32 %v499, %v500
    %v502 = vsel %vm460, %v264, 0.0
    %v503 = vadd.f32 %v501, %v502
    %v504 = vsel %vm460, %v265, 0.0
    %v505 = vadd.f32 %v503, %v504
    %v506 = vsel %vm460, %v266, 0.0
    %v507 = vadd.f32 %v505, %v506
    %v508 = vsel %vm460, %v267, 0.0
    %v509 = vadd.f32 %v507, %v508
    %v510 = vsel %vm460, %v268, 0.0
    %v511 = vadd.f32 %v509, %v510
    %v512 = vsel %vm460, %v269, 0.0
    %v513 = vadd.f32 %v511, %v512
    %v514 = vsel %vm460, %v270, 0.0
    %v515 = vadd.f32 %v513, %v514
    %v516 = vsel %vm460, %v271, 0.0
    %v517 = vadd.f32 %v515, %v516
    %v518 = vsel %vm460, %v272, 0.0
    %v519 = vadd.f32 %v517, %v518
    %v520 = vsel %vm460, %v273, 0.0
    %v521 = vadd.f32 %v519, %v520
    %v522 = vsel %vm460, %v274, 0.0
    %v523 = vadd.f32 %v521, %v522
    %v524 = vrot.slane %v523, 4
    %v525 = vadd.f32 %v523, %v524
    %v526 = vrot.slane %v525, 2
    %v527 = vadd.f32 %v525, %v526
    %v528 = vrot.slane %v527, 1
    %v529 = vadd.f32 %v527, %v528
    %v530 = vmul.f32 %v243, %v243
    %v531 = vmul.f32 %v244, %v244
    %v532 = vmul.f32 %v245, %v245
    %v533 = vmul.f32 %v246, %v246
    %v534 = vmul.f32 %v247, %v247
    %v535 = vmul.f32 %v248, %v248
    %v536 = vmul.f32 %v249, %v249
    %v537 = vmul.f32 %v250, %v250
    %v538 = vmul.f32 %v251, %v251
    %v539 = vmul.f32 %v252, %v252
    %v540 = vmul.f32 %v253, %v253
    %v541 = vmul.f32 %v254, %v254
    %v542 = vmul.f32 %v255, %v255
    %v543 = vmul.f32 %v256, %v256
    %v544 = vmul.f32 %v257, %v257
    %v545 = vmul.f32 %v258, %v258
    %v546 = vmul.f32 %v259, %v259
    %v547 = vmul.f32 %v260, %v260
    %v548 = vmul.f32 %v261, %v261
    %v549 = vmul.f32 %v262, %v262
    %v550 = vmul.f32 %v263, %v263
    %v551 = vmul.f32 %v264, %v264
    %v552 = vmul.f32 %v265, %v265
    %v553 = vmul.f32 %v266, %v266
    %v554 = vmul.f32 %v267, %v267
    %v555 = vmul.f32 %v268, %v268
    %v556 = vmul.f32 %v269, %v269
    %v557 = vmul.f32 %v270, %v270
    %v558 = vmul.f32 %v271, %v271
    %v559 = vmul.f32 %v272, %v272
    %v560 = vmul.f32 %v273, %v273
    %v561 = vmul.f32 %v274, %v274
    %v562 = vsel %vm460, %v530, 0.0
    %v563 = vsel %vm460, %v531, 0.0
    %v564 = vadd.f32 %v562, %v563
    %v565 = vsel %vm460, %v532, 0.0
    %v566 = vadd.f32 %v564, %v565
    %v567 = vsel %vm460, %v533, 0.0
    %v568 = vadd.f32 %v566, %v567
    %v569 = vsel %vm460, %v534, 0.0
    %v570 = vadd.f32 %v568, %v569
    %v571 = vsel %vm460, %v535, 0.0
    %v572 = vadd.f32 %v570, %v571
    %v573 = vsel %vm460, %v536, 0.0
    %v574 = vadd.f32 %v572, %v573
    %v575 = vsel %vm460, %v537, 0.0
    %v576 = vadd.f32 %v574, %v575
    %v577 = vsel %vm460, %v538, 0.0
    %v578 = vadd.f32 %v576, %v577
    %v579 = vsel %vm460, %v539, 0.0
    %v580 = vadd.f32 %v578, %v579
    %v581 = vsel %vm460, %v540, 0.0
    %v582 = vadd.f32 %v580, %v581
    %v583 = vsel %vm460, %v541, 0.0
    %v584 = vadd.f32 %v582, %v583
    %v585 = vsel %vm460, %v542, 0.0
    %v586 = vadd.f32 %v584, %v585
    %v587 = vsel %vm460, %v543, 0.0
    %v588 = vadd.f32 %v586, %v587
    %v589 = vsel %vm460, %v544, 0.0
    %v590 = vadd.f32 %v588, %v589
    %v591 = vsel %vm460, %v545, 0.0
    %v592 = vadd.f32 %v590, %v591
    %v593 = vsel %vm460, %v546, 0.0
    %v594 = vadd.f32 %v592, %v593
    %v595 = vsel %vm460, %v547, 0.0
    %v596 = vadd.f32 %v594, %v595
    %v597 = vsel %vm460, %v548, 0.0
    %v598 = vadd.f32 %v596, %v597
    %v599 = vsel %vm460, %v549, 0.0
    %v600 = vadd.f32 %v598, %v599
    %v601 = vsel %vm460, %v550, 0.0
    %v602 = vadd.f32 %v600, %v601
    %v603 = vsel %vm460, %v551, 0.0
    %v604 = vadd.f32 %v602, %v603
    %v605 = vsel %vm460, %v552, 0.0
    %v606 = vadd.f32 %v604, %v605
    %v607 = vsel %vm460, %v553, 0.0
    %v608 = vadd.f32 %v606, %v607
    %v609 = vsel %vm460, %v554, 0.0
    %v610 = vadd.f32 %v608, %v609
    %v611 = vsel %vm460, %v555, 0.0
    %v612 = vadd.f32 %v610, %v611
    %v613 = vsel %vm460, %v556, 0.0
    %v614 = vadd.f32 %v612, %v613
    %v615 = vsel %vm460, %v557, 0.0
    %v616 = vadd.f32 %v614, %v615
    %v617 = vsel %vm460, %v558, 0.0
    %v618 = vadd.f32 %v616, %v617
    %v619 = vsel %vm460, %v559, 0.0
    %v620 = vadd.f32 %v618, %v619
    %v621 = vsel %vm460, %v560, 0.0
    %v622 = vadd.f32 %v620, %v621
    %v623 = vsel %vm460, %v561, 0.0
    %v624 = vadd.f32 %v622, %v623
    %v625 = vrot.slane %v624, 4
    %v626 = vadd.f32 %v624, %v625
    %v627 = vrot.slane %v626, 2
    %v628 = vadd.f32 %v626, %v627
    %v629 = vrot.slane %v628, 1
    %v630 = vadd.f32 %v628, %v629
    %v631 = vmul.f32 %v529, 0.00390625
    %v632 = vmul.f32 %v630, 0.00390625
    %v633 = vmul.f32 %v631, %v631
    %v634 = vsub.f32 %v632, %v633
    %v635 = vmax.f32 %v634, 0.0
    %v636 = vadd.f32 %v635, 1e-05
    %v637 = vrsqrt.pop %v636
    %v638 = vmul.f32 %v458, %v637
    %v639 = vmul.f32 %v631, %v638
    %v640 = vsub.f32 %v459, %v639
    %v642 = vlaneseq
    %v643 = vshrl.u32 %v642, 7
    %v644 = vsub.s32 0, %v643
    %v645 = vrot.slane %v455, %v644
    %v647 = vmul.f32 %v211, %v645
    %v648 = vmul.f32 %v212, %v645
    %v649 = vmul.f32 %v213, %v645
    %v650 = vmul.f32 %v214, %v645
    %v651 = vmul.f32 %v215, %v645
    %v652 = vmul.f32 %v216, %v645
    %v653 = vmul.f32 %v217, %v645
    %v654 = vmul.f32 %v218, %v645
    %v655 = vmul.f32 %v219, %v645
    %v656 = vmul.f32 %v220, %v645
    %v657 = vmul.f32 %v221, %v645
    %v658 = vmul.f32 %v222, %v645
    %v659 = vmul.f32 %v223, %v645
    %v660 = vmul.f32 %v224, %v645
    %v661 = vmul.f32 %v225, %v645
    %v662 = vmul.f32 %v226, %v645
    %v663 = vmul.f32 %v227, %v645
    %v664 = vmul.f32 %v228, %v645
    %v665 = vmul.f32 %v229, %v645
    %v666 = vmul.f32 %v230, %v645
    %v667 = vmul.f32 %v231, %v645
    %v668 = vmul.f32 %v232, %v645
    %v669 = vmul.f32 %v233, %v645
    %v670 = vmul.f32 %v234, %v645
    %v671 = vmul.f32 %v235, %v645
    %v672 = vmul.f32 %v236, %v645
    %v673 = vmul.f32 %v237, %v645
    %v674 = vmul.f32 %v238, %v645
    %v675 = vmul.f32 %v239, %v645
    %v676 = vmul.f32 %v240, %v645
    %v677 = vmul.f32 %v241, %v645
    %v678 = vmul.f32 %v242, %v645
    %v680 = vlaneseq
    %v681 = vshrl.u32 %v680, 7
    %v682 = vsub.s32 0, %v681
    %v683 = vrot.slane %v457, %v682
    %v685 = vadd.f32 %v647, %v683
    %v686 = vadd.f32 %v648, %v683
    %v687 = vadd.f32 %v649, %v683
    %v688 = vadd.f32 %v650, %v683
    %v689 = vadd.f32 %v651, %v683
    %v690 = vadd.f32 %v652, %v683
    %v691 = vadd.f32 %v653, %v683
    %v692 = vadd.f32 %v654, %v683
    %v693 = vadd.f32 %v655, %v683
    %v694 = vadd.f32 %v656, %v683
    %v695 = vadd.f32 %v657, %v683
    %v696 = vadd.f32 %v658, %v683
    %v697 = vadd.f32 %v659, %v683
    %v698 = vadd.f32 %v660, %v683
    %v699 = vadd.f32 %v661, %v683
    %v700 = vadd.f32 %v662, %v683
    %v701 = vadd.f32 %v663, %v683
    %v702 = vadd.f32 %v664, %v683
    %v703 = vadd.f32 %v665, %v683
    %v704 = vadd.f32 %v666, %v683
    %v705 = vadd.f32 %v667, %v683
    %v706 = vadd.f32 %v668, %v683
    %v707 = vadd.f32 %v669, %v683
    %v708 = vadd.f32 %v670, %v683
    %v709 = vadd.f32 %v671, %v683
    %v710 = vadd.f32 %v672, %v683
    %v711 = vadd.f32 %v673, %v683
    %v712 = vadd.f32 %v674, %v683
    %v713 = vadd.f32 %v675, %v683
    %v714 = vadd.f32 %v676, %v683
    %v715 = vadd.f32 %v677, %v683
    %v716 = vadd.f32 %v678, %v683
    %v717 = vpack.c.bf16 %v686, %v685
    %v718 = vpack.c.bf16 %v688, %v687
    %v719 = vpack.c.bf16 %v690, %v689
    %v720 = vpack.c.bf16 %v692, %v691
    %v721 = vpack.c.bf16 %v694, %v693
    %v722 = vpack.c.bf16 %v696, %v695
    %v723 = vpack.c.bf16 %v698, %v697
    %v724 = vpack.c.bf16 %v700, %v699
    %v725 = vpack.c.bf16 %v702, %v701
    %v726 = vpack.c.bf16 %v704, %v703
    %v727 = vpack.c.bf16 %v706, %v705
    %v728 = vpack.c.bf16 %v708, %v707
    %v729 = vpack.c.bf16 %v710, %v709
    %v730 = vpack.c.bf16 %v712, %v711
    %v731 = vpack.c.bf16 %v714, %v713
    %v732 = vpack.c.bf16 %v716, %v715
    %v734 = vlaneseq
    %v735 = vshrl.u32 %v734, 7
    %v736 = vsub.s32 0, %v735
    %v737 = vrot.slane %v638, %v736
    %v739 = vmul.f32 %v243, %v737
    %v740 = vmul.f32 %v244, %v737
    %v741 = vmul.f32 %v245, %v737
    %v742 = vmul.f32 %v246, %v737
    %v743 = vmul.f32 %v247, %v737
    %v744 = vmul.f32 %v248, %v737
    %v745 = vmul.f32 %v249, %v737
    %v746 = vmul.f32 %v250, %v737
    %v747 = vmul.f32 %v251, %v737
    %v748 = vmul.f32 %v252, %v737
    %v749 = vmul.f32 %v253, %v737
    %v750 = vmul.f32 %v254, %v737
    %v751 = vmul.f32 %v255, %v737
    %v752 = vmul.f32 %v256, %v737
    %v753 = vmul.f32 %v257, %v737
    %v754 = vmul.f32 %v258, %v737
    %v755 = vmul.f32 %v259, %v737
    %v756 = vmul.f32 %v260, %v737
    %v757 = vmul.f32 %v261, %v737
    %v758 = vmul.f32 %v262, %v737
    %v759 = vmul.f32 %v263, %v737
    %v760 = vmul.f32 %v264, %v737
    %v761 = vmul.f32 %v265, %v737
    %v762 = vmul.f32 %v266, %v737
    %v763 = vmul.f32 %v267, %v737
    %v764 = vmul.f32 %v268, %v737
    %v765 = vmul.f32 %v269, %v737
    %v766 = vmul.f32 %v270, %v737
    %v767 = vmul.f32 %v271, %v737
    %v768 = vmul.f32 %v272, %v737
    %v769 = vmul.f32 %v273, %v737
    %v770 = vmul.f32 %v274, %v737
    %v772 = vlaneseq
    %v773 = vshrl.u32 %v772, 7
    %v774 = vsub.s32 0, %v773
    %v775 = vrot.slane %v640, %v774
    %v777 = vadd.f32 %v739, %v775
    %v778 = vadd.f32 %v740, %v775
    %v779 = vadd.f32 %v741, %v775
    %v780 = vadd.f32 %v742, %v775
    %v781 = vadd.f32 %v743, %v775
    %v782 = vadd.f32 %v744, %v775
    %v783 = vadd.f32 %v745, %v775
    %v784 = vadd.f32 %v746, %v775
    %v785 = vadd.f32 %v747, %v775
    %v786 = vadd.f32 %v748, %v775
    %v787 = vadd.f32 %v749, %v775
    %v788 = vadd.f32 %v750, %v775
    %v789 = vadd.f32 %v751, %v775
    %v790 = vadd.f32 %v752, %v775
    %v791 = vadd.f32 %v753, %v775
    %v792 = vadd.f32 %v754, %v775
    %v793 = vadd.f32 %v755, %v775
    %v794 = vadd.f32 %v756, %v775
    %v795 = vadd.f32 %v757, %v775
    %v796 = vadd.f32 %v758, %v775
    %v797 = vadd.f32 %v759, %v775
    %v798 = vadd.f32 %v760, %v775
    %v799 = vadd.f32 %v761, %v775
    %v800 = vadd.f32 %v762, %v775
    %v801 = vadd.f32 %v763, %v775
    %v802 = vadd.f32 %v764, %v775
    %v803 = vadd.f32 %v765, %v775
    %v804 = vadd.f32 %v766, %v775
    %v805 = vadd.f32 %v767, %v775
    %v806 = vadd.f32 %v768, %v775
    %v807 = vadd.f32 %v769, %v775
    %v808 = vadd.f32 %v770, %v775
    %v809 = vpack.c.bf16 %v778, %v777
    %v810 = vpack.c.bf16 %v780, %v779
    %v811 = vpack.c.bf16 %v782, %v781
    %v812 = vpack.c.bf16 %v784, %v783
    %v813 = vpack.c.bf16 %v786, %v785
    %v814 = vpack.c.bf16 %v788, %v787
    %v815 = vpack.c.bf16 %v790, %v789
    %v816 = vpack.c.bf16 %v792, %v791
    %v817 = vpack.c.bf16 %v794, %v793
    %v818 = vpack.c.bf16 %v796, %v795
    %v819 = vpack.c.bf16 %v798, %v797
    %v820 = vpack.c.bf16 %v800, %v799
    %v821 = vpack.c.bf16 %v802, %v801
    %v822 = vpack.c.bf16 %v804, %v803
    %v823 = vpack.c.bf16 %v806, %v805
    %v824 = vpack.c.bf16 %v808, %v807
    %v825 = vld [vmem:[%s6] sm:$0xff]
    %v826 = vld [vmem:[%s6 + $0x8] sm:$0xff]
    %v827 = vld [vmem:[%s6 + $0x10] sm:$0xff]
    %v828 = vld [vmem:[%s6 + $0x18] sm:$0xff]
    %v829 = vld [vmem:[%s6 + $0x20] sm:$0xff]
    %v830 = vld [vmem:[%s6 + $0x28] sm:$0xff]
    %v831 = vld [vmem:[%s6 + $0x30] sm:$0xff]
    %v832 = vld [vmem:[%s6 + $0x38] sm:$0xff]
    %v833 = vld [vmem:[%s7] sm:$0xff]
    %v835 = vcombine.high %v833, %v833
    %v837 = vunpack.c.l.s4 1983009808
    %v838 = vunpack.c.0.s8 %v837
    %v839 = vlaneseq
    %v840 = vshrl.u32 %v839, 7
    %v841 = vsub.s32 %v838, %v840
    %v842 = vrot.slane %v833, %v841
    %v844 = vunpack.c.l.s4 1983009808
    %v845 = vunpack.c.0.s8 %v844
    %v846 = vlaneseq
    %v847 = vshrl.u32 %v846, 7
    %v848 = vsub.s32 %v845, %v847
    %v849 = vrot.slane %v835, %v848
    %v850 = vcombine.high %v842, %v842
    %v851 = vcombine.high %v849, %v849
    %v853 = vsel %vm460, %v809, 0
    %v856 = vsel %vm460, %v810, 0
    %v859 = vsel %vm460, %v811, 0
    %v862 = vsel %vm460, %v812, 0
    %v865 = vsel %vm460, %v813, 0
    %v868 = vsel %vm460, %v814, 0
    %v871 = vsel %vm460, %v815, 0
    %v874 = vsel %vm460, %v816, 0
    %v877 = vsel %vm460, %v817, 0
    %v880 = vsel %vm460, %v818, 0
    %v883 = vsel %vm460, %v819, 0
    %v886 = vsel %vm460, %v820, 0
    %v889 = vsel %vm460, %v821, 0
    %v892 = vsel %vm460, %v822, 0
    %v895 = vsel %vm460, %v823, 0
    %v898 = vsel %vm460, %v824, 0
    %vm900 = vcmask 1041408
    %v902 = vsel %vm900, %v842, 0
    %v905 = vsel %vm900, %v850, 0
    %v908 = vsel %vm900, %v849, 0
    %v911 = vsel %vm900, %v851, 0
    %913 = vmatprep.subr.bf16.mxu0 0
    %914 = vmatpush1.bf16.msra.mxu0 0
    %915 = vmatprep.subr.bf16.mxu0 0
    %916 = vmatpush1.bf16.msra.mxu0 0
    %917 = vmatprep.subr.bf16.mxu0 0
    %918 = vmatpush1.bf16.msra.mxu0 0
    %919 = vmatprep.subr.bf16.mxu0 0
    %920 = vmatpush1.bf16.msra.mxu0 0
    %921 = vmatprep.subr.bf16.mxu0 0
    %922 = vmatpush1.bf16.msra.mxu0 0
    %923 = vmatprep.subr.bf16.mxu0 0
    %924 = vmatpush1.bf16.msra.mxu0 0
    %925 = vmatprep.subr.bf16.mxu0 0
    %926 = vmatpush1.bf16.msra.mxu0 0
    %927 = vmatprep.subr.bf16.mxu0 %v905
    %928 = vmatpush1.bf16.msra.mxu0 %v902
    %929 = vmatprep.subr.bf16.mxu0 0
    %930 = vmatpush2.bf16.msra.mxu0 0
    %931 = vmatprep.subr.bf16.mxu0 0
    %932 = vmatpush2.bf16.msra.mxu0 0
    %933 = vmatprep.subr.bf16.mxu0 0
    %934 = vmatpush2.bf16.msra.mxu0 0
    %935 = vmatprep.subr.bf16.mxu0 0
    %936 = vmatpush2.bf16.msra.mxu0 0
    %937 = vmatprep.subr.bf16.mxu0 0
    %938 = vmatpush2.bf16.msra.mxu0 0
    %939 = vmatprep.subr.bf16.mxu0 0
    %940 = vmatpush2.bf16.msra.mxu0 0
    %941 = vmatprep.subr.bf16.mxu0 0
    %942 = vmatpush2.bf16.msra.mxu0 0
    %943 = vmatprep.subr.bf16.mxu0 0
    %944 = vmatpush2.bf16.msra.mxu0 0
    %945 = vmatprep.mubr.bf16.mxu0 0
    %946 = vmatmul.mubr.bf16.gmra.mxu0 %v853
    %v947 = vpop.f32.mrf.mxu0
    %v948 = vadd.f32 0.0, %v947
    %v949 = vpop.f32.mrf.mxu0
    %v950 = vadd.f32 0.0, %v949
    %v951 = vpop.f32.mrf.mxu0
    %v952 = vadd.f32 0.0, %v951
    %v953 = vpop.f32.mrf.mxu0
    %v954 = vadd.f32 0.0, %v953
    %955 = vmatprep.mubr.bf16.mxu0 0
    %956 = vmatmul.mubr.bf16.gmra.mxu0 %v856
    %v957 = vpop.f32.mrf.mxu0
    %v958 = vadd.f32 0.0, %v957
    %v959 = vpop.f32.mrf.mxu0
    %v960 = vadd.f32 0.0, %v959
    %v961 = vpop.f32.mrf.mxu0
    %v962 = vadd.f32 0.0, %v961
    %v963 = vpop.f32.mrf.mxu0
    %v964 = vadd.f32 0.0, %v963
    %965 = vmatprep.mubr.bf16.mxu0 0
    %966 = vmatmul.mubr.bf16.gmra.mxu0 %v859
    %v967 = vpop.f32.mrf.mxu0
    %v968 = vadd.f32 0.0, %v967
    %v969 = vpop.f32.mrf.mxu0
    %v970 = vadd.f32 0.0, %v969
    %v971 = vpop.f32.mrf.mxu0
    %v972 = vadd.f32 0.0, %v971
    %v973 = vpop.f32.mrf.mxu0
    %v974 = vadd.f32 0.0, %v973
    %975 = vmatprep.mubr.bf16.mxu0 0
    %976 = vmatmul.mubr.bf16.gmra.mxu0 %v862
    %v977 = vpop.f32.mrf.mxu0
    %v978 = vadd.f32 0.0, %v977
    %v979 = vpop.f32.mrf.mxu0
    %v980 = vadd.f32 0.0, %v979
    %v981 = vpop.f32.mrf.mxu0
    %v982 = vadd.f32 0.0, %v981
    %v983 = vpop.f32.mrf.mxu0
    %v984 = vadd.f32 0.0, %v983
    %985 = vmatprep.mubr.bf16.mxu0 0
    %986 = vmatmul.mubr.bf16.gmra.mxu0 %v865
    %v987 = vpop.f32.mrf.mxu0
    %v988 = vadd.f32 0.0, %v987
    %v989 = vpop.f32.mrf.mxu0
    %v990 = vadd.f32 0.0, %v989
    %v991 = vpop.f32.mrf.mxu0
    %v992 = vadd.f32 0.0, %v991
    %v993 = vpop.f32.mrf.mxu0
    %v994 = vadd.f32 0.0, %v993
    %995 = vmatprep.mubr.bf16.mxu0 0
    %996 = vmatmul.mubr.bf16.gmra.mxu0 %v868
    %v997 = vpop.f32.mrf.mxu0
    %v998 = vadd.f32 0.0, %v997
    %v999 = vpop.f32.mrf.mxu0
    %v1000 = vadd.f32 0.0, %v999
    %v1001 = vpop.f32.mrf.mxu0
    %v1002 = vadd.f32 0.0, %v1001
    %v1003 = vpop.f32.mrf.mxu0
    %v1004 = vadd.f32 0.0, %v1003
    %1005 = vmatprep.mubr.bf16.mxu0 0
    %1006 = vmatmul.mubr.bf16.gmra.mxu0 %v871
    %v1007 = vpop.f32.mrf.mxu0
    %v1008 = vadd.f32 0.0, %v1007
    %v1009 = vpop.f32.mrf.mxu0
    %v1010 = vadd.f32 0.0, %v1009
    %v1011 = vpop.f32.mrf.mxu0
    %v1012 = vadd.f32 0.0, %v1011
    %v1013 = vpop.f32.mrf.mxu0
    %v1014 = vadd.f32 0.0, %v1013
    %1015 = vmatprep.mubr.bf16.mxu0 0
    %1016 = vmatmul.mubr.bf16.gmra.mxu0 %v874
    %v1017 = vpop.f32.mrf.mxu0
    %v1018 = vadd.f32 0.0, %v1017
    %v1019 = vpop.f32.mrf.mxu0
    %v1020 = vadd.f32 0.0, %v1019
    %v1021 = vpop.f32.mrf.mxu0
    %v1022 = vadd.f32 0.0, %v1021
    %v1023 = vpop.f32.mrf.mxu0
    %v1024 = vadd.f32 0.0, %v1023
    %1025 = vmatprep.mubr.bf16.mxu0 0
    %1026 = vmatmul.mubr.bf16.gmra.mxu0 %v877
    %v1027 = vpop.f32.mrf.mxu0
    %v1028 = vadd.f32 0.0, %v1027
    %v1029 = vpop.f32.mrf.mxu0
    %v1030 = vadd.f32 0.0, %v1029
    %v1031 = vpop.f32.mrf.mxu0
    %v1032 = vadd.f32 0.0, %v1031
    %v1033 = vpop.f32.mrf.mxu0
    %v1034 = vadd.f32 0.0, %v1033
    %1035 = vmatprep.mubr.bf16.mxu0 0
    %1036 = vmatmul.mubr.bf16.gmra.mxu0 %v880
    %v1037 = vpop.f32.mrf.mxu0
    %v1038 = vadd.f32 0.0, %v1037
    %v1039 = vpop.f32.mrf.mxu0
    %v1040 = vadd.f32 0.0, %v1039
    %v1041 = vpop.f32.mrf.mxu0
    %v1042 = vadd.f32 0.0, %v1041
    %v1043 = vpop.f32.mrf.mxu0
    %v1044 = vadd.f32 0.0, %v1043
    %1045 = vmatprep.mubr.bf16.mxu0 0
    %1046 = vmatmul.mubr.bf16.gmra.mxu0 %v883
    %v1047 = vpop.f32.mrf.mxu0
    %v1048 = vadd.f32 0.0, %v1047
    %v1049 = vpop.f32.mrf.mxu0
    %v1050 = vadd.f32 0.0, %v1049
    %v1051 = vpop.f32.mrf.mxu0
    %v1052 = vadd.f32 0.0, %v1051
    %v1053 = vpop.f32.mrf.mxu0
    %v1054 = vadd.f32 0.0, %v1053
    %1055 = vmatprep.mubr.bf16.mxu0 0
    %1056 = vmatmul.mubr.bf16.gmra.mxu0 %v886
    %v1057 = vpop.f32.mrf.mxu0
    %v1058 = vadd.f32 0.0, %v1057
    %v1059 = vpop.f32.mrf.mxu0
    %v1060 = vadd.f32 0.0, %v1059
    %v1061 = vpop.f32.mrf.mxu0
    %v1062 = vadd.f32 0.0, %v1061
    %v1063 = vpop.f32.mrf.mxu0
    %v1064 = vadd.f32 0.0, %v1063
    %1065 = vmatprep.mubr.bf16.mxu0 0
    %1066 = vmatmul.mubr.bf16.gmra.mxu0 %v889
    %v1067 = vpop.f32.mrf.mxu0
    %v1068 = vadd.f32 0.0, %v1067
    %v1069 = vpop.f32.mrf.mxu0
    %v1070 = vadd.f32 0.0, %v1069
    %v1071 = vpop.f32.mrf.mxu0
    %v1072 = vadd.f32 0.0, %v1071
    %v1073 = vpop.f32.mrf.mxu0
    %v1074 = vadd.f32 0.0, %v1073
    %1075 = vmatprep.mubr.bf16.mxu0 0
    %1076 = vmatmul.mubr.bf16.gmra.mxu0 %v892
    %v1077 = vpop.f32.mrf.mxu0
    %v1078 = vadd.f32 0.0, %v1077
    %v1079 = vpop.f32.mrf.mxu0
    %v1080 = vadd.f32 0.0, %v1079
    %v1081 = vpop.f32.mrf.mxu0
    %v1082 = vadd.f32 0.0, %v1081
    %v1083 = vpop.f32.mrf.mxu0
    %v1084 = vadd.f32 0.0, %v1083
    %1085 = vmatprep.mubr.bf16.mxu0 0
    %1086 = vmatmul.mubr.bf16.gmra.mxu0 %v895
    %v1087 = vpop.f32.mrf.mxu0
    %v1088 = vadd.f32 0.0, %v1087
    %v1089 = vpop.f32.mrf.mxu0
    %v1090 = vadd.f32 0.0, %v1089
    %v1091 = vpop.f32.mrf.mxu0
    %v1092 = vadd.f32 0.0, %v1091
    %v1093 = vpop.f32.mrf.mxu0
    %v1094 = vadd.f32 0.0, %v1093
    %1095 = vmatprep.mubr.bf16.mxu0 0
    %1096 = vmatmul.mubr.bf16.gmra.mxu0 %v898
    %v1097 = vpop.f32.mrf.mxu0
    %v1098 = vadd.f32 0.0, %v1097
    %v1099 = vpop.f32.mrf.mxu0
    %v1100 = vadd.f32 0.0, %v1099
    %v1101 = vpop.f32.mrf.mxu0
    %v1102 = vadd.f32 0.0, %v1101
    %v1103 = vpop.f32.mrf.mxu0
    %v1104 = vadd.f32 0.0, %v1103
    %1105 = vdwg.mxu0
    %1106 = vmatprep.subr.bf16.mxu0 0
    %1107 = vmatpush1.bf16.msra.mxu0 0
    %1108 = vmatprep.subr.bf16.mxu0 0
    %1109 = vmatpush1.bf16.msra.mxu0 0
    %1110 = vmatprep.subr.bf16.mxu0 0
    %1111 = vmatpush1.bf16.msra.mxu0 0
    %1112 = vmatprep.subr.bf16.mxu0 0
    %1113 = vmatpush1.bf16.msra.mxu0 0
    %1114 = vmatprep.subr.bf16.mxu0 0
    %1115 = vmatpush1.bf16.msra.mxu0 0
    %1116 = vmatprep.subr.bf16.mxu0 0
    %1117 = vmatpush1.bf16.msra.mxu0 0
    %1118 = vmatprep.subr.bf16.mxu0 0
    %1119 = vmatpush1.bf16.msra.mxu0 0
    %1120 = vmatprep.subr.bf16.mxu0 %v911
    %1121 = vmatpush1.bf16.msra.mxu0 %v908
    %1122 = vmatprep.subr.bf16.mxu0 0
    %1123 = vmatpush2.bf16.msra.mxu0 0
    %1124 = vmatprep.subr.bf16.mxu0 0
    %1125 = vmatpush2.bf16.msra.mxu0 0
    %1126 = vmatprep.subr.bf16.mxu0 0
    %1127 = vmatpush2.bf16.msra.mxu0 0
    %1128 = vmatprep.subr.bf16.mxu0 0
    %1129 = vmatpush2.bf16.msra.mxu0 0
    %1130 = vmatprep.subr.bf16.mxu0 0
    %1131 = vmatpush2.bf16.msra.mxu0 0
    %1132 = vmatprep.subr.bf16.mxu0 0
    %1133 = vmatpush2.bf16.msra.mxu0 0
    %1134 = vmatprep.subr.bf16.mxu0 0
    %1135 = vmatpush2.bf16.msra.mxu0 0
    %1136 = vmatprep.subr.bf16.mxu0 0
    %1137 = vmatpush2.bf16.msra.mxu0 0
    %1138 = vmatprep.mubr.bf16.mxu0 0
    %1139 = vmatmul.mubr.bf16.gmra.mxu0 %v853
    %v1140 = vpop.f32.mrf.mxu0
    %v1141 = vadd.f32 0.0, %v1140
    %v1142 = vpop.f32.mrf.mxu0
    %v1143 = vadd.f32 0.0, %v1142
    %v1144 = vpop.f32.mrf.mxu0
    %v1145 = vadd.f32 0.0, %v1144
    %v1146 = vpop.f32.mrf.mxu0
    %v1147 = vadd.f32 0.0, %v1146
    %1148 = vmatprep.mubr.bf16.mxu0 0
    %1149 = vmatmul.mubr.bf16.gmra.mxu0 %v856
    %v1150 = vpop.f32.mrf.mxu0
    %v1151 = vadd.f32 0.0, %v1150
    %v1152 = vpop.f32.mrf.mxu0
    %v1153 = vadd.f32 0.0, %v1152
    %v1154 = vpop.f32.mrf.mxu0
    %v1155 = vadd.f32 0.0, %v1154
    %v1156 = vpop.f32.mrf.mxu0
    %v1157 = vadd.f32 0.0, %v1156
    %1158 = vmatprep.mubr.bf16.mxu0 0
    %1159 = vmatmul.mubr.bf16.gmra.mxu0 %v859
    %v1160 = vpop.f32.mrf.mxu0
    %v1161 = vadd.f32 0.0, %v1160
    %v1162 = vpop.f32.mrf.mxu0
    %v1163 = vadd.f32 0.0, %v1162
    %v1164 = vpop.f32.mrf.mxu0
    %v1165 = vadd.f32 0.0, %v1164
    %v1166 = vpop.f32.mrf.mxu0
    %v1167 = vadd.f32 0.0, %v1166
    %1168 = vmatprep.mubr.bf16.mxu0 0
    %1169 = vmatmul.mubr.bf16.gmra.mxu0 %v862
    %v1170 = vpop.f32.mrf.mxu0
    %v1171 = vadd.f32 0.0, %v1170
    %v1172 = vpop.f32.mrf.mxu0
    %v1173 = vadd.f32 0.0, %v1172
    %v1174 = vpop.f32.mrf.mxu0
    %v1175 = vadd.f32 0.0, %v1174
    %v1176 = vpop.f32.mrf.mxu0
    %v1177 = vadd.f32 0.0, %v1176
    %1178 = vmatprep.mubr.bf16.mxu0 0
    %1179 = vmatmul.mubr.bf16.gmra.mxu0 %v865
    %v1180 = vpop.f32.mrf.mxu0
    %v1181 = vadd.f32 0.0, %v1180
    %v1182 = vpop.f32.mrf.mxu0
    %v1183 = vadd.f32 0.0, %v1182
    %v1184 = vpop.f32.mrf.mxu0
    %v1185 = vadd.f32 0.0, %v1184
    %v1186 = vpop.f32.mrf.mxu0
    %v1187 = vadd.f32 0.0, %v1186
    %1188 = vmatprep.mubr.bf16.mxu0 0
    %1189 = vmatmul.mubr.bf16.gmra.mxu0 %v868
    %v1190 = vpop.f32.mrf.mxu0
    %v1191 = vadd.f32 0.0, %v1190
    %v1192 = vpop.f32.mrf.mxu0
    %v1193 = vadd.f32 0.0, %v1192
    %v1194 = vpop.f32.mrf.mxu0
    %v1195 = vadd.f32 0.0, %v1194
    %v1196 = vpop.f32.mrf.mxu0
    %v1197 = vadd.f32 0.0, %v1196
    %1198 = vmatprep.mubr.bf16.mxu0 0
    %1199 = vmatmul.mubr.bf16.gmra.mxu0 %v871
    %v1200 = vpop.f32.mrf.mxu0
    %v1201 = vadd.f32 0.0, %v1200
    %v1202 = vpop.f32.mrf.mxu0
    %v1203 = vadd.f32 0.0, %v1202
    %v1204 = vpop.f32.mrf.mxu0
    %v1205 = vadd.f32 0.0, %v1204
    %v1206 = vpop.f32.mrf.mxu0
    %v1207 = vadd.f32 0.0, %v1206
    %1208 = vmatprep.mubr.bf16.mxu0 0
    %1209 = vmatmul.mubr.bf16.gmra.mxu0 %v874
    %v1210 = vpop.f32.mrf.mxu0
    %v1211 = vadd.f32 0.0, %v1210
    %v1212 = vpop.f32.mrf.mxu0
    %v1213 = vadd.f32 0.0, %v1212
    %v1214 = vpop.f32.mrf.mxu0
    %v1215 = vadd.f32 0.0, %v1214
    %v1216 = vpop.f32.mrf.mxu0
    %v1217 = vadd.f32 0.0, %v1216
    %1218 = vmatprep.mubr.bf16.mxu0 0
    %1219 = vmatmul.mubr.bf16.gmra.mxu0 %v877
    %v1220 = vpop.f32.mrf.mxu0
    %v1221 = vadd.f32 0.0, %v1220
    %v1222 = vpop.f32.mrf.mxu0
    %v1223 = vadd.f32 0.0, %v1222
    %v1224 = vpop.f32.mrf.mxu0
    %v1225 = vadd.f32 0.0, %v1224
    %v1226 = vpop.f32.mrf.mxu0
    %v1227 = vadd.f32 0.0, %v1226
    %1228 = vmatprep.mubr.bf16.mxu0 0
    %1229 = vmatmul.mubr.bf16.gmra.mxu0 %v880
    %v1230 = vpop.f32.mrf.mxu0
    %v1231 = vadd.f32 0.0, %v1230
    %v1232 = vpop.f32.mrf.mxu0
    %v1233 = vadd.f32 0.0, %v1232
    %v1234 = vpop.f32.mrf.mxu0
    %v1235 = vadd.f32 0.0, %v1234
    %v1236 = vpop.f32.mrf.mxu0
    %v1237 = vadd.f32 0.0, %v1236
    %1238 = vmatprep.mubr.bf16.mxu0 0
    %1239 = vmatmul.mubr.bf16.gmra.mxu0 %v883
    %v1240 = vpop.f32.mrf.mxu0
    %v1241 = vadd.f32 0.0, %v1240
    %v1242 = vpop.f32.mrf.mxu0
    %v1243 = vadd.f32 0.0, %v1242
    %v1244 = vpop.f32.mrf.mxu0
    %v1245 = vadd.f32 0.0, %v1244
    %v1246 = vpop.f32.mrf.mxu0
    %v1247 = vadd.f32 0.0, %v1246
    %1248 = vmatprep.mubr.bf16.mxu0 0
    %1249 = vmatmul.mubr.bf16.gmra.mxu0 %v886
    %v1250 = vpop.f32.mrf.mxu0
    %v1251 = vadd.f32 0.0, %v1250
    %v1252 = vpop.f32.mrf.mxu0
    %v1253 = vadd.f32 0.0, %v1252
    %v1254 = vpop.f32.mrf.mxu0
    %v1255 = vadd.f32 0.0, %v1254
    %v1256 = vpop.f32.mrf.mxu0
    %v1257 = vadd.f32 0.0, %v1256
    %1258 = vmatprep.mubr.bf16.mxu0 0
    %1259 = vmatmul.mubr.bf16.gmra.mxu0 %v889
    %v1260 = vpop.f32.mrf.mxu0
    %v1261 = vadd.f32 0.0, %v1260
    %v1262 = vpop.f32.mrf.mxu0
    %v1263 = vadd.f32 0.0, %v1262
    %v1264 = vpop.f32.mrf.mxu0
    %v1265 = vadd.f32 0.0, %v1264
    %v1266 = vpop.f32.mrf.mxu0
    %v1267 = vadd.f32 0.0, %v1266
    %1268 = vmatprep.mubr.bf16.mxu0 0
    %1269 = vmatmul.mubr.bf16.gmra.mxu0 %v892
    %v1270 = vpop.f32.mrf.mxu0
    %v1271 = vadd.f32 0.0, %v1270
    %v1272 = vpop.f32.mrf.mxu0
    %v1273 = vadd.f32 0.0, %v1272
    %v1274 = vpop.f32.mrf.mxu0
    %v1275 = vadd.f32 0.0, %v1274
    %v1276 = vpop.f32.mrf.mxu0
    %v1277 = vadd.f32 0.0, %v1276
    %1278 = vmatprep.mubr.bf16.mxu0 0
    %1279 = vmatmul.mubr.bf16.gmra.mxu0 %v895
    %v1280 = vpop.f32.mrf.mxu0
    %v1281 = vadd.f32 0.0, %v1280
    %v1282 = vpop.f32.mrf.mxu0
    %v1283 = vadd.f32 0.0, %v1282
    %v1284 = vpop.f32.mrf.mxu0
    %v1285 = vadd.f32 0.0, %v1284
    %v1286 = vpop.f32.mrf.mxu0
    %v1287 = vadd.f32 0.0, %v1286
    %1288 = vmatprep.mubr.bf16.mxu0 0
    %1289 = vmatmul.mubr.bf16.gmra.mxu0 %v898
    %v1290 = vpop.f32.mrf.mxu0
    %v1291 = vadd.f32 0.0, %v1290
    %v1292 = vpop.f32.mrf.mxu0
    %v1293 = vadd.f32 0.0, %v1292
    %v1294 = vpop.f32.mrf.mxu0
    %v1295 = vadd.f32 0.0, %v1294
    %v1296 = vpop.f32.mrf.mxu0
    %v1297 = vadd.f32 0.0, %v1296
    %1298 = vdwg.mxu0
    %v1307 = vunpack.c.l.b16 %v825
    %v1308 = vunpack.c.h.b16 %v825
    %v1309 = vunpack.c.l.b16 %v826
    %v1310 = vunpack.c.h.b16 %v826
    %v1311 = vunpack.c.l.b16 %v827
    %v1312 = vunpack.c.h.b16 %v827
    %v1313 = vunpack.c.l.b16 %v828
    %v1314 = vunpack.c.h.b16 %v828
    %v1315 = vunpack.c.l.b16 %v829
    %v1316 = vunpack.c.h.b16 %v829
    %v1317 = vunpack.c.l.b16 %v830
    %v1318 = vunpack.c.h.b16 %v830
    %v1319 = vunpack.c.l.b16 %v831
    %v1320 = vunpack.c.h.b16 %v831
    %v1321 = vunpack.c.l.b16 %v832
    %v1322 = vunpack.c.h.b16 %v832
    %v1323 = vpack.c.b16 %v1311, %v1307
    %v1324 = vpack.c.b16 %v1312, %v1308
    %v1325 = vpack.c.b16 %v1313, %v1309
    %v1326 = vpack.c.b16 %v1314, %v1310
    %v1327 = vpack.c.b16 %v1319, %v1315
    %v1328 = vpack.c.b16 %v1320, %v1316
    %v1329 = vpack.c.b16 %v1321, %v1317
    %v1330 = vpack.c.b16 %v1322, %v1318
    %v1340 = vsel %vm277, %v717, 0
    %v1343 = vsel %vm277, %v718, 0
    %v1346 = vsel %vm277, %v719, 0
    %v1349 = vsel %vm277, %v720, 0
    %v1352 = vsel %vm277, %v721, 0
    %v1355 = vsel %vm277, %v722, 0
    %v1358 = vsel %vm277, %v723, 0
    %v1361 = vsel %vm277, %v724, 0
    %v1364 = vsel %vm277, %v725, 0
    %v1367 = vsel %vm277, %v726, 0
    %v1370 = vsel %vm277, %v727, 0
    %v1373 = vsel %vm277, %v728, 0
    %v1376 = vsel %vm277, %v729, 0
    %v1379 = vsel %vm277, %v730, 0
    %v1382 = vsel %vm277, %v731, 0
    %v1385 = vsel %vm277, %v732, 0
    %1387 = vmatprep.subr.bf16.mxu0 0
    %1388 = vmatpush1.bf16.msra.mxu0 0
    %1389 = vmatprep.subr.bf16.mxu0 0
    %1390 = vmatpush1.bf16.msra.mxu0 0
    %1391 = vmatprep.subr.bf16.mxu0 0
    %1392 = vmatpush1.bf16.msra.mxu0 0
    %1393 = vmatprep.subr.bf16.mxu0 0
    %1394 = vmatpush1.bf16.msra.mxu0 0
    %1395 = vmatprep.subr.bf16.mxu0 0
    %1396 = vmatpush1.bf16.msra.mxu0 0
    %1397 = vmatprep.subr.bf16.mxu0 0
    %1398 = vmatpush1.bf16.msra.mxu0 0
    %1399 = vmatprep.subr.bf16.mxu0 %v1328
    %1400 = vmatpush1.bf16.msra.mxu0 %v1327
    %1401 = vmatprep.subr.bf16.mxu0 %v1324
    %1402 = vmatpush1.bf16.msra.mxu0 %v1323
    %1403 = vmatprep.subr.bf16.mxu0 0
    %1404 = vmatpush2.bf16.msra.mxu0 0
    %1405 = vmatprep.subr.bf16.mxu0 0
    %1406 = vmatpush2.bf16.msra.mxu0 0
    %1407 = vmatprep.subr.bf16.mxu0 0
    %1408 = vmatpush2.bf16.msra.mxu0 0
    %1409 = vmatprep.subr.bf16.mxu0 0
    %1410 = vmatpush2.bf16.msra.mxu0 0
    %1411 = vmatprep.subr.bf16.mxu0 0
    %1412 = vmatpush2.bf16.msra.mxu0 0
    %1413 = vmatprep.subr.bf16.mxu0 0
    %1414 = vmatpush2.bf16.msra.mxu0 0
    %1415 = vmatprep.subr.bf16.mxu0 0
    %1416 = vmatpush2.bf16.msra.mxu0 0
    %1417 = vmatprep.subr.bf16.mxu0 0
    %1418 = vmatpush2.bf16.msra.mxu0 0
    %1419 = vmatprep.mubr.bf16.mxu0 0
    %1420 = vmatmul.mubr.bf16.gmra.mxu0 %v1340
    %v1421 = vpop.f32.mrf.mxu0
    %v1422 = vadd.f32 %v948, %v1421
    %v1423 = vpop.f32.mrf.mxu0
    %v1424 = vadd.f32 %v950, %v1423
    %v1425 = vpop.f32.mrf.mxu0
    %v1426 = vadd.f32 %v952, %v1425
    %v1427 = vpop.f32.mrf.mxu0
    %v1428 = vadd.f32 %v954, %v1427
    %1429 = vmatprep.mubr.bf16.mxu0 0
    %1430 = vmatmul.mubr.bf16.gmra.mxu0 %v1343
    %v1431 = vpop.f32.mrf.mxu0
    %v1432 = vadd.f32 %v958, %v1431
    %v1433 = vpop.f32.mrf.mxu0
    %v1434 = vadd.f32 %v960, %v1433
    %v1435 = vpop.f32.mrf.mxu0
    %v1436 = vadd.f32 %v962, %v1435
    %v1437 = vpop.f32.mrf.mxu0
    %v1438 = vadd.f32 %v964, %v1437
    %1439 = vmatprep.mubr.bf16.mxu0 0
    %1440 = vmatmul.mubr.bf16.gmra.mxu0 %v1346
    %v1441 = vpop.f32.mrf.mxu0
    %v1442 = vadd.f32 %v968, %v1441
    %v1443 = vpop.f32.mrf.mxu0
    %v1444 = vadd.f32 %v970, %v1443
    %v1445 = vpop.f32.mrf.mxu0
    %v1446 = vadd.f32 %v972, %v1445
    %v1447 = vpop.f32.mrf.mxu0
    %v1448 = vadd.f32 %v974, %v1447
    %1449 = vmatprep.mubr.bf16.mxu0 0
    %1450 = vmatmul.mubr.bf16.gmra.mxu0 %v1349
    %v1451 = vpop.f32.mrf.mxu0
    %v1452 = vadd.f32 %v978, %v1451
    %v1453 = vpop.f32.mrf.mxu0
    %v1454 = vadd.f32 %v980, %v1453
    %v1455 = vpop.f32.mrf.mxu0
    %v1456 = vadd.f32 %v982, %v1455
    %v1457 = vpop.f32.mrf.mxu0
    %v1458 = vadd.f32 %v984, %v1457
    %1459 = vmatprep.mubr.bf16.mxu0 0
    %1460 = vmatmul.mubr.bf16.gmra.mxu0 %v1352
    %v1461 = vpop.f32.mrf.mxu0
    %v1462 = vadd.f32 %v988, %v1461
    %v1463 = vpop.f32.mrf.mxu0
    %v1464 = vadd.f32 %v990, %v1463
    %v1465 = vpop.f32.mrf.mxu0
    %v1466 = vadd.f32 %v992, %v1465
    %v1467 = vpop.f32.mrf.mxu0
    %v1468 = vadd.f32 %v994, %v1467
    %1469 = vmatprep.mubr.bf16.mxu0 0
    %1470 = vmatmul.mubr.bf16.gmra.mxu0 %v1355
    %v1471 = vpop.f32.mrf.mxu0
    %v1472 = vadd.f32 %v998, %v1471
    %v1473 = vpop.f32.mrf.mxu0
    %v1474 = vadd.f32 %v1000, %v1473
    %v1475 = vpop.f32.mrf.mxu0
    %v1476 = vadd.f32 %v1002, %v1475
    %v1477 = vpop.f32.mrf.mxu0
    %v1478 = vadd.f32 %v1004, %v1477
    %1479 = vmatprep.mubr.bf16.mxu0 0
    %1480 = vmatmul.mubr.bf16.gmra.mxu0 %v1358
    %v1481 = vpop.f32.mrf.mxu0
    %v1482 = vadd.f32 %v1008, %v1481
    %v1483 = vpop.f32.mrf.mxu0
    %v1484 = vadd.f32 %v1010, %v1483
    %v1485 = vpop.f32.mrf.mxu0
    %v1486 = vadd.f32 %v1012, %v1485
    %v1487 = vpop.f32.mrf.mxu0
    %v1488 = vadd.f32 %v1014, %v1487
    %1489 = vmatprep.mubr.bf16.mxu0 0
    %1490 = vmatmul.mubr.bf16.gmra.mxu0 %v1361
    %v1491 = vpop.f32.mrf.mxu0
    %v1492 = vadd.f32 %v1018, %v1491
    %v1493 = vpop.f32.mrf.mxu0
    %v1494 = vadd.f32 %v1020, %v1493
    %v1495 = vpop.f32.mrf.mxu0
    %v1496 = vadd.f32 %v1022, %v1495
    %v1497 = vpop.f32.mrf.mxu0
    %v1498 = vadd.f32 %v1024, %v1497
    %1499 = vmatprep.mubr.bf16.mxu0 0
    %1500 = vmatmul.mubr.bf16.gmra.mxu0 %v1364
    %v1501 = vpop.f32.mrf.mxu0
    %v1502 = vadd.f32 %v1028, %v1501
    %v1503 = vpop.f32.mrf.mxu0
    %v1504 = vadd.f32 %v1030, %v1503
    %v1505 = vpop.f32.mrf.mxu0
    %v1506 = vadd.f32 %v1032, %v1505
    %v1507 = vpop.f32.mrf.mxu0
    %v1508 = vadd.f32 %v1034, %v1507
    %1509 = vmatprep.mubr.bf16.mxu0 0
    %1510 = vmatmul.mubr.bf16.gmra.mxu0 %v1367
    %v1511 = vpop.f32.mrf.mxu0
    %v1512 = vadd.f32 %v1038, %v1511
    %v1513 = vpop.f32.mrf.mxu0
    %v1514 = vadd.f32 %v1040, %v1513
    %v1515 = vpop.f32.mrf.mxu0
    %v1516 = vadd.f32 %v1042, %v1515
    %v1517 = vpop.f32.mrf.mxu0
    %v1518 = vadd.f32 %v1044, %v1517
    %1519 = vmatprep.mubr.bf16.mxu0 0
    %1520 = vmatmul.mubr.bf16.gmra.mxu0 %v1370
    %v1521 = vpop.f32.mrf.mxu0
    %v1522 = vadd.f32 %v1048, %v1521
    %v1523 = vpop.f32.mrf.mxu0
    %v1524 = vadd.f32 %v1050, %v1523
    %v1525 = vpop.f32.mrf.mxu0
    %v1526 = vadd.f32 %v1052, %v1525
    %v1527 = vpop.f32.mrf.mxu0
    %v1528 = vadd.f32 %v1054, %v1527
    %1529 = vmatprep.mubr.bf16.mxu0 0
    %1530 = vmatmul.mubr.bf16.gmra.mxu0 %v1373
    %v1531 = vpop.f32.mrf.mxu0
    %v1532 = vadd.f32 %v1058, %v1531
    %v1533 = vpop.f32.mrf.mxu0
    %v1534 = vadd.f32 %v1060, %v1533
    %v1535 = vpop.f32.mrf.mxu0
    %v1536 = vadd.f32 %v1062, %v1535
    %v1537 = vpop.f32.mrf.mxu0
    %v1538 = vadd.f32 %v1064, %v1537
    %1539 = vmatprep.mubr.bf16.mxu0 0
    %1540 = vmatmul.mubr.bf16.gmra.mxu0 %v1376
    %v1541 = vpop.f32.mrf.mxu0
    %v1542 = vadd.f32 %v1068, %v1541
    %v1543 = vpop.f32.mrf.mxu0
    %v1544 = vadd.f32 %v1070, %v1543
    %v1545 = vpop.f32.mrf.mxu0
    %v1546 = vadd.f32 %v1072, %v1545
    %v1547 = vpop.f32.mrf.mxu0
    %v1548 = vadd.f32 %v1074, %v1547
    %1549 = vmatprep.mubr.bf16.mxu0 0
    %1550 = vmatmul.mubr.bf16.gmra.mxu0 %v1379
    %v1551 = vpop.f32.mrf.mxu0
    %v1552 = vadd.f32 %v1078, %v1551
    %v1553 = vpop.f32.mrf.mxu0
    %v1554 = vadd.f32 %v1080, %v1553
    %v1555 = vpop.f32.mrf.mxu0
    %v1556 = vadd.f32 %v1082, %v1555
    %v1557 = vpop.f32.mrf.mxu0
    %v1558 = vadd.f32 %v1084, %v1557
    %1559 = vmatprep.mubr.bf16.mxu0 0
    %1560 = vmatmul.mubr.bf16.gmra.mxu0 %v1382
    %v1561 = vpop.f32.mrf.mxu0
    %v1562 = vadd.f32 %v1088, %v1561
    %v1563 = vpop.f32.mrf.mxu0
    %v1564 = vadd.f32 %v1090, %v1563
    %v1565 = vpop.f32.mrf.mxu0
    %v1566 = vadd.f32 %v1092, %v1565
    %v1567 = vpop.f32.mrf.mxu0
    %v1568 = vadd.f32 %v1094, %v1567
    %1569 = vmatprep.mubr.bf16.mxu0 0
    %1570 = vmatmul.mubr.bf16.gmra.mxu0 %v1385
    %v1571 = vpop.f32.mrf.mxu0
    %v1572 = vadd.f32 %v1098, %v1571
    %v1573 = vpop.f32.mrf.mxu0
    %v1574 = vadd.f32 %v1100, %v1573
    %v1575 = vpop.f32.mrf.mxu0
    %v1576 = vadd.f32 %v1102, %v1575
    %v1577 = vpop.f32.mrf.mxu0
    %v1578 = vadd.f32 %v1104, %v1577
    %1579 = vdwg.mxu0
    %1580 = vmatprep.subr.bf16.mxu0 0
    %1581 = vmatpush1.bf16.msra.mxu0 0
    %1582 = vmatprep.subr.bf16.mxu0 0
    %1583 = vmatpush1.bf16.msra.mxu0 0
    %1584 = vmatprep.subr.bf16.mxu0 0
    %1585 = vmatpush1.bf16.msra.mxu0 0
    %1586 = vmatprep.subr.bf16.mxu0 0
    %1587 = vmatpush1.bf16.msra.mxu0 0
    %1588 = vmatprep.subr.bf16.mxu0 0
    %1589 = vmatpush1.bf16.msra.mxu0 0
    %1590 = vmatprep.subr.bf16.mxu0 0
    %1591 = vmatpush1.bf16.msra.mxu0 0
    %1592 = vmatprep.subr.bf16.mxu0 %v1330
    %1593 = vmatpush1.bf16.msra.mxu0 %v1329
    %1594 = vmatprep.subr.bf16.mxu0 %v1326
    %1595 = vmatpush1.bf16.msra.mxu0 %v1325
    %1596 = vmatprep.subr.bf16.mxu0 0
    %1597 = vmatpush2.bf16.msra.mxu0 0
    %1598 = vmatprep.subr.bf16.mxu0 0
    %1599 = vmatpush2.bf16.msra.mxu0 0
    %1600 = vmatprep.subr.bf16.mxu0 0
    %1601 = vmatpush2.bf16.msra.mxu0 0
    %1602 = vmatprep.subr.bf16.mxu0 0
    %1603 = vmatpush2.bf16.msra.mxu0 0
    %1604 = vmatprep.subr.bf16.mxu0 0
    %1605 = vmatpush2.bf16.msra.mxu0 0
    %1606 = vmatprep.subr.bf16.mxu0 0
    %1607 = vmatpush2.bf16.msra.mxu0 0
    %1608 = vmatprep.subr.bf16.mxu0 0
    %1609 = vmatpush2.bf16.msra.mxu0 0
    %1610 = vmatprep.subr.bf16.mxu0 0
    %1611 = vmatpush2.bf16.msra.mxu0 0
    %1612 = vmatprep.mubr.bf16.mxu0 0
    %1613 = vmatmul.mubr.bf16.gmra.mxu0 %v1340
    %v1614 = vpop.f32.mrf.mxu0
    %v1615 = vadd.f32 %v1141, %v1614
    %v1616 = vpop.f32.mrf.mxu0
    %v1617 = vadd.f32 %v1143, %v1616
    %v1618 = vpop.f32.mrf.mxu0
    %v1619 = vadd.f32 %v1145, %v1618
    %v1620 = vpop.f32.mrf.mxu0
    %v1621 = vadd.f32 %v1147, %v1620
    %1622 = vmatprep.mubr.bf16.mxu0 0
    %1623 = vmatmul.mubr.bf16.gmra.mxu0 %v1343
    %v1624 = vpop.f32.mrf.mxu0
    %v1625 = vadd.f32 %v1151, %v1624
    %v1626 = vpop.f32.mrf.mxu0
    %v1627 = vadd.f32 %v1153, %v1626
    %v1628 = vpop.f32.mrf.mxu0
    %v1629 = vadd.f32 %v1155, %v1628
    %v1630 = vpop.f32.mrf.mxu0
    %v1631 = vadd.f32 %v1157, %v1630
    %1632 = vmatprep.mubr.bf16.mxu0 0
    %1633 = vmatmul.mubr.bf16.gmra.mxu0 %v1346
    %v1634 = vpop.f32.mrf.mxu0
    %v1635 = vadd.f32 %v1161, %v1634
    %v1636 = vpop.f32.mrf.mxu0
    %v1637 = vadd.f32 %v1163, %v1636
    %v1638 = vpop.f32.mrf.mxu0
    %v1639 = vadd.f32 %v1165, %v1638
    %v1640 = vpop.f32.mrf.mxu0
    %v1641 = vadd.f32 %v1167, %v1640
    %1642 = vmatprep.mubr.bf16.mxu0 0
    %1643 = vmatmul.mubr.bf16.gmra.mxu0 %v1349
    %v1644 = vpop.f32.mrf.mxu0
    %v1645 = vadd.f32 %v1171, %v1644
    %v1646 = vpop.f32.mrf.mxu0
    %v1647 = vadd.f32 %v1173, %v1646
    %v1648 = vpop.f32.mrf.mxu0
    %v1649 = vadd.f32 %v1175, %v1648
    %v1650 = vpop.f32.mrf.mxu0
    %v1651 = vadd.f32 %v1177, %v1650
    %1652 = vmatprep.mubr.bf16.mxu0 0
    %1653 = vmatmul.mubr.bf16.gmra.mxu0 %v1352
    %v1654 = vpop.f32.mrf.mxu0
    %v1655 = vadd.f32 %v1181, %v1654
    %v1656 = vpop.f32.mrf.mxu0
    %v1657 = vadd.f32 %v1183, %v1656
    %v1658 = vpop.f32.mrf.mxu0
    %v1659 = vadd.f32 %v1185, %v1658
    %v1660 = vpop.f32.mrf.mxu0
    %v1661 = vadd.f32 %v1187, %v1660
    %1662 = vmatprep.mubr.bf16.mxu0 0
    %1663 = vmatmul.mubr.bf16.gmra.mxu0 %v1355
    %v1664 = vpop.f32.mrf.mxu0
    %v1665 = vadd.f32 %v1191, %v1664
    %v1666 = vpop.f32.mrf.mxu0
    %v1667 = vadd.f32 %v1193, %v1666
    %v1668 = vpop.f32.mrf.mxu0
    %v1669 = vadd.f32 %v1195, %v1668
    %v1670 = vpop.f32.mrf.mxu0
    %v1671 = vadd.f32 %v1197, %v1670
    %1672 = vmatprep.mubr.bf16.mxu0 0
    %1673 = vmatmul.mubr.bf16.gmra.mxu0 %v1358
    %v1674 = vpop.f32.mrf.mxu0
    %v1675 = vadd.f32 %v1201, %v1674
    %v1676 = vpop.f32.mrf.mxu0
    %v1677 = vadd.f32 %v1203, %v1676
    %v1678 = vpop.f32.mrf.mxu0
    %v1679 = vadd.f32 %v1205, %v1678
    %v1680 = vpop.f32.mrf.mxu0
    %v1681 = vadd.f32 %v1207, %v1680
    %1682 = vmatprep.mubr.bf16.mxu0 0
    %1683 = vmatmul.mubr.bf16.gmra.mxu0 %v1361
    %v1684 = vpop.f32.mrf.mxu0
    %v1685 = vadd.f32 %v1211, %v1684
    %v1686 = vpop.f32.mrf.mxu0
    %v1687 = vadd.f32 %v1213, %v1686
    %v1688 = vpop.f32.mrf.mxu0
    %v1689 = vadd.f32 %v1215, %v1688
    %v1690 = vpop.f32.mrf.mxu0
    %v1691 = vadd.f32 %v1217, %v1690
    %1692 = vmatprep.mubr.bf16.mxu0 0
    %1693 = vmatmul.mubr.bf16.gmra.mxu0 %v1364
    %v1694 = vpop.f32.mrf.mxu0
    %v1695 = vadd.f32 %v1221, %v1694
    %v1696 = vpop.f32.mrf.mxu0
    %v1697 = vadd.f32 %v1223, %v1696
    %v1698 = vpop.f32.mrf.mxu0
    %v1699 = vadd.f32 %v1225, %v1698
    %v1700 = vpop.f32.mrf.mxu0
    %v1701 = vadd.f32 %v1227, %v1700
    %1702 = vmatprep.mubr.bf16.mxu0 0
    %1703 = vmatmul.mubr.bf16.gmra.mxu0 %v1367
    %v1704 = vpop.f32.mrf.mxu0
    %v1705 = vadd.f32 %v1231, %v1704
    %v1706 = vpop.f32.mrf.mxu0
    %v1707 = vadd.f32 %v1233, %v1706
    %v1708 = vpop.f32.mrf.mxu0
    %v1709 = vadd.f32 %v1235, %v1708
    %v1710 = vpop.f32.mrf.mxu0
    %v1711 = vadd.f32 %v1237, %v1710
    %1712 = vmatprep.mubr.bf16.mxu0 0
    %1713 = vmatmul.mubr.bf16.gmra.mxu0 %v1370
    %v1714 = vpop.f32.mrf.mxu0
    %v1715 = vadd.f32 %v1241, %v1714
    %v1716 = vpop.f32.mrf.mxu0
    %v1717 = vadd.f32 %v1243, %v1716
    %v1718 = vpop.f32.mrf.mxu0
    %v1719 = vadd.f32 %v1245, %v1718
    %v1720 = vpop.f32.mrf.mxu0
    %v1721 = vadd.f32 %v1247, %v1720
    %1722 = vmatprep.mubr.bf16.mxu0 0
    %1723 = vmatmul.mubr.bf16.gmra.mxu0 %v1373
    %v1724 = vpop.f32.mrf.mxu0
    %v1725 = vadd.f32 %v1251, %v1724
    %v1726 = vpop.f32.mrf.mxu0
    %v1727 = vadd.f32 %v1253, %v1726
    %v1728 = vpop.f32.mrf.mxu0
    %v1729 = vadd.f32 %v1255, %v1728
    %v1730 = vpop.f32.mrf.mxu0
    %v1731 = vadd.f32 %v1257, %v1730
    %1732 = vmatprep.mubr.bf16.mxu0 0
    %1733 = vmatmul.mubr.bf16.gmra.mxu0 %v1376
    %v1734 = vpop.f32.mrf.mxu0
    %v1735 = vadd.f32 %v1261, %v1734
    %v1736 = vpop.f32.mrf.mxu0
    %v1737 = vadd.f32 %v1263, %v1736
    %v1738 = vpop.f32.mrf.mxu0
    %v1739 = vadd.f32 %v1265, %v1738
    %v1740 = vpop.f32.mrf.mxu0
    %v1741 = vadd.f32 %v1267, %v1740
    %1742 = vmatprep.mubr.bf16.mxu0 0
    %1743 = vmatmul.mubr.bf16.gmra.mxu0 %v1379
    %v1744 = vpop.f32.mrf.mxu0
    %v1745 = vadd.f32 %v1271, %v1744
    %v1746 = vpop.f32.mrf.mxu0
    %v1747 = vadd.f32 %v1273, %v1746
    %v1748 = vpop.f32.mrf.mxu0
    %v1749 = vadd.f32 %v1275, %v1748
    %v1750 = vpop.f32.mrf.mxu0
    %v1751 = vadd.f32 %v1277, %v1750
    %1752 = vmatprep.mubr.bf16.mxu0 0
    %1753 = vmatmul.mubr.bf16.gmra.mxu0 %v1382
    %v1754 = vpop.f32.mrf.mxu0
    %v1755 = vadd.f32 %v1281, %v1754
    %v1756 = vpop.f32.mrf.mxu0
    %v1757 = vadd.f32 %v1283, %v1756
    %v1758 = vpop.f32.mrf.mxu0
    %v1759 = vadd.f32 %v1285, %v1758
    %v1760 = vpop.f32.mrf.mxu0
    %v1761 = vadd.f32 %v1287, %v1760
    %1762 = vmatprep.mubr.bf16.mxu0 0
    %1763 = vmatmul.mubr.bf16.gmra.mxu0 %v1385
    %v1764 = vpop.f32.mrf.mxu0
    %v1765 = vadd.f32 %v1291, %v1764
    %v1766 = vpop.f32.mrf.mxu0
    %v1767 = vadd.f32 %v1293, %v1766
    %v1768 = vpop.f32.mrf.mxu0
    %v1769 = vadd.f32 %v1295, %v1768
    %v1770 = vpop.f32.mrf.mxu0
    %v1771 = vadd.f32 %v1297, %v1770
    %1772 = vdwg.mxu0
    %v1773 = vld [vmem:[%s8] sm:$0xf]
    %v1775 = vlaneseq
    %v1776 = vshrl.u32 %v1775, 7
    %v1777 = vsub.s32 0, %v1776
    %v1778 = vrot.slane %v1773, %v1777
    %v1779 = vlaneseq
    %v1780 = vshrl.u32 %v1779, 7
    %v1781 = vsub.s32 1, %v1780
    %v1782 = vrot.slane %v1773, %v1781
    %v1783 = vlaneseq
    %v1784 = vshrl.u32 %v1783, 7
    %v1785 = vsub.s32 2, %v1784
    %v1786 = vrot.slane %v1773, %v1785
    %v1787 = vlaneseq
    %v1788 = vshrl.u32 %v1787, 7
    %v1789 = vsub.s32 3, %v1788
    %v1790 = vrot.slane %v1773, %v1789
    %v1795 = vadd.f32 %v1422, %v1778
    %v1796 = vadd.f32 %v1424, %v1782
    %v1797 = vadd.f32 %v1615, %v1786
    %v1798 = vadd.f32 %v1617, %v1790
    %v1799 = vadd.f32 %v1426, %v1778
    %v1800 = vadd.f32 %v1428, %v1782
    %v1801 = vadd.f32 %v1619, %v1786
    %v1802 = vadd.f32 %v1621, %v1790
    %v1803 = vadd.f32 %v1432, %v1778
    %v1804 = vadd.f32 %v1434, %v1782
    %v1805 = vadd.f32 %v1625, %v1786
    %v1806 = vadd.f32 %v1627, %v1790
    %v1807 = vadd.f32 %v1436, %v1778
    %v1808 = vadd.f32 %v1438, %v1782
    %v1809 = vadd.f32 %v1629, %v1786
    %v1810 = vadd.f32 %v1631, %v1790
    %v1811 = vadd.f32 %v1442, %v1778
    %v1812 = vadd.f32 %v1444, %v1782
    %v1813 = vadd.f32 %v1635, %v1786
    %v1814 = vadd.f32 %v1637, %v1790
    %v1815 = vadd.f32 %v1446, %v1778
    %v1816 = vadd.f32 %v1448, %v1782
    %v1817 = vadd.f32 %v1639, %v1786
    %v1818 = vadd.f32 %v1641, %v1790
    %v1819 = vadd.f32 %v1452, %v1778
    %v1820 = vadd.f32 %v1454, %v1782
    %v1821 = vadd.f32 %v1645, %v1786
    %v1822 = vadd.f32 %v1647, %v1790
    %v1823 = vadd.f32 %v1456, %v1778
    %v1824 = vadd.f32 %v1458, %v1782
    %v1825 = vadd.f32 %v1649, %v1786
    %v1826 = vadd.f32 %v1651, %v1790
    %v1827 = vadd.f32 %v1462, %v1778
    %v1828 = vadd.f32 %v1464, %v1782
    %v1829 = vadd.f32 %v1655, %v1786
    %v1830 = vadd.f32 %v1657, %v1790
    %v1831 = vadd.f32 %v1466, %v1778
    %v1832 = vadd.f32 %v1468, %v1782
    %v1833 = vadd.f32 %v1659, %v1786
    %v1834 = vadd.f32 %v1661, %v1790
    %v1835 = vadd.f32 %v1472, %v1778
    %v1836 = vadd.f32 %v1474, %v1782
    %v1837 = vadd.f32 %v1665, %v1786
    %v1838 = vadd.f32 %v1667, %v1790
    %v1839 = vadd.f32 %v1476, %v1778
    %v1840 = vadd.f32 %v1478, %v1782
    %v1841 = vadd.f32 %v1669, %v1786
    %v1842 = vadd.f32 %v1671, %v1790
    %v1843 = vadd.f32 %v1482, %v1778
    %v1844 = vadd.f32 %v1484, %v1782
    %v1845 = vadd.f32 %v1675, %v1786
    %v1846 = vadd.f32 %v1677, %v1790
    %v1847 = vadd.f32 %v1486, %v1778
    %v1848 = vadd.f32 %v1488, %v1782
    %v1849 = vadd.f32 %v1679, %v1786
    %v1850 = vadd.f32 %v1681, %v1790
    %v1851 = vadd.f32 %v1492, %v1778
    %v1852 = vadd.f32 %v1494, %v1782
    %v1853 = vadd.f32 %v1685, %v1786
    %v1854 = vadd.f32 %v1687, %v1790
    %v1855 = vadd.f32 %v1496, %v1778
    %v1856 = vadd.f32 %v1498, %v1782
    %v1857 = vadd.f32 %v1689, %v1786
    %v1858 = vadd.f32 %v1691, %v1790
    %v1859 = vadd.f32 %v1502, %v1778
    %v1860 = vadd.f32 %v1504, %v1782
    %v1861 = vadd.f32 %v1695, %v1786
    %v1862 = vadd.f32 %v1697, %v1790
    %v1863 = vadd.f32 %v1506, %v1778
    %v1864 = vadd.f32 %v1508, %v1782
    %v1865 = vadd.f32 %v1699, %v1786
    %v1866 = vadd.f32 %v1701, %v1790
    %v1867 = vadd.f32 %v1512, %v1778
    %v1868 = vadd.f32 %v1514, %v1782
    %v1869 = vadd.f32 %v1705, %v1786
    %v1870 = vadd.f32 %v1707, %v1790
    %v1871 = vadd.f32 %v1516, %v1778
    %v1872 = vadd.f32 %v1518, %v1782
    %v1873 = vadd.f32 %v1709, %v1786
    %v1874 = vadd.f32 %v1711, %v1790
    %v1875 = vadd.f32 %v1522, %v1778
    %v1876 = vadd.f32 %v1524, %v1782
    %v1877 = vadd.f32 %v1715, %v1786
    %v1878 = vadd.f32 %v1717, %v1790
    %v1879 = vadd.f32 %v1526, %v1778
    %v1880 = vadd.f32 %v1528, %v1782
    %v1881 = vadd.f32 %v1719, %v1786
    %v1882 = vadd.f32 %v1721, %v1790
    %v1883 = vadd.f32 %v1532, %v1778
    %v1884 = vadd.f32 %v1534, %v1782
    %v1885 = vadd.f32 %v1725, %v1786
    %v1886 = vadd.f32 %v1727, %v1790
    %v1887 = vadd.f32 %v1536, %v1778
    %v1888 = vadd.f32 %v1538, %v1782
    %v1889 = vadd.f32 %v1729, %v1786
    %v1890 = vadd.f32 %v1731, %v1790
    %v1891 = vadd.f32 %v1542, %v1778
    %v1892 = vadd.f32 %v1544, %v1782
    %v1893 = vadd.f32 %v1735, %v1786
    %v1894 = vadd.f32 %v1737, %v1790
    %v1895 = vadd.f32 %v1546, %v1778
    %v1896 = vadd.f32 %v1548, %v1782
    %v1897 = vadd.f32 %v1739, %v1786
    %v1898 = vadd.f32 %v1741, %v1790
    %v1899 = vadd.f32 %v1552, %v1778
    %v1900 = vadd.f32 %v1554, %v1782
    %v1901 = vadd.f32 %v1745, %v1786
    %v1902 = vadd.f32 %v1747, %v1790
    %v1903 = vadd.f32 %v1556, %v1778
    %v1904 = vadd.f32 %v1558, %v1782
    %v1905 = vadd.f32 %v1749, %v1786
    %v1906 = vadd.f32 %v1751, %v1790
    %v1907 = vadd.f32 %v1562, %v1778
    %v1908 = vadd.f32 %v1564, %v1782
    %v1909 = vadd.f32 %v1755, %v1786
    %v1910 = vadd.f32 %v1757, %v1790
    %v1911 = vadd.f32 %v1566, %v1778
    %v1912 = vadd.f32 %v1568, %v1782
    %v1913 = vadd.f32 %v1759, %v1786
    %v1914 = vadd.f32 %v1761, %v1790
    %v1915 = vadd.f32 %v1572, %v1778
    %v1916 = vadd.f32 %v1574, %v1782
    %v1917 = vadd.f32 %v1765, %v1786
    %v1918 = vadd.f32 %v1767, %v1790
    %v1919 = vadd.f32 %v1576, %v1778
    %v1920 = vadd.f32 %v1578, %v1782
    %v1921 = vadd.f32 %v1769, %v1786
    %v1922 = vadd.f32 %v1771, %v1790
    %v1923 = vmax.f32 %v1795, 0.0
    %v1924 = vmax.f32 %v1796, 0.0
    %v1925 = vmax.f32 %v1797, 0.0
    %v1926 = vmax.f32 %v1798, 0.0
    %v1927 = vmax.f32 %v1799, 0.0
    %v1928 = vmax.f32 %v1800, 0.0
    %v1929 = vmax.f32 %v1801, 0.0
    %v1930 = vmax.f32 %v1802, 0.0
    %v1931 = vmax.f32 %v1803, 0.0
    %v1932 = vmax.f32 %v1804, 0.0
    %v1933 = vmax.f32 %v1805, 0.0
    %v1934 = vmax.f32 %v1806, 0.0
    %v1935 = vmax.f32 %v1807, 0.0
    %v1936 = vmax.f32 %v1808, 0.0
    %v1937 = vmax.f32 %v1809, 0.0
    %v1938 = vmax.f32 %v1810, 0.0
    %v1939 = vmax.f32 %v1811, 0.0
    %v1940 = vmax.f32 %v1812, 0.0
    %v1941 = vmax.f32 %v1813, 0.0
    %v1942 = vmax.f32 %v1814, 0.0
    %v1943 = vmax.f32 %v1815, 0.0
    %v1944 = vmax.f32 %v1816, 0.0
    %v1945 = vmax.f32 %v1817, 0.0
    %v1946 = vmax.f32 %v1818, 0.0
    %v1947 = vmax.f32 %v1819, 0.0
    %v1948 = vmax.f32 %v1820, 0.0
    %v1949 = vmax.f32 %v1821, 0.0
    %v1950 = vmax.f32 %v1822, 0.0
    %v1951 = vmax.f32 %v1823, 0.0
    %v1952 = vmax.f32 %v1824, 0.0
    %v1953 = vmax.f32 %v1825, 0.0
    %v1954 = vmax.f32 %v1826, 0.0
    %v1955 = vmax.f32 %v1827, 0.0
    %v1956 = vmax.f32 %v1828, 0.0
    %v1957 = vmax.f32 %v1829, 0.0
    %v1958 = vmax.f32 %v1830, 0.0
    %v1959 = vmax.f32 %v1831, 0.0
    %v1960 = vmax.f32 %v1832, 0.0
    %v1961 = vmax.f32 %v1833, 0.0
    %v1962 = vmax.f32 %v1834, 0.0
    %v1963 = vmax.f32 %v1835, 0.0
    %v1964 = vmax.f32 %v1836, 0.0
    %v1965 = vmax.f32 %v1837, 0.0
    %v1966 = vmax.f32 %v1838, 0.0
    %v1967 = vmax.f32 %v1839, 0.0
    %v1968 = vmax.f32 %v1840, 0.0
    %v1969 = vmax.f32 %v1841, 0.0
    %v1970 = vmax.f32 %v1842, 0.0
    %v1971 = vmax.f32 %v1843, 0.0
    %v1972 = vmax.f32 %v1844, 0.0
    %v1973 = vmax.f32 %v1845, 0.0
    %v1974 = vmax.f32 %v1846, 0.0
    %v1975 = vmax.f32 %v1847, 0.0
    %v1976 = vmax.f32 %v1848, 0.0
    %v1977 = vmax.f32 %v1849, 0.0
    %v1978 = vmax.f32 %v1850, 0.0
    %v1979 = vmax.f32 %v1851, 0.0
    %v1980 = vmax.f32 %v1852, 0.0
    %v1981 = vmax.f32 %v1853, 0.0
    %v1982 = vmax.f32 %v1854, 0.0
    %v1983 = vmax.f32 %v1855, 0.0
    %v1984 = vmax.f32 %v1856, 0.0
    %v1985 = vmax.f32 %v1857, 0.0
    %v1986 = vmax.f32 %v1858, 0.0
    %v1987 = vmax.f32 %v1859, 0.0
    %v1988 = vmax.f32 %v1860, 0.0
    %v1989 = vmax.f32 %v1861, 0.0
    %v1990 = vmax.f32 %v1862, 0.0
    %v1991 = vmax.f32 %v1863, 0.0
    %v1992 = vmax.f32 %v1864, 0.0
    %v1993 = vmax.f32 %v1865, 0.0
    %v1994 = vmax.f32 %v1866, 0.0
    %v1995 = vmax.f32 %v1867, 0.0
    %v1996 = vmax.f32 %v1868, 0.0
    %v1997 = vmax.f32 %v1869, 0.0
    %v1998 = vmax.f32 %v1870, 0.0
    %v1999 = vmax.f32 %v1871, 0.0
    %v2000 = vmax.f32 %v1872, 0.0
    %v2001 = vmax.f32 %v1873, 0.0
    %v2002 = vmax.f32 %v1874, 0.0
    %v2003 = vmax.f32 %v1875, 0.0
    %v2004 = vmax.f32 %v1876, 0.0
    %v2005 = vmax.f32 %v1877, 0.0
    %v2006 = vmax.f32 %v1878, 0.0
    %v2007 = vmax.f32 %v1879, 0.0
    %v2008 = vmax.f32 %v1880, 0.0
    %v2009 = vmax.f32 %v1881, 0.0
    %v2010 = vmax.f32 %v1882, 0.0
    %v2011 = vmax.f32 %v1883, 0.0
    %v2012 = vmax.f32 %v1884, 0.0
    %v2013 = vmax.f32 %v1885, 0.0
    %v2014 = vmax.f32 %v1886, 0.0
    %v2015 = vmax.f32 %v1887, 0.0
    %v2016 = vmax.f32 %v1888, 0.0
    %v2017 = vmax.f32 %v1889, 0.0
    %v2018 = vmax.f32 %v1890, 0.0
    %v2019 = vmax.f32 %v1891, 0.0
    %v2020 = vmax.f32 %v1892, 0.0
    %v2021 = vmax.f32 %v1893, 0.0
    %v2022 = vmax.f32 %v1894, 0.0
    %v2023 = vmax.f32 %v1895, 0.0
    %v2024 = vmax.f32 %v1896, 0.0
    %v2025 = vmax.f32 %v1897, 0.0
    %v2026 = vmax.f32 %v1898, 0.0
    %v2027 = vmax.f32 %v1899, 0.0
    %v2028 = vmax.f32 %v1900, 0.0
    %v2029 = vmax.f32 %v1901, 0.0
    %v2030 = vmax.f32 %v1902, 0.0
    %v2031 = vmax.f32 %v1903, 0.0
    %v2032 = vmax.f32 %v1904, 0.0
    %v2033 = vmax.f32 %v1905, 0.0
    %v2034 = vmax.f32 %v1906, 0.0
    %v2035 = vmax.f32 %v1907, 0.0
    %v2036 = vmax.f32 %v1908, 0.0
    %v2037 = vmax.f32 %v1909, 0.0
    %v2038 = vmax.f32 %v1910, 0.0
    %v2039 = vmax.f32 %v1911, 0.0
    %v2040 = vmax.f32 %v1912, 0.0
    %v2041 = vmax.f32 %v1913, 0.0
    %v2042 = vmax.f32 %v1914, 0.0
    %v2043 = vmax.f32 %v1915, 0.0
    %v2044 = vmax.f32 %v1916, 0.0
    %v2045 = vmax.f32 %v1917, 0.0
    %v2046 = vmax.f32 %v1918, 0.0
    %v2047 = vmax.f32 %v1919, 0.0
    %v2048 = vmax.f32 %v1920, 0.0
    %v2049 = vmax.f32 %v1921, 0.0
    %v2050 = vmax.f32 %v1922, 0.0
    %v2051 = vld [vmem:[%s9] sm:$0xf]
    %v2052 = vld [vmem:[%s10] sm:$0xf]
    %v2053 = vadd.f32 %v1923, %v1927
    %v2054 = vadd.f32 %v2053, %v1931
    %v2055 = vadd.f32 %v2054, %v1935
    %v2056 = vadd.f32 %v2055, %v1939
    %v2057 = vadd.f32 %v2056, %v1943
    %v2058 = vadd.f32 %v2057, %v1947
    %v2059 = vadd.f32 %v2058, %v1951
    %v2060 = vadd.f32 %v2059, %v1955
    %v2061 = vadd.f32 %v2060, %v1959
    %v2062 = vadd.f32 %v2061, %v1963
    %v2063 = vadd.f32 %v2062, %v1967
    %v2064 = vadd.f32 %v2063, %v1971
    %v2065 = vadd.f32 %v2064, %v1975
    %v2066 = vadd.f32 %v2065, %v1979
    %v2067 = vadd.f32 %v2066, %v1983
    %v2068 = vadd.f32 %v2067, %v1987
    %v2069 = vadd.f32 %v2068, %v1991
    %v2070 = vadd.f32 %v2069, %v1995
    %v2071 = vadd.f32 %v2070, %v1999
    %v2072 = vadd.f32 %v2071, %v2003
    %v2073 = vadd.f32 %v2072, %v2007
    %v2074 = vadd.f32 %v2073, %v2011
    %v2075 = vadd.f32 %v2074, %v2015
    %v2076 = vadd.f32 %v2075, %v2019
    %v2077 = vadd.f32 %v2076, %v2023
    %v2078 = vadd.f32 %v2077, %v2027
    %v2079 = vadd.f32 %v2078, %v2031
    %v2080 = vadd.f32 %v2079, %v2035
    %v2081 = vadd.f32 %v2080, %v2039
    %v2082 = vadd.f32 %v2081, %v2043
    %v2083 = vadd.f32 %v2082, %v2047
    %v2084 = vrot.slane %v2083, 4
    %v2085 = vadd.f32 %v2083, %v2084
    %v2086 = vrot.slane %v2085, 2
    %v2087 = vadd.f32 %v2085, %v2086
    %v2088 = vrot.slane %v2087, 1
    %v2089 = vadd.f32 %v2087, %v2088
    %v2090 = vadd.f32 %v1924, %v1928
    %v2091 = vadd.f32 %v2090, %v1932
    %v2092 = vadd.f32 %v2091, %v1936
    %v2093 = vadd.f32 %v2092, %v1940
    %v2094 = vadd.f32 %v2093, %v1944
    %v2095 = vadd.f32 %v2094, %v1948
    %v2096 = vadd.f32 %v2095, %v1952
    %v2097 = vadd.f32 %v2096, %v1956
    %v2098 = vadd.f32 %v2097, %v1960
    %v2099 = vadd.f32 %v2098, %v1964
    %v2100 = vadd.f32 %v2099, %v1968
    %v2101 = vadd.f32 %v2100, %v1972
    %v2102 = vadd.f32 %v2101, %v1976
    %v2103 = vadd.f32 %v2102, %v1980
    %v2104 = vadd.f32 %v2103, %v1984
    %v2105 = vadd.f32 %v2104, %v1988
    %v2106 = vadd.f32 %v2105, %v1992
    %v2107 = vadd.f32 %v2106, %v1996
    %v2108 = vadd.f32 %v2107, %v2000
    %v2109 = vadd.f32 %v2108, %v2004
    %v2110 = vadd.f32 %v2109, %v2008
    %v2111 = vadd.f32 %v2110, %v2012
    %v2112 = vadd.f32 %v2111, %v2016
    %v2113 = vadd.f32 %v2112, %v2020
    %v2114 = vadd.f32 %v2113, %v2024
    %v2115 = vadd.f32 %v2114, %v2028
    %v2116 = vadd.f32 %v2115, %v2032
    %v2117 = vadd.f32 %v2116, %v2036
    %v2118 = vadd.f32 %v2117, %v2040
    %v2119 = vadd.f32 %v2118, %v2044
    %v2120 = vadd.f32 %v2119, %v2048
    %v2121 = vrot.slane %v2120, 4
    %v2122 = vadd.f32 %v2120, %v2121
    %v2123 = vrot.slane %v2122, 2
    %v2124 = vadd.f32 %v2122, %v2123
    %v2125 = vrot.slane %v2124, 1
    %v2126 = vadd.f32 %v2124, %v2125
    %v2127 = vadd.f32 %v1925, %v1929
    %v2128 = vadd.f32 %v2127, %v1933
    %v2129 = vadd.f32 %v2128, %v1937
    %v2130 = vadd.f32 %v2129, %v1941
    %v2131 = vadd.f32 %v2130, %v1945
    %v2132 = vadd.f32 %v2131, %v1949
    %v2133 = vadd.f32 %v2132, %v1953
    %v2134 = vadd.f32 %v2133, %v1957
    %v2135 = vadd.f32 %v2134, %v1961
    %v2136 = vadd.f32 %v2135, %v1965
    %v2137 = vadd.f32 %v2136, %v1969
    %v2138 = vadd.f32 %v2137, %v1973
    %v2139 = vadd.f32 %v2138, %v1977
    %v2140 = vadd.f32 %v2139, %v1981
    %v2141 = vadd.f32 %v2140, %v1985
    %v2142 = vadd.f32 %v2141, %v1989
    %v2143 = vadd.f32 %v2142, %v1993
    %v2144 = vadd.f32 %v2143, %v1997
    %v2145 = vadd.f32 %v2144, %v2001
    %v2146 = vadd.f32 %v2145, %v2005
    %v2147 = vadd.f32 %v2146, %v2009
    %v2148 = vadd.f32 %v2147, %v2013
    %v2149 = vadd.f32 %v2148, %v2017
    %v2150 = vadd.f32 %v2149, %v2021
    %v2151 = vadd.f32 %v2150, %v2025
    %v2152 = vadd.f32 %v2151, %v2029
    %v2153 = vadd.f32 %v2152, %v2033
    %v2154 = vadd.f32 %v2153, %v2037
    %v2155 = vadd.f32 %v2154, %v2041
    %v2156 = vadd.f32 %v2155, %v2045
    %v2157 = vadd.f32 %v2156, %v2049
    %v2158 = vrot.slane %v2157, 4
    %v2159 = vadd.f32 %v2157, %v2158
    %v2160 = vrot.slane %v2159, 2
    %v2161 = vadd.f32 %v2159, %v2160
    %v2162 = vrot.slane %v2161, 1
    %v2163 = vadd.f32 %v2161, %v2162
    %v2164 = vadd.f32 %v1926, %v1930
    %v2165 = vadd.f32 %v2164, %v1934
    %v2166 = vadd.f32 %v2165, %v1938
    %v2167 = vadd.f32 %v2166, %v1942
    %v2168 = vadd.f32 %v2167, %v1946
    %v2169 = vadd.f32 %v2168, %v1950
    %v2170 = vadd.f32 %v2169, %v1954
    %v2171 = vadd.f32 %v2170, %v1958
    %v2172 = vadd.f32 %v2171, %v1962
    %v2173 = vadd.f32 %v2172, %v1966
    %v2174 = vadd.f32 %v2173, %v1970
    %v2175 = vadd.f32 %v2174, %v1974
    %v2176 = vadd.f32 %v2175, %v1978
    %v2177 = vadd.f32 %v2176, %v1982
    %v2178 = vadd.f32 %v2177, %v1986
    %v2179 = vadd.f32 %v2178, %v1990
    %v2180 = vadd.f32 %v2179, %v1994
    %v2181 = vadd.f32 %v2180, %v1998
    %v2182 = vadd.f32 %v2181, %v2002
    %v2183 = vadd.f32 %v2182, %v2006
    %v2184 = vadd.f32 %v2183, %v2010
    %v2185 = vadd.f32 %v2184, %v2014
    %v2186 = vadd.f32 %v2185, %v2018
    %v2187 = vadd.f32 %v2186, %v2022
    %v2188 = vadd.f32 %v2187, %v2026
    %v2189 = vadd.f32 %v2188, %v2030
    %v2190 = vadd.f32 %v2189, %v2034
    %v2191 = vadd.f32 %v2190, %v2038
    %v2192 = vadd.f32 %v2191, %v2042
    %v2193 = vadd.f32 %v2192, %v2046
    %v2194 = vadd.f32 %v2193, %v2050
    %v2195 = vrot.slane %v2194, 4
    %v2196 = vadd.f32 %v2194, %v2195
    %v2197 = vrot.slane %v2196, 2
    %v2198 = vadd.f32 %v2196, %v2197
    %v2199 = vrot.slane %v2198, 1
    %v2200 = vadd.f32 %v2198, %v2199
    %v2201 = vmul.f32 %v1923, %v1923
    %v2202 = vmul.f32 %v1924, %v1924
    %v2203 = vmul.f32 %v1925, %v1925
    %v2204 = vmul.f32 %v1926, %v1926
    %v2205 = vmul.f32 %v1927, %v1927
    %v2206 = vmul.f32 %v1928, %v1928
    %v2207 = vmul.f32 %v1929, %v1929
    %v2208 = vmul.f32 %v1930, %v1930
    %v2209 = vmul.f32 %v1931, %v1931
    %v2210 = vmul.f32 %v1932, %v1932
    %v2211 = vmul.f32 %v1933, %v1933
    %v2212 = vmul.f32 %v1934, %v1934
    %v2213 = vmul.f32 %v1935, %v1935
    %v2214 = vmul.f32 %v1936, %v1936
    %v2215 = vmul.f32 %v1937, %v1937
    %v2216 = vmul.f32 %v1938, %v1938
    %v2217 = vmul.f32 %v1939, %v1939
    %v2218 = vmul.f32 %v1940, %v1940
    %v2219 = vmul.f32 %v1941, %v1941
    %v2220 = vmul.f32 %v1942, %v1942
    %v2221 = vmul.f32 %v1943, %v1943
    %v2222 = vmul.f32 %v1944, %v1944
    %v2223 = vmul.f32 %v1945, %v1945
    %v2224 = vmul.f32 %v1946, %v1946
    %v2225 = vmul.f32 %v1947, %v1947
    %v2226 = vmul.f32 %v1948, %v1948
    %v2227 = vmul.f32 %v1949, %v1949
    %v2228 = vmul.f32 %v1950, %v1950
    %v2229 = vmul.f32 %v1951, %v1951
    %v2230 = vmul.f32 %v1952, %v1952
    %v2231 = vmul.f32 %v1953, %v1953
    %v2232 = vmul.f32 %v1954, %v1954
    %v2233 = vmul.f32 %v1955, %v1955
    %v2234 = vmul.f32 %v1956, %v1956
    %v2235 = vmul.f32 %v1957, %v1957
    %v2236 = vmul.f32 %v1958, %v1958
    %v2237 = vmul.f32 %v1959, %v1959
    %v2238 = vmul.f32 %v1960, %v1960
    %v2239 = vmul.f32 %v1961, %v1961
    %v2240 = vmul.f32 %v1962, %v1962
    %v2241 = vmul.f32 %v1963, %v1963
    %v2242 = vmul.f32 %v1964, %v1964
    %v2243 = vmul.f32 %v1965, %v1965
    %v2244 = vmul.f32 %v1966, %v1966
    %v2245 = vmul.f32 %v1967, %v1967
    %v2246 = vmul.f32 %v1968, %v1968
    %v2247 = vmul.f32 %v1969, %v1969
    %v2248 = vmul.f32 %v1970, %v1970
    %v2249 = vmul.f32 %v1971, %v1971
    %v2250 = vmul.f32 %v1972, %v1972
    %v2251 = vmul.f32 %v1973, %v1973
    %v2252 = vmul.f32 %v1974, %v1974
    %v2253 = vmul.f32 %v1975, %v1975
    %v2254 = vmul.f32 %v1976, %v1976
    %v2255 = vmul.f32 %v1977, %v1977
    %v2256 = vmul.f32 %v1978, %v1978
    %v2257 = vmul.f32 %v1979, %v1979
    %v2258 = vmul.f32 %v1980, %v1980
    %v2259 = vmul.f32 %v1981, %v1981
    %v2260 = vmul.f32 %v1982, %v1982
    %v2261 = vmul.f32 %v1983, %v1983
    %v2262 = vmul.f32 %v1984, %v1984
    %v2263 = vmul.f32 %v1985, %v1985
    %v2264 = vmul.f32 %v1986, %v1986
    %v2265 = vmul.f32 %v1987, %v1987
    %v2266 = vmul.f32 %v1988, %v1988
    %v2267 = vmul.f32 %v1989, %v1989
    %v2268 = vmul.f32 %v1990, %v1990
    %v2269 = vmul.f32 %v1991, %v1991
    %v2270 = vmul.f32 %v1992, %v1992
    %v2271 = vmul.f32 %v1993, %v1993
    %v2272 = vmul.f32 %v1994, %v1994
    %v2273 = vmul.f32 %v1995, %v1995
    %v2274 = vmul.f32 %v1996, %v1996
    %v2275 = vmul.f32 %v1997, %v1997
    %v2276 = vmul.f32 %v1998, %v1998
    %v2277 = vmul.f32 %v1999, %v1999
    %v2278 = vmul.f32 %v2000, %v2000
    %v2279 = vmul.f32 %v2001, %v2001
    %v2280 = vmul.f32 %v2002, %v2002
    %v2281 = vmul.f32 %v2003, %v2003
    %v2282 = vmul.f32 %v2004, %v2004
    %v2283 = vmul.f32 %v2005, %v2005
    %v2284 = vmul.f32 %v2006, %v2006
    %v2285 = vmul.f32 %v2007, %v2007
    %v2286 = vmul.f32 %v2008, %v2008
    %v2287 = vmul.f32 %v2009, %v2009
    %v2288 = vmul.f32 %v2010, %v2010
    %v2289 = vmul.f32 %v2011, %v2011
    %v2290 = vmul.f32 %v2012, %v2012
    %v2291 = vmul.f32 %v2013, %v2013
    %v2292 = vmul.f32 %v2014, %v2014
    %v2293 = vmul.f32 %v2015, %v2015
    %v2294 = vmul.f32 %v2016, %v2016
    %v2295 = vmul.f32 %v2017, %v2017
    %v2296 = vmul.f32 %v2018, %v2018
    %v2297 = vmul.f32 %v2019, %v2019
    %v2298 = vmul.f32 %v2020, %v2020
    %v2299 = vmul.f32 %v2021, %v2021
    %v2300 = vmul.f32 %v2022, %v2022
    %v2301 = vmul.f32 %v2023, %v2023
    %v2302 = vmul.f32 %v2024, %v2024
    %v2303 = vmul.f32 %v2025, %v2025
    %v2304 = vmul.f32 %v2026, %v2026
    %v2305 = vmul.f32 %v2027, %v2027
    %v2306 = vmul.f32 %v2028, %v2028
    %v2307 = vmul.f32 %v2029, %v2029
    %v2308 = vmul.f32 %v2030, %v2030
    %v2309 = vmul.f32 %v2031, %v2031
    %v2310 = vmul.f32 %v2032, %v2032
    %v2311 = vmul.f32 %v2033, %v2033
    %v2312 = vmul.f32 %v2034, %v2034
    %v2313 = vmul.f32 %v2035, %v2035
    %v2314 = vmul.f32 %v2036, %v2036
    %v2315 = vmul.f32 %v2037, %v2037
    %v2316 = vmul.f32 %v2038, %v2038
    %v2317 = vmul.f32 %v2039, %v2039
    %v2318 = vmul.f32 %v2040, %v2040
    %v2319 = vmul.f32 %v2041, %v2041
    %v2320 = vmul.f32 %v2042, %v2042
    %v2321 = vmul.f32 %v2043, %v2043
    %v2322 = vmul.f32 %v2044, %v2044
    %v2323 = vmul.f32 %v2045, %v2045
    %v2324 = vmul.f32 %v2046, %v2046
    %v2325 = vmul.f32 %v2047, %v2047
    %v2326 = vmul.f32 %v2048, %v2048
    %v2327 = vmul.f32 %v2049, %v2049
    %v2328 = vmul.f32 %v2050, %v2050
    %v2329 = vadd.f32 %v2201, %v2205
    %v2330 = vadd.f32 %v2329, %v2209
    %v2331 = vadd.f32 %v2330, %v2213
    %v2332 = vadd.f32 %v2331, %v2217
    %v2333 = vadd.f32 %v2332, %v2221
    %v2334 = vadd.f32 %v2333, %v2225
    %v2335 = vadd.f32 %v2334, %v2229
    %v2336 = vadd.f32 %v2335, %v2233
    %v2337 = vadd.f32 %v2336, %v2237
    %v2338 = vadd.f32 %v2337, %v2241
    %v2339 = vadd.f32 %v2338, %v2245
    %v2340 = vadd.f32 %v2339, %v2249
    %v2341 = vadd.f32 %v2340, %v2253
    %v2342 = vadd.f32 %v2341, %v2257
    %v2343 = vadd.f32 %v2342, %v2261
    %v2344 = vadd.f32 %v2343, %v2265
    %v2345 = vadd.f32 %v2344, %v2269
    %v2346 = vadd.f32 %v2345, %v2273
    %v2347 = vadd.f32 %v2346, %v2277
    %v2348 = vadd.f32 %v2347, %v2281
    %v2349 = vadd.f32 %v2348, %v2285
    %v2350 = vadd.f32 %v2349, %v2289
    %v2351 = vadd.f32 %v2350, %v2293
    %v2352 = vadd.f32 %v2351, %v2297
    %v2353 = vadd.f32 %v2352, %v2301
    %v2354 = vadd.f32 %v2353, %v2305
    %v2355 = vadd.f32 %v2354, %v2309
    %v2356 = vadd.f32 %v2355, %v2313
    %v2357 = vadd.f32 %v2356, %v2317
    %v2358 = vadd.f32 %v2357, %v2321
    %v2359 = vadd.f32 %v2358, %v2325
    %v2360 = vrot.slane %v2359, 4
    %v2361 = vadd.f32 %v2359, %v2360
    %v2362 = vrot.slane %v2361, 2
    %v2363 = vadd.f32 %v2361, %v2362
    %v2364 = vrot.slane %v2363, 1
    %v2365 = vadd.f32 %v2363, %v2364
    %v2366 = vadd.f32 %v2202, %v2206
    %v2367 = vadd.f32 %v2366, %v2210
    %v2368 = vadd.f32 %v2367, %v2214
    %v2369 = vadd.f32 %v2368, %v2218
    %v2370 = vadd.f32 %v2369, %v2222
    %v2371 = vadd.f32 %v2370, %v2226
    %v2372 = vadd.f32 %v2371, %v2230
    %v2373 = vadd.f32 %v2372, %v2234
    %v2374 = vadd.f32 %v2373, %v2238
    %v2375 = vadd.f32 %v2374, %v2242
    %v2376 = vadd.f32 %v2375, %v2246
    %v2377 = vadd.f32 %v2376, %v2250
    %v2378 = vadd.f32 %v2377, %v2254
    %v2379 = vadd.f32 %v2378, %v2258
    %v2380 = vadd.f32 %v2379, %v2262
    %v2381 = vadd.f32 %v2380, %v2266
    %v2382 = vadd.f32 %v2381, %v2270
    %v2383 = vadd.f32 %v2382, %v2274
    %v2384 = vadd.f32 %v2383, %v2278
    %v2385 = vadd.f32 %v2384, %v2282
    %v2386 = vadd.f32 %v2385, %v2286
    %v2387 = vadd.f32 %v2386, %v2290
    %v2388 = vadd.f32 %v2387, %v2294
    %v2389 = vadd.f32 %v2388, %v2298
    %v2390 = vadd.f32 %v2389, %v2302
    %v2391 = vadd.f32 %v2390, %v2306
    %v2392 = vadd.f32 %v2391, %v2310
    %v2393 = vadd.f32 %v2392, %v2314
    %v2394 = vadd.f32 %v2393, %v2318
    %v2395 = vadd.f32 %v2394, %v2322
    %v2396 = vadd.f32 %v2395, %v2326
    %v2397 = vrot.slane %v2396, 4
    %v2398 = vadd.f32 %v2396, %v2397
    %v2399 = vrot.slane %v2398, 2
    %v2400 = vadd.f32 %v2398, %v2399
    %v2401 = vrot.slane %v2400, 1
    %v2402 = vadd.f32 %v2400, %v2401
    %v2403 = vadd.f32 %v2203, %v2207
    %v2404 = vadd.f32 %v2403, %v2211
    %v2405 = vadd.f32 %v2404, %v2215
    %v2406 = vadd.f32 %v2405, %v2219
    %v2407 = vadd.f32 %v2406, %v2223
    %v2408 = vadd.f32 %v2407, %v2227
    %v2409 = vadd.f32 %v2408, %v2231
    %v2410 = vadd.f32 %v2409, %v2235
    %v2411 = vadd.f32 %v2410, %v2239
    %v2412 = vadd.f32 %v2411, %v2243
    %v2413 = vadd.f32 %v2412, %v2247
    %v2414 = vadd.f32 %v2413, %v2251
    %v2415 = vadd.f32 %v2414, %v2255
    %v2416 = vadd.f32 %v2415, %v2259
    %v2417 = vadd.f32 %v2416, %v2263
    %v2418 = vadd.f32 %v2417, %v2267
    %v2419 = vadd.f32 %v2418, %v2271
    %v2420 = vadd.f32 %v2419, %v2275
    %v2421 = vadd.f32 %v2420, %v2279
    %v2422 = vadd.f32 %v2421, %v2283
    %v2423 = vadd.f32 %v2422, %v2287
    %v2424 = vadd.f32 %v2423, %v2291
    %v2425 = vadd.f32 %v2424, %v2295
    %v2426 = vadd.f32 %v2425, %v2299
    %v2427 = vadd.f32 %v2426, %v2303
    %v2428 = vadd.f32 %v2427, %v2307
    %v2429 = vadd.f32 %v2428, %v2311
    %v2430 = vadd.f32 %v2429, %v2315
    %v2431 = vadd.f32 %v2430, %v2319
    %v2432 = vadd.f32 %v2431, %v2323
    %v2433 = vadd.f32 %v2432, %v2327
    %v2434 = vrot.slane %v2433, 4
    %v2435 = vadd.f32 %v2433, %v2434
    %v2436 = vrot.slane %v2435, 2
    %v2437 = vadd.f32 %v2435, %v2436
    %v2438 = vrot.slane %v2437, 1
    %v2439 = vadd.f32 %v2437, %v2438
    %v2440 = vadd.f32 %v2204, %v2208
    %v2441 = vadd.f32 %v2440, %v2212
    %v2442 = vadd.f32 %v2441, %v2216
    %v2443 = vadd.f32 %v2442, %v2220
    %v2444 = vadd.f32 %v2443, %v2224
    %v2445 = vadd.f32 %v2444, %v2228
    %v2446 = vadd.f32 %v2445, %v2232
    %v2447 = vadd.f32 %v2446, %v2236
    %v2448 = vadd.f32 %v2447, %v2240
    %v2449 = vadd.f32 %v2448, %v2244
    %v2450 = vadd.f32 %v2449, %v2248
    %v2451 = vadd.f32 %v2450, %v2252
    %v2452 = vadd.f32 %v2451, %v2256
    %v2453 = vadd.f32 %v2452, %v2260
    %v2454 = vadd.f32 %v2453, %v2264
    %v2455 = vadd.f32 %v2454, %v2268
    %v2456 = vadd.f32 %v2455, %v2272
    %v2457 = vadd.f32 %v2456, %v2276
    %v2458 = vadd.f32 %v2457, %v2280
    %v2459 = vadd.f32 %v2458, %v2284
    %v2460 = vadd.f32 %v2459, %v2288
    %v2461 = vadd.f32 %v2460, %v2292
    %v2462 = vadd.f32 %v2461, %v2296
    %v2463 = vadd.f32 %v2462, %v2300
    %v2464 = vadd.f32 %v2463, %v2304
    %v2465 = vadd.f32 %v2464, %v2308
    %v2466 = vadd.f32 %v2465, %v2312
    %v2467 = vadd.f32 %v2466, %v2316
    %v2468 = vadd.f32 %v2467, %v2320
    %v2469 = vadd.f32 %v2468, %v2324
    %v2470 = vadd.f32 %v2469, %v2328
    %v2471 = vrot.slane %v2470, 4
    %v2472 = vadd.f32 %v2470, %v2471
    %v2473 = vrot.slane %v2472, 2
    %v2474 = vadd.f32 %v2472, %v2473
    %v2475 = vrot.slane %v2474, 1
    %v2476 = vadd.f32 %v2474, %v2475
    %v2477 = vmul.f32 %v2089, 0.00390625
    %v2478 = vmul.f32 %v2126, 0.00390625
    %v2479 = vmul.f32 %v2163, 0.00390625
    %v2480 = vmul.f32 %v2200, 0.00390625
    %v2481 = vmul.f32 %v2365, 0.00390625
    %v2482 = vmul.f32 %v2402, 0.00390625
    %v2483 = vmul.f32 %v2439, 0.00390625
    %v2484 = vmul.f32 %v2476, 0.00390625
    %v2485 = vmul.f32 %v2477, %v2477
    %v2486 = vmul.f32 %v2478, %v2478
    %v2487 = vmul.f32 %v2479, %v2479
    %v2488 = vmul.f32 %v2480, %v2480
    %v2489 = vsub.f32 %v2481, %v2485
    %v2490 = vsub.f32 %v2482, %v2486
    %v2491 = vsub.f32 %v2483, %v2487
    %v2492 = vsub.f32 %v2484, %v2488
    %v2493 = vmax.f32 %v2489, 0.0
    %v2494 = vmax.f32 %v2490, 0.0
    %v2495 = vmax.f32 %v2491, 0.0
    %v2496 = vmax.f32 %v2492, 0.0
    %v2497 = vadd.f32 %v2493, 1e-05
    %v2498 = vadd.f32 %v2494, 1e-05
    %v2499 = vadd.f32 %v2495, 1e-05
    %v2500 = vadd.f32 %v2496, 1e-05
    %v2501 = vrsqrt.pop %v2497
    %v2502 = vrsqrt.pop %v2498
    %v2503 = vrsqrt.pop %v2499
    %v2504 = vrsqrt.pop %v2500
    %v2509 = vcombine.low %v2501, %v2502
    %v2510 = vcombine.low %v2503, %v2504
    %v2512 = vunpack.c.l.s4 1966171168
    %v2513 = vunpack.c.0.s8 %v2512
    %v2514 = vlaneseq
    %v2515 = vshrl.u32 %v2514, 7
    %v2516 = vsub.s32 %v2513, %v2515
    %v2517 = vrot.slane %v2509, %v2516
    %v2519 = vunpack.c.l.s4 1966171168
    %v2520 = vunpack.c.0.s8 %v2519
    %v2521 = vlaneseq
    %v2522 = vshrl.u32 %v2521, 7
    %v2523 = vsub.s32 %v2520, %v2522
    %v2524 = vrot.slane %v2510, %v2523
    %v2525 = vcombine.low %v2517, %v2524
    %v2527 = vunpack.c.l.s4 1966171168
    %v2528 = vunpack.c.0.s8 %v2527
    %v2529 = vlaneseq
    %v2530 = vshrl.u32 %v2529, 7
    %v2531 = vsub.s32 %v2528, %v2530
    %v2532 = vrot.slane %v2525, %v2531
    %v2534 = vmul.f32 %v2051, %v2532
    %v2536 = vlaneseq
    %v2537 = vshrl.u32 %v2536, 7
    %v2538 = vsub.s32 0, %v2537
    %v2539 = vrot.slane %v2534, %v2538
    %v2540 = vlaneseq
    %v2541 = vshrl.u32 %v2540, 7
    %v2542 = vsub.s32 1, %v2541
    %v2543 = vrot.slane %v2534, %v2542
    %v2544 = vlaneseq
    %v2545 = vshrl.u32 %v2544, 7
    %v2546 = vsub.s32 2, %v2545
    %v2547 = vrot.slane %v2534, %v2546
    %v2548 = vlaneseq
    %v2549 = vshrl.u32 %v2548, 7
    %v2550 = vsub.s32 3, %v2549
    %v2551 = vrot.slane %v2534, %v2550
    %v2556 = vmul.f32 %v2477, %v2539
    %v2557 = vmul.f32 %v2478, %v2543
    %v2558 = vmul.f32 %v2479, %v2547
    %v2559 = vmul.f32 %v2480, %v2551
    %v2564 = vcombine.low %v2556, %v2557
    %v2565 = vcombine.low %v2558, %v2559
    %v2567 = vunpack.c.l.s4 1966171168
    %v2568 = vunpack.c.0.s8 %v2567
    %v2569 = vlaneseq
    %v2570 = vshrl.u32 %v2569, 7
    %v2571 = vsub.s32 %v2568, %v2570
    %v2572 = vrot.slane %v2564, %v2571
    %v2574 = vunpack.c.l.s4 1966171168
    %v2575 = vunpack.c.0.s8 %v2574
    %v2576 = vlaneseq
    %v2577 = vshrl.u32 %v2576, 7
    %v2578 = vsub.s32 %v2575, %v2577
    %v2579 = vrot.slane %v2565, %v2578
    %v2580 = vcombine.low %v2572, %v2579
    %v2582 = vunpack.c.l.s4 1966171168
    %v2583 = vunpack.c.0.s8 %v2582
    %v2584 = vlaneseq
    %v2585 = vshrl.u32 %v2584, 7
    %v2586 = vsub.s32 %v2583, %v2585
    %v2587 = vrot.slane %v2580, %v2586
    %v2589 = vsub.f32 %v2052, %v2587
    %v2590 = vmul.f32 %v1923, %v2539
    %v2591 = vmul.f32 %v1924, %v2543
    %v2592 = vmul.f32 %v1925, %v2547
    %v2593 = vmul.f32 %v1926, %v2551
    %v2594 = vmul.f32 %v1927, %v2539
    %v2595 = vmul.f32 %v1928, %v2543
    %v2596 = vmul.f32 %v1929, %v2547
    %v2597 = vmul.f32 %v1930, %v2551
    %v2598 = vmul.f32 %v1931, %v2539
    %v2599 = vmul.f32 %v1932, %v2543
    %v2600 = vmul.f32 %v1933, %v2547
    %v2601 = vmul.f32 %v1934, %v2551
    %v2602 = vmul.f32 %v1935, %v2539
    %v2603 = vmul.f32 %v1936, %v2543
    %v2604 = vmul.f32 %v1937, %v2547
    %v2605 = vmul.f32 %v1938, %v2551
    %v2606 = vmul.f32 %v1939, %v2539
    %v2607 = vmul.f32 %v1940, %v2543
    %v2608 = vmul.f32 %v1941, %v2547
    %v2609 = vmul.f32 %v1942, %v2551
    %v2610 = vmul.f32 %v1943, %v2539
    %v2611 = vmul.f32 %v1944, %v2543
    %v2612 = vmul.f32 %v1945, %v2547
    %v2613 = vmul.f32 %v1946, %v2551
    %v2614 = vmul.f32 %v1947, %v2539
    %v2615 = vmul.f32 %v1948, %v2543
    %v2616 = vmul.f32 %v1949, %v2547
    %v2617 = vmul.f32 %v1950, %v2551
    %v2618 = vmul.f32 %v1951, %v2539
    %v2619 = vmul.f32 %v1952, %v2543
    %v2620 = vmul.f32 %v1953, %v2547
    %v2621 = vmul.f32 %v1954, %v2551
    %v2622 = vmul.f32 %v1955, %v2539
    %v2623 = vmul.f32 %v1956, %v2543
    %v2624 = vmul.f32 %v1957, %v2547
    %v2625 = vmul.f32 %v1958, %v2551
    %v2626 = vmul.f32 %v1959, %v2539
    %v2627 = vmul.f32 %v1960, %v2543
    %v2628 = vmul.f32 %v1961, %v2547
    %v2629 = vmul.f32 %v1962, %v2551
    %v2630 = vmul.f32 %v1963, %v2539
    %v2631 = vmul.f32 %v1964, %v2543
    %v2632 = vmul.f32 %v1965, %v2547
    %v2633 = vmul.f32 %v1966, %v2551
    %v2634 = vmul.f32 %v1967, %v2539
    %v2635 = vmul.f32 %v1968, %v2543
    %v2636 = vmul.f32 %v1969, %v2547
    %v2637 = vmul.f32 %v1970, %v2551
    %v2638 = vmul.f32 %v1971, %v2539
    %v2639 = vmul.f32 %v1972, %v2543
    %v2640 = vmul.f32 %v1973, %v2547
    %v2641 = vmul.f32 %v1974, %v2551
    %v2642 = vmul.f32 %v1975, %v2539
    %v2643 = vmul.f32 %v1976, %v2543
    %v2644 = vmul.f32 %v1977, %v2547
    %v2645 = vmul.f32 %v1978, %v2551
    %v2646 = vmul.f32 %v1979, %v2539
    %v2647 = vmul.f32 %v1980, %v2543
    %v2648 = vmul.f32 %v1981, %v2547
    %v2649 = vmul.f32 %v1982, %v2551
    %v2650 = vmul.f32 %v1983, %v2539
    %v2651 = vmul.f32 %v1984, %v2543
    %v2652 = vmul.f32 %v1985, %v2547
    %v2653 = vmul.f32 %v1986, %v2551
    %v2654 = vmul.f32 %v1987, %v2539
    %v2655 = vmul.f32 %v1988, %v2543
    %v2656 = vmul.f32 %v1989, %v2547
    %v2657 = vmul.f32 %v1990, %v2551
    %v2658 = vmul.f32 %v1991, %v2539
    %v2659 = vmul.f32 %v1992, %v2543
    %v2660 = vmul.f32 %v1993, %v2547
    %v2661 = vmul.f32 %v1994, %v2551
    %v2662 = vmul.f32 %v1995, %v2539
    %v2663 = vmul.f32 %v1996, %v2543
    %v2664 = vmul.f32 %v1997, %v2547
    %v2665 = vmul.f32 %v1998, %v2551
    %v2666 = vmul.f32 %v1999, %v2539
    %v2667 = vmul.f32 %v2000, %v2543
    %v2668 = vmul.f32 %v2001, %v2547
    %v2669 = vmul.f32 %v2002, %v2551
    %v2670 = vmul.f32 %v2003, %v2539
    %v2671 = vmul.f32 %v2004, %v2543
    %v2672 = vmul.f32 %v2005, %v2547
    %v2673 = vmul.f32 %v2006, %v2551
    %v2674 = vmul.f32 %v2007, %v2539
    %v2675 = vmul.f32 %v2008, %v2543
    %v2676 = vmul.f32 %v2009, %v2547
    %v2677 = vmul.f32 %v2010, %v2551
    %v2678 = vmul.f32 %v2011, %v2539
    %v2679 = vmul.f32 %v2012, %v2543
    %v2680 = vmul.f32 %v2013, %v2547
    %v2681 = vmul.f32 %v2014, %v2551
    %v2682 = vmul.f32 %v2015, %v2539
    %v2683 = vmul.f32 %v2016, %v2543
    %v2684 = vmul.f32 %v2017, %v2547
    %v2685 = vmul.f32 %v2018, %v2551
    %v2686 = vmul.f32 %v2019, %v2539
    %v2687 = vmul.f32 %v2020, %v2543
    %v2688 = vmul.f32 %v2021, %v2547
    %v2689 = vmul.f32 %v2022, %v2551
    %v2690 = vmul.f32 %v2023, %v2539
    %v2691 = vmul.f32 %v2024, %v2543
    %v2692 = vmul.f32 %v2025, %v2547
    %v2693 = vmul.f32 %v2026, %v2551
    %v2694 = vmul.f32 %v2027, %v2539
    %v2695 = vmul.f32 %v2028, %v2543
    %v2696 = vmul.f32 %v2029, %v2547
    %v2697 = vmul.f32 %v2030, %v2551
    %v2698 = vmul.f32 %v2031, %v2539
    %v2699 = vmul.f32 %v2032, %v2543
    %v2700 = vmul.f32 %v2033, %v2547
    %v2701 = vmul.f32 %v2034, %v2551
    %v2702 = vmul.f32 %v2035, %v2539
    %v2703 = vmul.f32 %v2036, %v2543
    %v2704 = vmul.f32 %v2037, %v2547
    %v2705 = vmul.f32 %v2038, %v2551
    %v2706 = vmul.f32 %v2039, %v2539
    %v2707 = vmul.f32 %v2040, %v2543
    %v2708 = vmul.f32 %v2041, %v2547
    %v2709 = vmul.f32 %v2042, %v2551
    %v2710 = vmul.f32 %v2043, %v2539
    %v2711 = vmul.f32 %v2044, %v2543
    %v2712 = vmul.f32 %v2045, %v2547
    %v2713 = vmul.f32 %v2046, %v2551
    %v2714 = vmul.f32 %v2047, %v2539
    %v2715 = vmul.f32 %v2048, %v2543
    %v2716 = vmul.f32 %v2049, %v2547
    %v2717 = vmul.f32 %v2050, %v2551
    %v2719 = vlaneseq
    %v2720 = vshrl.u32 %v2719, 7
    %v2721 = vsub.s32 0, %v2720
    %v2722 = vrot.slane %v2589, %v2721
    %v2723 = vlaneseq
    %v2724 = vshrl.u32 %v2723, 7
    %v2725 = vsub.s32 1, %v2724
    %v2726 = vrot.slane %v2589, %v2725
    %v2727 = vlaneseq
    %v2728 = vshrl.u32 %v2727, 7
    %v2729 = vsub.s32 2, %v2728
    %v2730 = vrot.slane %v2589, %v2729
    %v2731 = vlaneseq
    %v2732 = vshrl.u32 %v2731, 7
    %v2733 = vsub.s32 3, %v2732
    %v2734 = vrot.slane %v2589, %v2733
    %v2739 = vadd.f32 %v2590, %v2722
    %v2740 = vadd.f32 %v2591, %v2726
    %v2741 = vadd.f32 %v2592, %v2730
    %v2742 = vadd.f32 %v2593, %v2734
    %v2743 = vadd.f32 %v2594, %v2722
    %v2744 = vadd.f32 %v2595, %v2726
    %v2745 = vadd.f32 %v2596, %v2730
    %v2746 = vadd.f32 %v2597, %v2734
    %v2747 = vadd.f32 %v2598, %v2722
    %v2748 = vadd.f32 %v2599, %v2726
    %v2749 = vadd.f32 %v2600, %v2730
    %v2750 = vadd.f32 %v2601, %v2734
    %v2751 = vadd.f32 %v2602, %v2722
    %v2752 = vadd.f32 %v2603, %v2726
    %v2753 = vadd.f32 %v2604, %v2730
    %v2754 = vadd.f32 %v2605, %v2734
    %v2755 = vadd.f32 %v2606, %v2722
    %v2756 = vadd.f32 %v2607, %v2726
    %v2757 = vadd.f32 %v2608, %v2730
    %v2758 = vadd.f32 %v2609, %v2734
    %v2759 = vadd.f32 %v2610, %v2722
    %v2760 = vadd.f32 %v2611, %v2726
    %v2761 = vadd.f32 %v2612, %v2730
    %v2762 = vadd.f32 %v2613, %v2734
    %v2763 = vadd.f32 %v2614, %v2722
    %v2764 = vadd.f32 %v2615, %v2726
    %v2765 = vadd.f32 %v2616, %v2730
    %v2766 = vadd.f32 %v2617, %v2734
    %v2767 = vadd.f32 %v2618, %v2722
    %v2768 = vadd.f32 %v2619, %v2726
    %v2769 = vadd.f32 %v2620, %v2730
    %v2770 = vadd.f32 %v2621, %v2734
    %v2771 = vadd.f32 %v2622, %v2722
    %v2772 = vadd.f32 %v2623, %v2726
    %v2773 = vadd.f32 %v2624, %v2730
    %v2774 = vadd.f32 %v2625, %v2734
    %v2775 = vadd.f32 %v2626, %v2722
    %v2776 = vadd.f32 %v2627, %v2726
    %v2777 = vadd.f32 %v2628, %v2730
    %v2778 = vadd.f32 %v2629, %v2734
    %v2779 = vadd.f32 %v2630, %v2722
    %v2780 = vadd.f32 %v2631, %v2726
    %v2781 = vadd.f32 %v2632, %v2730
    %v2782 = vadd.f32 %v2633, %v2734
    %v2783 = vadd.f32 %v2634, %v2722
    %v2784 = vadd.f32 %v2635, %v2726
    %v2785 = vadd.f32 %v2636, %v2730
    %v2786 = vadd.f32 %v2637, %v2734
    %v2787 = vadd.f32 %v2638, %v2722
    %v2788 = vadd.f32 %v2639, %v2726
    %v2789 = vadd.f32 %v2640, %v2730
    %v2790 = vadd.f32 %v2641, %v2734
    %v2791 = vadd.f32 %v2642, %v2722
    %v2792 = vadd.f32 %v2643, %v2726
    %v2793 = vadd.f32 %v2644, %v2730
    %v2794 = vadd.f32 %v2645, %v2734
    %v2795 = vadd.f32 %v2646, %v2722
    %v2796 = vadd.f32 %v2647, %v2726
    %v2797 = vadd.f32 %v2648, %v2730
    %v2798 = vadd.f32 %v2649, %v2734
    %v2799 = vadd.f32 %v2650, %v2722
    %v2800 = vadd.f32 %v2651, %v2726
    %v2801 = vadd.f32 %v2652, %v2730
    %v2802 = vadd.f32 %v2653, %v2734
    %v2803 = vadd.f32 %v2654, %v2722
    %v2804 = vadd.f32 %v2655, %v2726
    %v2805 = vadd.f32 %v2656, %v2730
    %v2806 = vadd.f32 %v2657, %v2734
    %v2807 = vadd.f32 %v2658, %v2722
    %v2808 = vadd.f32 %v2659, %v2726
    %v2809 = vadd.f32 %v2660, %v2730
    %v2810 = vadd.f32 %v2661, %v2734
    %v2811 = vadd.f32 %v2662, %v2722
    %v2812 = vadd.f32 %v2663, %v2726
    %v2813 = vadd.f32 %v2664, %v2730
    %v2814 = vadd.f32 %v2665, %v2734
    %v2815 = vadd.f32 %v2666, %v2722
    %v2816 = vadd.f32 %v2667, %v2726
    %v2817 = vadd.f32 %v2668, %v2730
    %v2818 = vadd.f32 %v2669, %v2734
    %v2819 = vadd.f32 %v2670, %v2722
    %v2820 = vadd.f32 %v2671, %v2726
    %v2821 = vadd.f32 %v2672, %v2730
    %v2822 = vadd.f32 %v2673, %v2734
    %v2823 = vadd.f32 %v2674, %v2722
    %v2824 = vadd.f32 %v2675, %v2726
    %v2825 = vadd.f32 %v2676, %v2730
    %v2826 = vadd.f32 %v2677, %v2734
    %v2827 = vadd.f32 %v2678, %v2722
    %v2828 = vadd.f32 %v2679, %v2726
    %v2829 = vadd.f32 %v2680, %v2730
    %v2830 = vadd.f32 %v2681, %v2734
    %v2831 = vadd.f32 %v2682, %v2722
    %v2832 = vadd.f32 %v2683, %v2726
    %v2833 = vadd.f32 %v2684, %v2730
    %v2834 = vadd.f32 %v2685, %v2734
    %v2835 = vadd.f32 %v2686, %v2722
    %v2836 = vadd.f32 %v2687, %v2726
    %v2837 = vadd.f32 %v2688, %v2730
    %v2838 = vadd.f32 %v2689, %v2734
    %v2839 = vadd.f32 %v2690, %v2722
    %v2840 = vadd.f32 %v2691, %v2726
    %v2841 = vadd.f32 %v2692, %v2730
    %v2842 = vadd.f32 %v2693, %v2734
    %v2843 = vadd.f32 %v2694, %v2722
    %v2844 = vadd.f32 %v2695, %v2726
    %v2845 = vadd.f32 %v2696, %v2730
    %v2846 = vadd.f32 %v2697, %v2734
    %v2847 = vadd.f32 %v2698, %v2722
    %v2848 = vadd.f32 %v2699, %v2726
    %v2849 = vadd.f32 %v2700, %v2730
    %v2850 = vadd.f32 %v2701, %v2734
    %v2851 = vadd.f32 %v2702, %v2722
    %v2852 = vadd.f32 %v2703, %v2726
    %v2853 = vadd.f32 %v2704, %v2730
    %v2854 = vadd.f32 %v2705, %v2734
    %v2855 = vadd.f32 %v2706, %v2722
    %v2856 = vadd.f32 %v2707, %v2726
    %v2857 = vadd.f32 %v2708, %v2730
    %v2858 = vadd.f32 %v2709, %v2734
    %v2859 = vadd.f32 %v2710, %v2722
    %v2860 = vadd.f32 %v2711, %v2726
    %v2861 = vadd.f32 %v2712, %v2730
    %v2862 = vadd.f32 %v2713, %v2734
    %v2863 = vadd.f32 %v2714, %v2722
    %v2864 = vadd.f32 %v2715, %v2726
    %v2865 = vadd.f32 %v2716, %v2730
    %v2866 = vadd.f32 %v2717, %v2734
    %v2867 = vpack.c.bf16 %v2743, %v2739
    %v2868 = vpack.c.bf16 %v2744, %v2740
    %v2869 = vpack.c.bf16 %v2745, %v2741
    %v2870 = vpack.c.bf16 %v2746, %v2742
    %v2871 = vpack.c.bf16 %v2751, %v2747
    %v2872 = vpack.c.bf16 %v2752, %v2748
    %v2873 = vpack.c.bf16 %v2753, %v2749
    %v2874 = vpack.c.bf16 %v2754, %v2750
    %v2875 = vpack.c.bf16 %v2759, %v2755
    %v2876 = vpack.c.bf16 %v2760, %v2756
    %v2877 = vpack.c.bf16 %v2761, %v2757
    %v2878 = vpack.c.bf16 %v2762, %v2758
    %v2879 = vpack.c.bf16 %v2767, %v2763
    %v2880 = vpack.c.bf16 %v2768, %v2764
    %v2881 = vpack.c.bf16 %v2769, %v2765
    %v2882 = vpack.c.bf16 %v2770, %v2766
    %v2883 = vpack.c.bf16 %v2775, %v2771
    %v2884 = vpack.c.bf16 %v2776, %v2772
    %v2885 = vpack.c.bf16 %v2777, %v2773
    %v2886 = vpack.c.bf16 %v2778, %v2774
    %v2887 = vpack.c.bf16 %v2783, %v2779
    %v2888 = vpack.c.bf16 %v2784, %v2780
    %v2889 = vpack.c.bf16 %v2785, %v2781
    %v2890 = vpack.c.bf16 %v2786, %v2782
    %v2891 = vpack.c.bf16 %v2791, %v2787
    %v2892 = vpack.c.bf16 %v2792, %v2788
    %v2893 = vpack.c.bf16 %v2793, %v2789
    %v2894 = vpack.c.bf16 %v2794, %v2790
    %v2895 = vpack.c.bf16 %v2799, %v2795
    %v2896 = vpack.c.bf16 %v2800, %v2796
    %v2897 = vpack.c.bf16 %v2801, %v2797
    %v2898 = vpack.c.bf16 %v2802, %v2798
    %v2899 = vpack.c.bf16 %v2807, %v2803
    %v2900 = vpack.c.bf16 %v2808, %v2804
    %v2901 = vpack.c.bf16 %v2809, %v2805
    %v2902 = vpack.c.bf16 %v2810, %v2806
    %v2903 = vpack.c.bf16 %v2815, %v2811
    %v2904 = vpack.c.bf16 %v2816, %v2812
    %v2905 = vpack.c.bf16 %v2817, %v2813
    %v2906 = vpack.c.bf16 %v2818, %v2814
    %v2907 = vpack.c.bf16 %v2823, %v2819
    %v2908 = vpack.c.bf16 %v2824, %v2820
    %v2909 = vpack.c.bf16 %v2825, %v2821
    %v2910 = vpack.c.bf16 %v2826, %v2822
    %v2911 = vpack.c.bf16 %v2831, %v2827
    %v2912 = vpack.c.bf16 %v2832, %v2828
    %v2913 = vpack.c.bf16 %v2833, %v2829
    %v2914 = vpack.c.bf16 %v2834, %v2830
    %v2915 = vpack.c.bf16 %v2839, %v2835
    %v2916 = vpack.c.bf16 %v2840, %v2836
    %v2917 = vpack.c.bf16 %v2841, %v2837
    %v2918 = vpack.c.bf16 %v2842, %v2838
    %v2919 = vpack.c.bf16 %v2847, %v2843
    %v2920 = vpack.c.bf16 %v2848, %v2844
    %v2921 = vpack.c.bf16 %v2849, %v2845
    %v2922 = vpack.c.bf16 %v2850, %v2846
    %v2923 = vpack.c.bf16 %v2855, %v2851
    %v2924 = vpack.c.bf16 %v2856, %v2852
    %v2925 = vpack.c.bf16 %v2857, %v2853
    %v2926 = vpack.c.bf16 %v2858, %v2854
    %v2927 = vpack.c.bf16 %v2863, %v2859
    %v2928 = vpack.c.bf16 %v2864, %v2860
    %v2929 = vpack.c.bf16 %v2865, %v2861
    %v2930 = vpack.c.bf16 %v2866, %v2862
    %s2931 = smul.u32 4, 64
    %s2932 = smul.u32 %s2931, 1
    %s2933 = sshll.u32 %s2932, 4
    %2934 = dma.done [#allocation4], %s2933
    %v2935 = vld [vmem:[#allocation2] sm:$0xf]
    %v2936 = vld [vmem:[#allocation2 + $0x4] sm:$0xf]
    %v2937 = vld [vmem:[#allocation2 + $0x8] sm:$0xf]
    %v2938 = vld [vmem:[#allocation2 + $0xc] sm:$0xf]
    %v2939 = vld [vmem:[#allocation2 + $0x10] sm:$0xf]
    %v2940 = vld [vmem:[#allocation2 + $0x14] sm:$0xf]
    %v2941 = vld [vmem:[#allocation2 + $0x18] sm:$0xf]
    %v2942 = vld [vmem:[#allocation2 + $0x1c] sm:$0xf]
    %v2943 = vld [vmem:[#allocation2 + $0x20] sm:$0xf]
    %v2944 = vld [vmem:[#allocation2 + $0x24] sm:$0xf]
    %v2945 = vld [vmem:[#allocation2 + $0x28] sm:$0xf]
    %v2946 = vld [vmem:[#allocation2 + $0x2c] sm:$0xf]
    %v2947 = vld [vmem:[#allocation2 + $0x30] sm:$0xf]
    %v2948 = vld [vmem:[#allocation2 + $0x34] sm:$0xf]
    %v2949 = vld [vmem:[#allocation2 + $0x38] sm:$0xf]
    %v2950 = vld [vmem:[#allocation2 + $0x3c] sm:$0xf]
    %v2951 = vld [vmem:[#allocation2 + $0x40] sm:$0xf]
    %v2952 = vld [vmem:[#allocation2 + $0x44] sm:$0xf]
    %v2953 = vld [vmem:[#allocation2 + $0x48] sm:$0xf]
    %v2954 = vld [vmem:[#allocation2 + $0x4c] sm:$0xf]
    %v2955 = vld [vmem:[#allocation2 + $0x50] sm:$0xf]
    %v2956 = vld [vmem:[#allocation2 + $0x54] sm:$0xf]
    %v2957 = vld [vmem:[#allocation2 + $0x58] sm:$0xf]
    %v2958 = vld [vmem:[#allocation2 + $0x5c] sm:$0xf]
    %v2959 = vld [vmem:[#allocation2 + $0x60] sm:$0xf]
    %v2960 = vld [vmem:[#allocation2 + $0x64] sm:$0xf]
    %v2961 = vld [vmem:[#allocation2 + $0x68] sm:$0xf]
    %v2962 = vld [vmem:[#allocation2 + $0x6c] sm:$0xf]
    %v2963 = vld [vmem:[#allocation2 + $0x70] sm:$0xf]
    %v2964 = vld [vmem:[#allocation2 + $0x74] sm:$0xf]
    %v2965 = vld [vmem:[#allocation2 + $0x78] sm:$0xf]
    %v2966 = vld [vmem:[#allocation2 + $0x7c] sm:$0xf]
    %v2967 = vld [vmem:[#allocation2 + $0x80] sm:$0xf]
    %v2968 = vld [vmem:[#allocation2 + $0x84] sm:$0xf]
    %v2969 = vld [vmem:[#allocation2 + $0x88] sm:$0xf]
    %v2970 = vld [vmem:[#allocation2 + $0x8c] sm:$0xf]
    %v2971 = vld [vmem:[#allocation2 + $0x90] sm:$0xf]
    %v2972 = vld [vmem:[#allocation2 + $0x94] sm:$0xf]
    %v2973 = vld [vmem:[#allocation2 + $0x98] sm:$0xf]
    %v2974 = vld [vmem:[#allocation2 + $0x9c] sm:$0xf]
    %v2975 = vld [vmem:[#allocation2 + $0xa0] sm:$0xf]
    %v2976 = vld [vmem:[#allocation2 + $0xa4] sm:$0xf]
    %v2977 = vld [vmem:[#allocation2 + $0xa8] sm:$0xf]
    %v2978 = vld [vmem:[#allocation2 + $0xac] sm:$0xf]
    %v2979 = vld [vmem:[#allocation2 + $0xb0] sm:$0xf]
    %v2980 = vld [vmem:[#allocation2 + $0xb4] sm:$0xf]
    %v2981 = vld [vmem:[#allocation2 + $0xb8] sm:$0xf]
    %v2982 = vld [vmem:[#allocation2 + $0xbc] sm:$0xf]
    %v2983 = vld [vmem:[#allocation2 + $0xc0] sm:$0xf]
    %v2984 = vld [vmem:[#allocation2 + $0xc4] sm:$0xf]
    %v2985 = vld [vmem:[#allocation2 + $0xc8] sm:$0xf]
    %v2986 = vld [vmem:[#allocation2 + $0xcc] sm:$0xf]
    %v2987 = vld [vmem:[#allocation2 + $0xd0] sm:$0xf]
    %v2988 = vld [vmem:[#allocation2 + $0xd4] sm:$0xf]
    %v2989 = vld [vmem:[#allocation2 + $0xd8] sm:$0xf]
    %v2990 = vld [vmem:[#allocation2 + $0xdc] sm:$0xf]
    %v2991 = vld [vmem:[#allocation2 + $0xe0] sm:$0xf]
    %v2992 = vld [vmem:[#allocation2 + $0xe4] sm:$0xf]
    %v2993 = vld [vmem:[#allocation2 + $0xe8] sm:$0xf]
    %v2994 = vld [vmem:[#allocation2 + $0xec] sm:$0xf]
    %v2995 = vld [vmem:[#allocation2 + $0xf0] sm:$0xf]
    %v2996 = vld [vmem:[#allocation2 + $0xf4] sm:$0xf]
    %v2997 = vld [vmem:[#allocation2 + $0xf8] sm:$0xf]
    %v2998 = vld [vmem:[#allocation2 + $0xfc] sm:$0xf]
    %v2999 = vld [vmem:[%s12] sm:$0x1]
    %v3001 = vlaneseq
    %v3002 = vshrl.u32 %v3001, 7
    %v3003 = vsub.s32 0, %v3002
    %v3004 = vrot.slane %v2999, %v3003
    %v3070 = vunpack.c.l.b16 %v2935
    %v3071 = vunpack.c.l.b16 %v2936
    %v3072 = vunpack.c.l.b16 %v2937
    %v3073 = vunpack.c.l.b16 %v2938
    %v3074 = vunpack.c.l.b16 %v2939
    %v3075 = vunpack.c.l.b16 %v2940
    %v3076 = vunpack.c.l.b16 %v2941
    %v3077 = vunpack.c.l.b16 %v2942
    %v3078 = vunpack.c.l.b16 %v2943
    %v3079 = vunpack.c.l.b16 %v2944
    %v3080 = vunpack.c.l.b16 %v2945
    %v3081 = vunpack.c.l.b16 %v2946
    %v3082 = vunpack.c.l.b16 %v2947
    %v3083 = vunpack.c.l.b16 %v2948
    %v3084 = vunpack.c.l.b16 %v2949
    %v3085 = vunpack.c.l.b16 %v2950
    %v3086 = vunpack.c.l.b16 %v2951
    %v3087 = vunpack.c.l.b16 %v2952
    %v3088 = vunpack.c.l.b16 %v2953
    %v3089 = vunpack.c.l.b16 %v2954
    %v3090 = vunpack.c.l.b16 %v2955
    %v3091 = vunpack.c.l.b16 %v2956
    %v3092 = vunpack.c.l.b16 %v2957
    %v3093 = vunpack.c.l.b16 %v2958
    %v3094 = vunpack.c.l.b16 %v2959
    %v3095 = vunpack.c.l.b16 %v2960
    %v3096 = vunpack.c.l.b16 %v2961
    %v3097 = vunpack.c.l.b16 %v2962
    %v3098 = vunpack.c.l.b16 %v2963
    %v3099 = vunpack.c.l.b16 %v2964
    %v3100 = vunpack.c.l.b16 %v2965
    %v3101 = vunpack.c.l.b16 %v2966
    %v3102 = vunpack.c.l.b16 %v2967
    %v3103 = vunpack.c.l.b16 %v2968
    %v3104 = vunpack.c.l.b16 %v2969
    %v3105 = vunpack.c.l.b16 %v2970
    %v3106 = vunpack.c.l.b16 %v2971
    %v3107 = vunpack.c.l.b16 %v2972
    %v3108 = vunpack.c.l.b16 %v2973
    %v3109 = vunpack.c.l.b16 %v2974
    %v3110 = vunpack.c.l.b16 %v2975
    %v3111 = vunpack.c.l.b16 %v2976
    %v3112 = vunpack.c.l.b16 %v2977
    %v3113 = vunpack.c.l.b16 %v2978
    %v3114 = vunpack.c.l.b16 %v2979
    %v3115 = vunpack.c.l.b16 %v2980
    %v3116 = vunpack.c.l.b16 %v2981
    %v3117 = vunpack.c.l.b16 %v2982
    %v3118 = vunpack.c.l.b16 %v2983
    %v3119 = vunpack.c.l.b16 %v2984
    %v3120 = vunpack.c.l.b16 %v2985
    %v3121 = vunpack.c.l.b16 %v2986
    %v3122 = vunpack.c.l.b16 %v2987
    %v3123 = vunpack.c.l.b16 %v2988
    %v3124 = vunpack.c.l.b16 %v2989
    %v3125 = vunpack.c.l.b16 %v2990
    %v3126 = vunpack.c.l.b16 %v2991
    %v3127 = vunpack.c.l.b16 %v2992
    %v3128 = vunpack.c.l.b16 %v2993
    %v3129 = vunpack.c.l.b16 %v2994
    %v3130 = vunpack.c.l.b16 %v2995
    %v3131 = vunpack.c.l.b16 %v2996
    %v3132 = vunpack.c.l.b16 %v2997
    %v3133 = vunpack.c.l.b16 %v2998
    %v3134 = vpack.c.b16 %v3071, %v3070
    %v3135 = vpack.c.b16 %v3073, %v3072
    %v3136 = vpack.c.b16 %v3075, %v3074
    %v3137 = vpack.c.b16 %v3077, %v3076
    %v3138 = vpack.c.b16 %v3079, %v3078
    %v3139 = vpack.c.b16 %v3081, %v3080
    %v3140 = vpack.c.b16 %v3083, %v3082
    %v3141 = vpack.c.b16 %v3085, %v3084
    %v3142 = vpack.c.b16 %v3087, %v3086
    %v3143 = vpack.c.b16 %v3089, %v3088
    %v3144 = vpack.c.b16 %v3091, %v3090
    %v3145 = vpack.c.b16 %v3093, %v3092
    %v3146 = vpack.c.b16 %v3095, %v3094
    %v3147 = vpack.c.b16 %v3097, %v3096
    %v3148 = vpack.c.b16 %v3099, %v3098
    %v3149 = vpack.c.b16 %v3101, %v3100
    %v3150 = vpack.c.b16 %v3103, %v3102
    %v3151 = vpack.c.b16 %v3105, %v3104
    %v3152 = vpack.c.b16 %v3107, %v3106
    %v3153 = vpack.c.b16 %v3109, %v3108
    %v3154 = vpack.c.b16 %v3111, %v3110
    %v3155 = vpack.c.b16 %v3113, %v3112
    %v3156 = vpack.c.b16 %v3115, %v3114
    %v3157 = vpack.c.b16 %v3117, %v3116
    %v3158 = vpack.c.b16 %v3119, %v3118
    %v3159 = vpack.c.b16 %v3121, %v3120
    %v3160 = vpack.c.b16 %v3123, %v3122
    %v3161 = vpack.c.b16 %v3125, %v3124
    %v3162 = vpack.c.b16 %v3127, %v3126
    %v3163 = vpack.c.b16 %v3129, %v3128
    %v3164 = vpack.c.b16 %v3131, %v3130
    %v3165 = vpack.c.b16 %v3133, %v3132
    %3198 = vmatprep.subr.bf16.mxu0 0
    %3199 = vmatpush1.bf16.msra.mxu0 %v3141
    %3200 = vmatprep.subr.bf16.mxu0 0
    %3201 = vmatpush1.bf16.msra.mxu0 %v3140
    %3202 = vmatprep.subr.bf16.mxu0 0
    %3203 = vmatpush1.bf16.msra.mxu0 %v3139
    %3204 = vmatprep.subr.bf16.mxu0 0
    %3205 = vmatpush1.bf16.msra.mxu0 %v3138
    %3206 = vmatprep.subr.bf16.mxu0 0
    %3207 = vmatpush1.bf16.msra.mxu0 %v3137
    %3208 = vmatprep.subr.bf16.mxu0 0
    %3209 = vmatpush1.bf16.msra.mxu0 %v3136
    %3210 = vmatprep.subr.bf16.mxu0 0
    %3211 = vmatpush1.bf16.msra.mxu0 %v3135
    %3212 = vmatprep.subr.bf16.mxu0 0
    %3213 = vmatpush1.bf16.msra.mxu0 %v3134
    %3214 = vmatprep.subr.bf16.mxu0 0
    %3215 = vmatpush2.bf16.msra.mxu0 %v3149
    %3216 = vmatprep.subr.bf16.mxu0 0
    %3217 = vmatpush2.bf16.msra.mxu0 %v3148
    %3218 = vmatprep.subr.bf16.mxu0 0
    %3219 = vmatpush2.bf16.msra.mxu0 %v3147
    %3220 = vmatprep.subr.bf16.mxu0 0
    %3221 = vmatpush2.bf16.msra.mxu0 %v3146
    %3222 = vmatprep.subr.bf16.mxu0 0
    %3223 = vmatpush2.bf16.msra.mxu0 %v3145
    %3224 = vmatprep.subr.bf16.mxu0 0
    %3225 = vmatpush2.bf16.msra.mxu0 %v3144
    %3226 = vmatprep.subr.bf16.mxu0 0
    %3227 = vmatpush2.bf16.msra.mxu0 %v3143
    %3228 = vmatprep.subr.bf16.mxu0 0
    %3229 = vmatpush2.bf16.msra.mxu0 %v3142
    %3230 = vmatprep.mubr.bf16.mxu0 %v2868
    %3231 = vmatmul.mubr.bf16.gmra.mxu0 %v2867
    %v3232 = vpop.f32.mrf.mxu0
    %v3233 = vadd.f32 %v3004, %v3232
    %v3234 = vpop.f32.mrf.mxu0
    %v3235 = vpop.f32.mrf.mxu0
    %v3236 = vadd.f32 %v3004, %v3235
    %v3237 = vpop.f32.mrf.mxu0
    %3238 = vmatprep.mubr.bf16.mxu0 %v2872
    %3239 = vmatmul.mubr.bf16.gmra.mxu0 %v2871
    %v3240 = vpop.f32.mrf.mxu0
    %v3241 = vadd.f32 %v3004, %v3240
    %v3242 = vpop.f32.mrf.mxu0
    %v3243 = vpop.f32.mrf.mxu0
    %v3244 = vadd.f32 %v3004, %v3243
    %v3245 = vpop.f32.mrf.mxu0
    %3246 = vmatprep.mubr.bf16.mxu0 %v2876
    %3247 = vmatmul.mubr.bf16.gmra.mxu0 %v2875
    %v3248 = vpop.f32.mrf.mxu0
    %v3249 = vadd.f32 %v3004, %v3248
    %v3250 = vpop.f32.mrf.mxu0
    %v3251 = vpop.f32.mrf.mxu0
    %v3252 = vadd.f32 %v3004, %v3251
    %v3253 = vpop.f32.mrf.mxu0
    %3254 = vmatprep.mubr.bf16.mxu0 %v2880
    %3255 = vmatmul.mubr.bf16.gmra.mxu0 %v2879
    %v3256 = vpop.f32.mrf.mxu0
    %v3257 = vadd.f32 %v3004, %v3256
    %v3258 = vpop.f32.mrf.mxu0
    %v3259 = vpop.f32.mrf.mxu0
    %v3260 = vadd.f32 %v3004, %v3259
    %v3261 = vpop.f32.mrf.mxu0
    %3262 = vmatprep.mubr.bf16.mxu0 %v2884
    %3263 = vmatmul.mubr.bf16.gmra.mxu0 %v2883
    %v3264 = vpop.f32.mrf.mxu0
    %v3265 = vadd.f32 %v3004, %v3264
    %v3266 = vpop.f32.mrf.mxu0
    %v3267 = vpop.f32.mrf.mxu0
    %v3268 = vadd.f32 %v3004, %v3267
    %v3269 = vpop.f32.mrf.mxu0
    %3270 = vmatprep.mubr.bf16.mxu0 %v2888
    %3271 = vmatmul.mubr.bf16.gmra.mxu0 %v2887
    %v3272 = vpop.f32.mrf.mxu0
    %v3273 = vadd.f32 %v3004, %v3272
    %v3274 = vpop.f32.mrf.mxu0
    %v3275 = vpop.f32.mrf.mxu0
    %v3276 = vadd.f32 %v3004, %v3275
    %v3277 = vpop.f32.mrf.mxu0
    %3278 = vmatprep.mubr.bf16.mxu0 %v2892
    %3279 = vmatmul.mubr.bf16.gmra.mxu0 %v2891
    %v3280 = vpop.f32.mrf.mxu0
    %v3281 = vadd.f32 %v3004, %v3280
    %v3282 = vpop.f32.mrf.mxu0
    %v3283 = vpop.f32.mrf.mxu0
    %v3284 = vadd.f32 %v3004, %v3283
    %v3285 = vpop.f32.mrf.mxu0
    %3286 = vmatprep.mubr.bf16.mxu0 %v2896
    %3287 = vmatmul.mubr.bf16.gmra.mxu0 %v2895
    %v3288 = vpop.f32.mrf.mxu0
    %v3289 = vadd.f32 %v3004, %v3288
    %v3290 = vpop.f32.mrf.mxu0
    %v3291 = vpop.f32.mrf.mxu0
    %v3292 = vadd.f32 %v3004, %v3291
    %v3293 = vpop.f32.mrf.mxu0
    %3294 = vmatprep.mubr.bf16.mxu0 %v2900
    %3295 = vmatmul.mubr.bf16.gmra.mxu0 %v2899
    %v3296 = vpop.f32.mrf.mxu0
    %v3297 = vadd.f32 %v3004, %v3296
    %v3298 = vpop.f32.mrf.mxu0
    %v3299 = vpop.f32.mrf.mxu0
    %v3300 = vadd.f32 %v3004, %v3299
    %v3301 = vpop.f32.mrf.mxu0
    %3302 = vmatprep.mubr.bf16.mxu0 %v2904
    %3303 = vmatmul.mubr.bf16.gmra.mxu0 %v2903
    %v3304 = vpop.f32.mrf.mxu0
    %v3305 = vadd.f32 %v3004, %v3304
    %v3306 = vpop.f32.mrf.mxu0
    %v3307 = vpop.f32.mrf.mxu0
    %v3308 = vadd.f32 %v3004, %v3307
    %v3309 = vpop.f32.mrf.mxu0
    %3310 = vmatprep.mubr.bf16.mxu0 %v2908
    %3311 = vmatmul.mubr.bf16.gmra.mxu0 %v2907
    %v3312 = vpop.f32.mrf.mxu0
    %v3313 = vadd.f32 %v3004, %v3312
    %v3314 = vpop.f32.mrf.mxu0
    %v3315 = vpop.f32.mrf.mxu0
    %v3316 = vadd.f32 %v3004, %v3315
    %v3317 = vpop.f32.mrf.mxu0
    %3318 = vmatprep.mubr.bf16.mxu0 %v2912
    %3319 = vmatmul.mubr.bf16.gmra.mxu0 %v2911
    %v3320 = vpop.f32.mrf.mxu0
    %v3321 = vadd.f32 %v3004, %v3320
    %v3322 = vpop.f32.mrf.mxu0
    %v3323 = vpop.f32.mrf.mxu0
    %v3324 = vadd.f32 %v3004, %v3323
    %v3325 = vpop.f32.mrf.mxu0
    %3326 = vmatprep.mubr.bf16.mxu0 %v2916
    %3327 = vmatmul.mubr.bf16.gmra.mxu0 %v2915
    %v3328 = vpop.f32.mrf.mxu0
    %v3329 = vadd.f32 %v3004, %v3328
    %v3330 = vpop.f32.mrf.mxu0
    %v3331 = vpop.f32.mrf.mxu0
    %v3332 = vadd.f32 %v3004, %v3331
    %v3333 = vpop.f32.mrf.mxu0
    %3334 = vmatprep.mubr.bf16.mxu0 %v2920
    %3335 = vmatmul.mubr.bf16.gmra.mxu0 %v2919
    %v3336 = vpop.f32.mrf.mxu0
    %v3337 = vadd.f32 %v3004, %v3336
    %v3338 = vpop.f32.mrf.mxu0
    %v3339 = vpop.f32.mrf.mxu0
    %v3340 = vadd.f32 %v3004, %v3339
    %v3341 = vpop.f32.mrf.mxu0
    %3342 = vmatprep.mubr.bf16.mxu0 %v2924
    %3343 = vmatmul.mubr.bf16.gmra.mxu0 %v2923
    %v3344 = vpop.f32.mrf.mxu0
    %v3345 = vadd.f32 %v3004, %v3344
    %v3346 = vpop.f32.mrf.mxu0
    %v3347 = vpop.f32.mrf.mxu0
    %v3348 = vadd.f32 %v3004, %v3347
    %v3349 = vpop.f32.mrf.mxu0
    %3350 = vmatprep.mubr.bf16.mxu0 %v2928
    %3351 = vmatmul.mubr.bf16.gmra.mxu0 %v2927
    %v3352 = vpop.f32.mrf.mxu0
    %v3353 = vadd.f32 %v3004, %v3352
    %v3354 = vpop.f32.mrf.mxu0
    %v3355 = vpop.f32.mrf.mxu0
    %v3356 = vadd.f32 %v3004, %v3355
    %v3357 = vpop.f32.mrf.mxu0
    %3358 = vdwg.mxu0
    %3359 = vmatprep.subr.bf16.mxu0 0
    %3360 = vmatpush1.bf16.msra.mxu0 %v3157
    %3361 = vmatprep.subr.bf16.mxu0 0
    %3362 = vmatpush1.bf16.msra.mxu0 %v3156
    %3363 = vmatprep.subr.bf16.mxu0 0
    %3364 = vmatpush1.bf16.msra.mxu0 %v3155
    %3365 = vmatprep.subr.bf16.mxu0 0
    %3366 = vmatpush1.bf16.msra.mxu0 %v3154
    %3367 = vmatprep.subr.bf16.mxu0 0
    %3368 = vmatpush1.bf16.msra.mxu0 %v3153
    %3369 = vmatprep.subr.bf16.mxu0 0
    %3370 = vmatpush1.bf16.msra.mxu0 %v3152
    %3371 = vmatprep.subr.bf16.mxu0 0
    %3372 = vmatpush1.bf16.msra.mxu0 %v3151
    %3373 = vmatprep.subr.bf16.mxu0 0
    %3374 = vmatpush1.bf16.msra.mxu0 %v3150
    %3375 = vmatprep.subr.bf16.mxu0 0
    %3376 = vmatpush2.bf16.msra.mxu0 %v3165
    %3377 = vmatprep.subr.bf16.mxu0 0
    %3378 = vmatpush2.bf16.msra.mxu0 %v3164
    %3379 = vmatprep.subr.bf16.mxu0 0
    %3380 = vmatpush2.bf16.msra.mxu0 %v3163
    %3381 = vmatprep.subr.bf16.mxu0 0
    %3382 = vmatpush2.bf16.msra.mxu0 %v3162
    %3383 = vmatprep.subr.bf16.mxu0 0
    %3384 = vmatpush2.bf16.msra.mxu0 %v3161
    %3385 = vmatprep.subr.bf16.mxu0 0
    %3386 = vmatpush2.bf16.msra.mxu0 %v3160
    %3387 = vmatprep.subr.bf16.mxu0 0
    %3388 = vmatpush2.bf16.msra.mxu0 %v3159
    %3389 = vmatprep.subr.bf16.mxu0 0
    %3390 = vmatpush2.bf16.msra.mxu0 %v3158
    %3391 = vmatprep.mubr.bf16.mxu0 %v2870
    %3392 = vmatmul.mubr.bf16.gmra.mxu0 %v2869
    %v3393 = vpop.f32.mrf.mxu0
    %v3394 = vadd.f32 %v3233, %v3393
    %v3395 = vpop.f32.mrf.mxu0
    %v3396 = vpop.f32.mrf.mxu0
    %v3397 = vadd.f32 %v3236, %v3396
    %v3398 = vpop.f32.mrf.mxu0
    %3399 = vmatprep.mubr.bf16.mxu0 %v2874
    %3400 = vmatmul.mubr.bf16.gmra.mxu0 %v2873
    %v3401 = vpop.f32.mrf.mxu0
    %v3402 = vadd.f32 %v3241, %v3401
    %v3403 = vpop.f32.mrf.mxu0
    %v3404 = vpop.f32.mrf.mxu0
    %v3405 = vadd.f32 %v3244, %v3404
    %v3406 = vpop.f32.mrf.mxu0
    %3407 = vmatprep.mubr.bf16.mxu0 %v2878
    %3408 = vmatmul.mubr.bf16.gmra.mxu0 %v2877
    %v3409 = vpop.f32.mrf.mxu0
    %v3410 = vadd.f32 %v3249, %v3409
    %v3411 = vpop.f32.mrf.mxu0
    %v3412 = vpop.f32.mrf.mxu0
    %v3413 = vadd.f32 %v3252, %v3412
    %v3414 = vpop.f32.mrf.mxu0
    %3415 = vmatprep.mubr.bf16.mxu0 %v2882
    %3416 = vmatmul.mubr.bf16.gmra.mxu0 %v2881
    %v3417 = vpop.f32.mrf.mxu0
    %v3418 = vadd.f32 %v3257, %v3417
    %v3419 = vpop.f32.mrf.mxu0
    %v3420 = vpop.f32.mrf.mxu0
    %v3421 = vadd.f32 %v3260, %v3420
    %v3422 = vpop.f32.mrf.mxu0
    %3423 = vmatprep.mubr.bf16.mxu0 %v2886
    %3424 = vmatmul.mubr.bf16.gmra.mxu0 %v2885
    %v3425 = vpop.f32.mrf.mxu0
    %v3426 = vadd.f32 %v3265, %v3425
    %v3427 = vpop.f32.mrf.mxu0
    %v3428 = vpop.f32.mrf.mxu0
    %v3429 = vadd.f32 %v3268, %v3428
    %v3430 = vpop.f32.mrf.mxu0
    %3431 = vmatprep.mubr.bf16.mxu0 %v2890
    %3432 = vmatmul.mubr.bf16.gmra.mxu0 %v2889
    %v3433 = vpop.f32.mrf.mxu0
    %v3434 = vadd.f32 %v3273, %v3433
    %v3435 = vpop.f32.mrf.mxu0
    %v3436 = vpop.f32.mrf.mxu0
    %v3437 = vadd.f32 %v3276, %v3436
    %v3438 = vpop.f32.mrf.mxu0
    %3439 = vmatprep.mubr.bf16.mxu0 %v2894
    %3440 = vmatmul.mubr.bf16.gmra.mxu0 %v2893
    %v3441 = vpop.f32.mrf.mxu0
    %v3442 = vadd.f32 %v3281, %v3441
    %v3443 = vpop.f32.mrf.mxu0
    %v3444 = vpop.f32.mrf.mxu0
    %v3445 = vadd.f32 %v3284, %v3444
    %v3446 = vpop.f32.mrf.mxu0
    %3447 = vmatprep.mubr.bf16.mxu0 %v2898
    %3448 = vmatmul.mubr.bf16.gmra.mxu0 %v2897
    %v3449 = vpop.f32.mrf.mxu0
    %v3450 = vadd.f32 %v3289, %v3449
    %v3451 = vpop.f32.mrf.mxu0
    %v3452 = vpop.f32.mrf.mxu0
    %v3453 = vadd.f32 %v3292, %v3452
    %v3454 = vpop.f32.mrf.mxu0
    %3455 = vmatprep.mubr.bf16.mxu0 %v2902
    %3456 = vmatmul.mubr.bf16.gmra.mxu0 %v2901
    %v3457 = vpop.f32.mrf.mxu0
    %v3458 = vadd.f32 %v3297, %v3457
    %v3459 = vpop.f32.mrf.mxu0
    %v3460 = vpop.f32.mrf.mxu0
    %v3461 = vadd.f32 %v3300, %v3460
    %v3462 = vpop.f32.mrf.mxu0
    %3463 = vmatprep.mubr.bf16.mxu0 %v2906
    %3464 = vmatmul.mubr.bf16.gmra.mxu0 %v2905
    %v3465 = vpop.f32.mrf.mxu0
    %v3466 = vadd.f32 %v3305, %v3465
    %v3467 = vpop.f32.mrf.mxu0
    %v3468 = vpop.f32.mrf.mxu0
    %v3469 = vadd.f32 %v3308, %v3468
    %v3470 = vpop.f32.mrf.mxu0
    %3471 = vmatprep.mubr.bf16.mxu0 %v2910
    %3472 = vmatmul.mubr.bf16.gmra.mxu0 %v2909
    %v3473 = vpop.f32.mrf.mxu0
    %v3474 = vadd.f32 %v3313, %v3473
    %v3475 = vpop.f32.mrf.mxu0
    %v3476 = vpop.f32.mrf.mxu0
    %v3477 = vadd.f32 %v3316, %v3476
    %v3478 = vpop.f32.mrf.mxu0
    %3479 = vmatprep.mubr.bf16.mxu0 %v2914
    %3480 = vmatmul.mubr.bf16.gmra.mxu0 %v2913
    %v3481 = vpop.f32.mrf.mxu0
    %v3482 = vadd.f32 %v3321, %v3481
    %v3483 = vpop.f32.mrf.mxu0
    %v3484 = vpop.f32.mrf.mxu0
    %v3485 = vadd.f32 %v3324, %v3484
    %v3486 = vpop.f32.mrf.mxu0
    %3487 = vmatprep.mubr.bf16.mxu0 %v2918
    %3488 = vmatmul.mubr.bf16.gmra.mxu0 %v2917
    %v3489 = vpop.f32.mrf.mxu0
    %v3490 = vadd.f32 %v3329, %v3489
    %v3491 = vpop.f32.mrf.mxu0
    %v3492 = vpop.f32.mrf.mxu0
    %v3493 = vadd.f32 %v3332, %v3492
    %v3494 = vpop.f32.mrf.mxu0
    %3495 = vmatprep.mubr.bf16.mxu0 %v2922
    %3496 = vmatmul.mubr.bf16.gmra.mxu0 %v2921
    %v3497 = vpop.f32.mrf.mxu0
    %v3498 = vadd.f32 %v3337, %v3497
    %v3499 = vpop.f32.mrf.mxu0
    %v3500 = vpop.f32.mrf.mxu0
    %v3501 = vadd.f32 %v3340, %v3500
    %v3502 = vpop.f32.mrf.mxu0
    %3503 = vmatprep.mubr.bf16.mxu0 %v2926
    %3504 = vmatmul.mubr.bf16.gmra.mxu0 %v2925
    %v3505 = vpop.f32.mrf.mxu0
    %v3506 = vadd.f32 %v3345, %v3505
    %v3507 = vpop.f32.mrf.mxu0
    %v3508 = vpop.f32.mrf.mxu0
    %v3509 = vadd.f32 %v3348, %v3508
    %v3510 = vpop.f32.mrf.mxu0
    %3511 = vmatprep.mubr.bf16.mxu0 %v2930
    %3512 = vmatmul.mubr.bf16.gmra.mxu0 %v2929
    %v3513 = vpop.f32.mrf.mxu0
    %v3514 = vadd.f32 %v3353, %v3513
    %v3515 = vpop.f32.mrf.mxu0
    %v3516 = vpop.f32.mrf.mxu0
    %v3517 = vadd.f32 %v3356, %v3516
    %v3518 = vpop.f32.mrf.mxu0
    %3519 = vdwg.mxu0
    %v3520 = vmax.f32 %v3394, 0.0
    %v3521 = vmax.f32 %v3397, 0.0
    %v3522 = vmax.f32 %v3402, 0.0
    %v3523 = vmax.f32 %v3405, 0.0
    %v3524 = vmax.f32 %v3410, 0.0
    %v3525 = vmax.f32 %v3413, 0.0
    %v3526 = vmax.f32 %v3418, 0.0
    %v3527 = vmax.f32 %v3421, 0.0
    %v3528 = vmax.f32 %v3426, 0.0
    %v3529 = vmax.f32 %v3429, 0.0
    %v3530 = vmax.f32 %v3434, 0.0
    %v3531 = vmax.f32 %v3437, 0.0
    %v3532 = vmax.f32 %v3442, 0.0
    %v3533 = vmax.f32 %v3445, 0.0
    %v3534 = vmax.f32 %v3450, 0.0
    %v3535 = vmax.f32 %v3453, 0.0
    %v3536 = vmax.f32 %v3458, 0.0
    %v3537 = vmax.f32 %v3461, 0.0
    %v3538 = vmax.f32 %v3466, 0.0
    %v3539 = vmax.f32 %v3469, 0.0
    %v3540 = vmax.f32 %v3474, 0.0
    %v3541 = vmax.f32 %v3477, 0.0
    %v3542 = vmax.f32 %v3482, 0.0
    %v3543 = vmax.f32 %v3485, 0.0
    %v3544 = vmax.f32 %v3490, 0.0
    %v3545 = vmax.f32 %v3493, 0.0
    %v3546 = vmax.f32 %v3498, 0.0
    %v3547 = vmax.f32 %v3501, 0.0
    %v3548 = vmax.f32 %v3506, 0.0
    %v3549 = vmax.f32 %v3509, 0.0
    %v3550 = vmax.f32 %v3514, 0.0
    %v3551 = vmax.f32 %v3517, 0.0
    %v3552 = vpack.c.bf16 %v3521, %v3520
    %v3553 = vpack.c.bf16 %v3523, %v3522
    %v3554 = vpack.c.bf16 %v3525, %v3524
    %v3555 = vpack.c.bf16 %v3527, %v3526
    %v3556 = vpack.c.bf16 %v3529, %v3528
    %v3557 = vpack.c.bf16 %v3531, %v3530
    %v3558 = vpack.c.bf16 %v3533, %v3532
    %v3559 = vpack.c.bf16 %v3535, %v3534
    %v3560 = vpack.c.bf16 %v3537, %v3536
    %v3561 = vpack.c.bf16 %v3539, %v3538
    %v3562 = vpack.c.bf16 %v3541, %v3540
    %v3563 = vpack.c.bf16 %v3543, %v3542
    %v3564 = vpack.c.bf16 %v3545, %v3544
    %v3565 = vpack.c.bf16 %v3547, %v3546
    %v3566 = vpack.c.bf16 %v3549, %v3548
    %v3567 = vpack.c.bf16 %v3551, %v3550
    %s3568 = smul.u32 4, 16
    %s3569 = smul.u32 %s3568, 1
    %s3570 = sshll.u32 %s3569, 4
    %3571 = dma.done %s153, %s3570
    %v3572 = vld [vmem:[#allocation3] sm:$0xf]
    %v3573 = vld [vmem:[#allocation3 + $0x4] sm:$0xf]
    %v3574 = vld [vmem:[#allocation3 + $0x8] sm:$0xf]
    %v3575 = vld [vmem:[#allocation3 + $0xc] sm:$0xf]
    %v3576 = vld [vmem:[#allocation3 + $0x10] sm:$0xf]
    %v3577 = vld [vmem:[#allocation3 + $0x14] sm:$0xf]
    %v3578 = vld [vmem:[#allocation3 + $0x18] sm:$0xf]
    %v3579 = vld [vmem:[#allocation3 + $0x1c] sm:$0xf]
    %v3580 = vld [vmem:[#allocation3 + $0x20] sm:$0xf]
    %v3581 = vld [vmem:[#allocation3 + $0x24] sm:$0xf]
    %v3582 = vld [vmem:[#allocation3 + $0x28] sm:$0xf]
    %v3583 = vld [vmem:[#allocation3 + $0x2c] sm:$0xf]
    %v3584 = vld [vmem:[#allocation3 + $0x30] sm:$0xf]
    %v3585 = vld [vmem:[#allocation3 + $0x34] sm:$0xf]
    %v3586 = vld [vmem:[#allocation3 + $0x38] sm:$0xf]
    %v3587 = vld [vmem:[#allocation3 + $0x3c] sm:$0xf]
    %v3588 = vld [vmem:[%s14] sm:$0x1]
    %v3590 = vlaneseq
    %v3591 = vshrl.u32 %v3590, 7
    %v3592 = vsub.s32 0, %v3591
    %v3593 = vrot.slane %v3588, %v3592
    %v3611 = vunpack.c.l.b16 %v3572
    %v3612 = vunpack.c.l.b16 %v3573
    %v3613 = vunpack.c.l.b16 %v3574
    %v3614 = vunpack.c.l.b16 %v3575
    %v3615 = vunpack.c.l.b16 %v3576
    %v3616 = vunpack.c.l.b16 %v3577
    %v3617 = vunpack.c.l.b16 %v3578
    %v3618 = vunpack.c.l.b16 %v3579
    %v3619 = vunpack.c.l.b16 %v3580
    %v3620 = vunpack.c.l.b16 %v3581
    %v3621 = vunpack.c.l.b16 %v3582
    %v3622 = vunpack.c.l.b16 %v3583
    %v3623 = vunpack.c.l.b16 %v3584
    %v3624 = vunpack.c.l.b16 %v3585
    %v3625 = vunpack.c.l.b16 %v3586
    %v3626 = vunpack.c.l.b16 %v3587
    %v3627 = vpack.c.b16 %v3612, %v3611
    %v3628 = vpack.c.b16 %v3614, %v3613
    %v3629 = vpack.c.b16 %v3616, %v3615
    %v3630 = vpack.c.b16 %v3618, %v3617
    %v3631 = vpack.c.b16 %v3620, %v3619
    %v3632 = vpack.c.b16 %v3622, %v3621
    %v3633 = vpack.c.b16 %v3624, %v3623
    %v3634 = vpack.c.b16 %v3626, %v3625
    %3643 = vmatprep.subr.bf16.mxu0 0
    %3644 = vmatpush1.bf16.msra.mxu0 %v3634
    %3645 = vmatprep.subr.bf16.mxu0 0
    %3646 = vmatpush1.bf16.msra.mxu0 %v3633
    %3647 = vmatprep.subr.bf16.mxu0 0
    %3648 = vmatpush1.bf16.msra.mxu0 %v3632
    %3649 = vmatprep.subr.bf16.mxu0 0
    %3650 = vmatpush1.bf16.msra.mxu0 %v3631
    %3651 = vmatprep.subr.bf16.mxu0 0
    %3652 = vmatpush1.bf16.msra.mxu0 %v3630
    %3653 = vmatprep.subr.bf16.mxu0 0
    %3654 = vmatpush1.bf16.msra.mxu0 %v3629
    %3655 = vmatprep.subr.bf16.mxu0 0
    %3656 = vmatpush1.bf16.msra.mxu0 %v3628
    %3657 = vmatprep.subr.bf16.mxu0 0
    %3658 = vmatpush1.bf16.msra.mxu0 %v3627
    %3659 = vmatprep.subr.bf16.mxu0 0
    %3660 = vmatpush2.bf16.msra.mxu0 0
    %3661 = vmatprep.subr.bf16.mxu0 0
    %3662 = vmatpush2.bf16.msra.mxu0 0
    %3663 = vmatprep.subr.bf16.mxu0 0
    %3664 = vmatpush2.bf16.msra.mxu0 0
    %3665 = vmatprep.subr.bf16.mxu0 0
    %3666 = vmatpush2.bf16.msra.mxu0 0
    %3667 = vmatprep.subr.bf16.mxu0 0
    %3668 = vmatpush2.bf16.msra.mxu0 0
    %3669 = vmatprep.subr.bf16.mxu0 0
    %3670 = vmatpush2.bf16.msra.mxu0 0
    %3671 = vmatprep.subr.bf16.mxu0 0
    %3672 = vmatpush2.bf16.msra.mxu0 0
    %3673 = vmatprep.subr.bf16.mxu0 0
    %3674 = vmatpush2.bf16.msra.mxu0 0
    %3675 = vmatprep.mubr.bf16.mxu0 0
    %3676 = vmatmul.mubr.bf16.gmra.mxu0 %v3552
    %v3677 = vpop.f32.mrf.mxu0
    %v3678 = vadd.f32 %v3593, %v3677
    %v3679 = vpop.f32.mrf.mxu0
    %v3680 = vpop.f32.mrf.mxu0
    %v3681 = vadd.f32 %v3593, %v3680
    %v3682 = vpop.f32.mrf.mxu0
    %3683 = vmatprep.mubr.bf16.mxu0 0
    %3684 = vmatmul.mubr.bf16.gmra.mxu0 %v3553
    %v3685 = vpop.f32.mrf.mxu0
    %v3686 = vadd.f32 %v3593, %v3685
    %v3687 = vpop.f32.mrf.mxu0
    %v3688 = vpop.f32.mrf.mxu0
    %v3689 = vadd.f32 %v3593, %v3688
    %v3690 = vpop.f32.mrf.mxu0
    %3691 = vmatprep.mubr.bf16.mxu0 0
    %3692 = vmatmul.mubr.bf16.gmra.mxu0 %v3554
    %v3693 = vpop.f32.mrf.mxu0
    %v3694 = vadd.f32 %v3593, %v3693
    %v3695 = vpop.f32.mrf.mxu0
    %v3696 = vpop.f32.mrf.mxu0
    %v3697 = vadd.f32 %v3593, %v3696
    %v3698 = vpop.f32.mrf.mxu0
    %3699 = vmatprep.mubr.bf16.mxu0 0
    %3700 = vmatmul.mubr.bf16.gmra.mxu0 %v3555
    %v3701 = vpop.f32.mrf.mxu0
    %v3702 = vadd.f32 %v3593, %v3701
    %v3703 = vpop.f32.mrf.mxu0
    %v3704 = vpop.f32.mrf.mxu0
    %v3705 = vadd.f32 %v3593, %v3704
    %v3706 = vpop.f32.mrf.mxu0
    %3707 = vmatprep.mubr.bf16.mxu0 0
    %3708 = vmatmul.mubr.bf16.gmra.mxu0 %v3556
    %v3709 = vpop.f32.mrf.mxu0
    %v3710 = vadd.f32 %v3593, %v3709
    %v3711 = vpop.f32.mrf.mxu0
    %v3712 = vpop.f32.mrf.mxu0
    %v3713 = vadd.f32 %v3593, %v3712
    %v3714 = vpop.f32.mrf.mxu0
    %3715 = vmatprep.mubr.bf16.mxu0 0
    %3716 = vmatmul.mubr.bf16.gmra.mxu0 %v3557
    %v3717 = vpop.f32.mrf.mxu0
    %v3718 = vadd.f32 %v3593, %v3717
    %v3719 = vpop.f32.mrf.mxu0
    %v3720 = vpop.f32.mrf.mxu0
    %v3721 = vadd.f32 %v3593, %v3720
    %v3722 = vpop.f32.mrf.mxu0
    %3723 = vmatprep.mubr.bf16.mxu0 0
    %3724 = vmatmul.mubr.bf16.gmra.mxu0 %v3558
    %v3725 = vpop.f32.mrf.mxu0
    %v3726 = vadd.f32 %v3593, %v3725
    %v3727 = vpop.f32.mrf.mxu0
    %v3728 = vpop.f32.mrf.mxu0
    %v3729 = vadd.f32 %v3593, %v3728
    %v3730 = vpop.f32.mrf.mxu0
    %3731 = vmatprep.mubr.bf16.mxu0 0
    %3732 = vmatmul.mubr.bf16.gmra.mxu0 %v3559
    %v3733 = vpop.f32.mrf.mxu0
    %v3734 = vadd.f32 %v3593, %v3733
    %v3735 = vpop.f32.mrf.mxu0
    %v3736 = vpop.f32.mrf.mxu0
    %v3737 = vadd.f32 %v3593, %v3736
    %v3738 = vpop.f32.mrf.mxu0
    %3739 = vmatprep.mubr.bf16.mxu0 0
    %3740 = vmatmul.mubr.bf16.gmra.mxu0 %v3560
    %v3741 = vpop.f32.mrf.mxu0
    %v3742 = vadd.f32 %v3593, %v3741
    %v3743 = vpop.f32.mrf.mxu0
    %v3744 = vpop.f32.mrf.mxu0
    %v3745 = vadd.f32 %v3593, %v3744
    %v3746 = vpop.f32.mrf.mxu0
    %3747 = vmatprep.mubr.bf16.mxu0 0
    %3748 = vmatmul.mubr.bf16.gmra.mxu0 %v3561
    %v3749 = vpop.f32.mrf.mxu0
    %v3750 = vadd.f32 %v3593, %v3749
    %v3751 = vpop.f32.mrf.mxu0
    %v3752 = vpop.f32.mrf.mxu0
    %v3753 = vadd.f32 %v3593, %v3752
    %v3754 = vpop.f32.mrf.mxu0
    %3755 = vmatprep.mubr.bf16.mxu0 0
    %3756 = vmatmul.mubr.bf16.gmra.mxu0 %v3562
    %v3757 = vpop.f32.mrf.mxu0
    %v3758 = vadd.f32 %v3593, %v3757
    %v3759 = vpop.f32.mrf.mxu0
    %v3760 = vpop.f32.mrf.mxu0
    %v3761 = vadd.f32 %v3593, %v3760
    %v3762 = vpop.f32.mrf.mxu0
    %3763 = vmatprep.mubr.bf16.mxu0 0
    %3764 = vmatmul.mubr.bf16.gmra.mxu0 %v3563
    %v3765 = vpop.f32.mrf.mxu0
    %v3766 = vadd.f32 %v3593, %v3765
    %v3767 = vpop.f32.mrf.mxu0
    %v3768 = vpop.f32.mrf.mxu0
    %v3769 = vadd.f32 %v3593, %v3768
    %v3770 = vpop.f32.mrf.mxu0
    %3771 = vmatprep.mubr.bf16.mxu0 0
    %3772 = vmatmul.mubr.bf16.gmra.mxu0 %v3564
    %v3773 = vpop.f32.mrf.mxu0
    %v3774 = vadd.f32 %v3593, %v3773
    %v3775 = vpop.f32.mrf.mxu0
    %v3776 = vpop.f32.mrf.mxu0
    %v3777 = vadd.f32 %v3593, %v3776
    %v3778 = vpop.f32.mrf.mxu0
    %3779 = vmatprep.mubr.bf16.mxu0 0
    %3780 = vmatmul.mubr.bf16.gmra.mxu0 %v3565
    %v3781 = vpop.f32.mrf.mxu0
    %v3782 = vadd.f32 %v3593, %v3781
    %v3783 = vpop.f32.mrf.mxu0
    %v3784 = vpop.f32.mrf.mxu0
    %v3785 = vadd.f32 %v3593, %v3784
    %v3786 = vpop.f32.mrf.mxu0
    %3787 = vmatprep.mubr.bf16.mxu0 0
    %3788 = vmatmul.mubr.bf16.gmra.mxu0 %v3566
    %v3789 = vpop.f32.mrf.mxu0
    %v3790 = vadd.f32 %v3593, %v3789
    %v3791 = vpop.f32.mrf.mxu0
    %v3792 = vpop.f32.mrf.mxu0
    %v3793 = vadd.f32 %v3593, %v3792
    %v3794 = vpop.f32.mrf.mxu0
    %3795 = vmatprep.mubr.bf16.mxu0 0
    %3796 = vmatmul.mubr.bf16.gmra.mxu0 %v3567
    %v3797 = vpop.f32.mrf.mxu0
    %v3798 = vadd.f32 %v3593, %v3797
    %v3799 = vpop.f32.mrf.mxu0
    %v3800 = vpop.f32.mrf.mxu0
    %v3801 = vadd.f32 %v3593, %v3800
    %v3802 = vpop.f32.mrf.mxu0
    %3803 = vdwg.mxu0
    %v3804 = vtanh.pop %v3678
    %v3805 = vtanh.pop %v3681
    %v3806 = vtanh.pop %v3686
    %v3807 = vtanh.pop %v3689
    %v3808 = vtanh.pop %v3694
    %v3809 = vtanh.pop %v3697
    %v3810 = vtanh.pop %v3702
    %v3811 = vtanh.pop %v3705
    %v3812 = vtanh.pop %v3710
    %v3813 = vtanh.pop %v3713
    %v3814 = vtanh.pop %v3718
    %v3815 = vtanh.pop %v3721
    %v3816 = vtanh.pop %v3726
    %v3817 = vtanh.pop %v3729
    %v3818 = vtanh.pop %v3734
    %v3819 = vtanh.pop %v3737
    %v3820 = vtanh.pop %v3742
    %v3821 = vtanh.pop %v3745
    %v3822 = vtanh.pop %v3750
    %v3823 = vtanh.pop %v3753
    %v3824 = vtanh.pop %v3758
    %v3825 = vtanh.pop %v3761
    %v3826 = vtanh.pop %v3766
    %v3827 = vtanh.pop %v3769
    %v3828 = vtanh.pop %v3774
    %v3829 = vtanh.pop %v3777
    %v3830 = vtanh.pop %v3782
    %v3831 = vtanh.pop %v3785
    %v3832 = vtanh.pop %v3790
    %v3833 = vtanh.pop %v3793
    %v3834 = vtanh.pop %v3798
    %v3835 = vtanh.pop %v3801
    %3836 = vst [vmem:[#allocation5] sm:$0xff] %v3804
    %3837 = vst [vmem:[#allocation5 + $0x8] sm:$0xff] %v3805
    %3838 = vst [vmem:[#allocation5 + $0x10] sm:$0xff] %v3806
    %3839 = vst [vmem:[#allocation5 + $0x18] sm:$0xff] %v3807
    %3840 = vst [vmem:[#allocation5 + $0x20] sm:$0xff] %v3808
    %3841 = vst [vmem:[#allocation5 + $0x28] sm:$0xff] %v3809
    %3842 = vst [vmem:[#allocation5 + $0x30] sm:$0xff] %v3810
    %3843 = vst [vmem:[#allocation5 + $0x38] sm:$0xff] %v3811
    %3844 = vst [vmem:[#allocation5 + $0x40] sm:$0xff] %v3812
    %3845 = vst [vmem:[#allocation5 + $0x48] sm:$0xff] %v3813
    %3846 = vst [vmem:[#allocation5 + $0x50] sm:$0xff] %v3814
    %3847 = vst [vmem:[#allocation5 + $0x58] sm:$0xff] %v3815
    %3848 = vst [vmem:[#allocation5 + $0x60] sm:$0xff] %v3816
    %3849 = vst [vmem:[#allocation5 + $0x68] sm:$0xff] %v3817
    %3850 = vst [vmem:[#allocation5 + $0x70] sm:$0xff] %v3818
    %3851 = vst [vmem:[#allocation5 + $0x78] sm:$0xff] %v3819
    %3852 = vst [vmem:[#allocation5 + $0x80] sm:$0xff] %v3820
    %3853 = vst [vmem:[#allocation5 + $0x88] sm:$0xff] %v3821
    %3854 = vst [vmem:[#allocation5 + $0x90] sm:$0xff] %v3822
    %3855 = vst [vmem:[#allocation5 + $0x98] sm:$0xff] %v3823
    %3856 = vst [vmem:[#allocation5 + $0xa0] sm:$0xff] %v3824
    %3857 = vst [vmem:[#allocation5 + $0xa8] sm:$0xff] %v3825
    %3858 = vst [vmem:[#allocation5 + $0xb0] sm:$0xff] %v3826
    %3859 = vst [vmem:[#allocation5 + $0xb8] sm:$0xff] %v3827
    %3860 = vst [vmem:[#allocation5 + $0xc0] sm:$0xff] %v3828
    %3861 = vst [vmem:[#allocation5 + $0xc8] sm:$0xff] %v3829
    %3862 = vst [vmem:[#allocation5 + $0xd0] sm:$0xff] %v3830
    %3863 = vst [vmem:[#allocation5 + $0xd8] sm:$0xff] %v3831
    %3864 = vst [vmem:[#allocation5 + $0xe0] sm:$0xff] %v3832
    %3865 = vst [vmem:[#allocation5 + $0xe8] sm:$0xff] %v3833
    %3866 = vst [vmem:[#allocation5 + $0xf0] sm:$0xff] %v3834
    %3867 = vst [vmem:[#allocation5 + $0xf8] sm:$0xff] %v3835
    // Predicated region
    $region122: #{tpu_custom_call.1} parent=1 // pred_check
      _
    $region123: #{tpu_custom_call.1} parent=1 // pred_check_branch
      %3869 = sbr.rel (0) target = $region125
    $region124: #{tpu_custom_call.1} parent=1 // pred_region
      %s3871 = ssub.s32 4096, 4096
      %3872 = vsyncadd [#allocation6], %s3871
      %s3873 = sshll.u32 [#allocation5], 4
      %s3874 = int_to_ptr.vmem [resolvable:$true] %s3873
      %3879 = dma.vmem_to_hbm [thread:$0]  %s3874, 4096, %s15, [#allocation6], 128, 128, 8
    $region125: #{tpu_custom_call.1} parent=1 // pred_fallthru
      _
    // Predicated region
    $region126: #{tpu_custom_call.1} parent=1 // pred_check
      _
    $region127: #{tpu_custom_call.1} parent=1 // pred_check_branch
      %3881 = sbr.rel (0) target = $region129
    $region128: #{tpu_custom_call.1} parent=1 // pred_region
      %3882 = dma.done [#allocation6], 4096
    $region129: #{tpu_custom_call.1} parent=1 // pred_fallthru
      _
    %3883 = vsyncpa [#allocation6], 1
  %3884 = vsyncmov [#allocation4]
  %s3885 = vpop.sfrf %3884
  %p3886 = scmp.eq.s32.totalorder %s3885, 0
  %p3887 = pneg %p3886
  %3889 = shalt.err (%p3887)
  %s3890 = scalar_lea.sflag [#allocation4], 1
  %3891 = vsyncmov %s3890
  %s3892 = vpop.sfrf %3891
  %p3893 = scmp.eq.s32.totalorder %s3892, 0
  %p3894 = pneg %p3893
  %3896 = shalt.err (%p3894)

</llo_original>
